<compile_context>
chip_gen: v5e
topology: v5e:2x2
jax: 0.10.0
libtpu: 0.0.40
codegen_flags: <defaults>
</compile_context>

<pallas_src>
import math

import jax
import jax.numpy as jnp
from jax.experimental import pallas as pl
from jax.experimental.pallas import tpu as pltpu


def make_ranknet_kernel(H, W, C, B, KPAD, margin):
    """One grid step == B batch elements, fully fused in-kernel."""
    P = H * W
    eps = 1e-5
    # tap index k = dy*3 + dx; flattened-lane shift for that tap
    tap_list = [(k, divmod(k, 3)) for k in range(9)]

    def kernel(x_ref, w1_ref, w2_ref, bias_ref, out_ref, tpad_ref, ypad_ref):
        # ---- zero the shift margins (scratches are tiny; do it every step so
        #      it is also correct when the grid is sharded across TensorCores).
        tpad_ref[...] = jnp.zeros_like(tpad_ref)
        ypad_ref[...] = jnp.zeros_like(ypad_ref)

        # ---- conv1 (3x3, C->1): channel contraction on the MXU --------------
        # Per sample: (KPAD, C) @ (C, P) -> (KPAD, P); row k is tap-k's plane.
        for b in range(B):
            t = jnp.dot(w1_ref[...], x_ref[b],
                        preferred_element_type=jnp.float32)        # (KPAD, P)
            tpad_ref[b, :, margin:margin + P] = t

        # validity masks for the horizontal taps (flattened p = y*W + x);
        # vertical out-of-bounds taps land in the zeroed margins automatically.
        col = jax.lax.broadcasted_iota(jnp.int32, (1, 1, P), 2) % W
        ok_l = col >= 1          # taps with dx-1 == -1
        ok_r = col <= W - 2      # taps with dx-1 == +1

        def masked(vals, dx):
            if dx == 0:
                return jnp.where(ok_l, vals, 0.0)
            if dx == 2:
                return jnp.where(ok_r, vals, 0.0)
            return vals

        # ---- conv1 spatial recombination, batched over B ---------------------
        acc1 = jnp.zeros((B, 1, P), jnp.float32)
        for k, (dy, dx) in tap_list:
            s = (dy - 1) * W + (dx - 1)
            vals = tpad_ref[:, k:k + 1, margin + s:margin + s + P]  # (B, 1, P)
            acc1 = acc1 + masked(vals, dx)
        y = acc1 + bias_ref[0]

        # ---- InstanceNorm2d(1) (no affine) + ReLU ----------------------------
        mu = jnp.mean(y, axis=-1, keepdims=True)
        var = jnp.mean((y - mu) ** 2, axis=-1, keepdims=True)
        y = jnp.maximum((y - mu) * jax.lax.rsqrt(var + eps), 0.0)

        # ---- conv2 (3x3, 1->1): scalar taps from SMEM, same shift scheme -----
        ypad_ref[:, :, margin:margin + P] = y
        acc2 = jnp.zeros((B, 1, P), jnp.float32)
        for k, (dy, dx) in tap_list:
            s = (dy - 1) * W + (dx - 1)
            vals = ypad_ref[:, :, margin + s:margin + s + P]        # (B, 1, P)
            acc2 = acc2 + w2_ref[k] * masked(vals, dx)
        y = acc2 + bias_ref[1]

        # ---- InstanceNorm2d(1) + ReLU ----------------------------------------
        mu = jnp.mean(y, axis=-1, keepdims=True)
        var = jnp.mean((y - mu) ** 2, axis=-1, keepdims=True)
        y = jnp.maximum((y - mu) * jax.lax.rsqrt(var + eps), 0.0)

        # ---- AdaptiveAvgPool2d((1,1)) + trailing singleton means -> (B,1,1) --
        out_ref[...] = jnp.mean(y, axis=-1, keepdims=True)

    return kernel


def ranknet_pallas(x_nchw, w1_oihw, b1, w2_oihw, b2, *, block_b=16):
    """x_nchw: (N, 256, H, W) f32; returns (N,) f32 matching RankNet.forward."""
    N, C, H, W = x_nchw.shape
    P = H * W
    KPAD = 16                 # 9 taps padded to a sublane multiple
    margin = W + 8            # >= W+1, covers the largest tap shift
    B = block_b
    G = -(-N // B)            # ceil
    Npad = G * B

    # Free reshape only (no HBM transpose / pad passes).
    x2 = x_nchw.reshape(N, C, P).astype(jnp.float32)
    if Npad != N:
        x2 = jnp.concatenate(
            [x2, jnp.zeros((Npad - N, C, P), jnp.float32)], axis=0)

    # conv1 weights -> tap-major (k = dy*3 + dx) matrix (KPAD, C), zero rows pad.
    w1t = jnp.transpose(w1_oihw[0].reshape(C, 9), (1, 0)).astype(jnp.float32)
    w1p = jnp.concatenate([w1t, jnp.zeros((KPAD - 9, C), jnp.float32)], axis=0)
    w2_taps = w2_oihw.reshape(9).astype(jnp.float32)
    biases = jnp.stack([b1, b2]).astype(jnp.float32)

    out = pl.pallas_call(
        make_ranknet_kernel(H, W, C, B, KPAD, margin),
        out_shape=jax.ShapeDtypeStruct((Npad, 1, 1), jnp.float32),
        grid_spec=pltpu.PrefetchScalarGridSpec(
            num_scalar_prefetch=0,
            grid=(G,),
            in_specs=[
                pl.BlockSpec((B, C, P), lambda g: (g, 0, 0)),       # activations
                pl.BlockSpec((KPAD, C), lambda g: (0, 0)),          # conv1 taps
                pl.BlockSpec(memory_space=pltpu.SMEM),              # conv2 taps (9,)
                pl.BlockSpec(memory_space=pltpu.SMEM),              # biases (2,)
            ],
            out_specs=pl.BlockSpec((B, 1, 1), lambda g: (g, 0, 0)),
            scratch_shapes=[
                pltpu.VMEM((B, KPAD, P + 2 * margin), jnp.float32),  # tap planes
                pltpu.VMEM((B, 1, P + 2 * margin), jnp.float32),     # conv2 halo
            ],
        ),
        compiler_params=pltpu.CompilerParams(
            dimension_semantics=("parallel",),
            vmem_limit_bytes=32 * 1024 * 1024,
        ),
    )(x2, w1p, w2_taps, biases)
    return out.reshape(Npad)[:N]


def ranknet_reference(x, w1_oihw, b1, w2_oihw, b2):
    """Pure-JAX reference (same math as the PyTorch module)."""
    dn = ("NCHW", "OIHW", "NCHW")
    eps = 1e-5

    def block(x, w, b):
        y = jax.lax.conv_general_dilated(
            x, w, (1, 1), "SAME", dimension_numbers=dn,
            precision=jax.lax.Precision.HIGHEST) + b
        mu = y.mean(axis=(2, 3), keepdims=True)
        var = ((y - mu) ** 2).mean(axis=(2, 3), keepdims=True)
        y = (y - mu) * jax.lax.rsqrt(var + eps)
        return jnp.maximum(y, 0.0)

    y = block(x, w1_oihw, b1)
    y = block(y, w2_oihw, b2)
    pooled = y.mean(axis=(2, 3))     # AdaptiveAvgPool2d((1,1)) -> (N, 1)
    return pooled.mean(axis=1)       # .mean(1).mean(1).mean(1) -> (N,)


if __name__ == "__main__":
    N, C, H, W = 32, 256, 8, 8       # RankNet requires 256 input channels

    key = jax.random.PRNGKey(0)
    kx, k1, k2, k3, k4 = jax.random.split(key, 5)

    x = jax.random.normal(kx, (N, C, H, W), jnp.float32)

    # Deterministic PyTorch-style init (uniform +/- 1/sqrt(fan_in)).
    bound1 = 1.0 / math.sqrt(C * 9)
    w1_oihw = jax.random.uniform(k1, (1, C, 3, 3), jnp.float32, -bound1, bound1)
    b1 = jax.random.uniform(k2, (), jnp.float32, -bound1, bound1)
    bound2 = 1.0 / math.sqrt(1 * 9)
    w2_oihw = jax.random.uniform(k3, (1, 1, 3, 3), jnp.float32, -bound2, bound2)
    b2 = jax.random.uniform(k4, (), jnp.float32, -bound2, bound2)

    out = ranknet_pallas(x, w1_oihw, b1, w2_oihw, b2)
    out = jax.block_until_ready(out)

    ref = ranknet_reference(x, w1_oihw, b1, w2_oihw, b2)
    assert out.shape == (N,)
    assert jnp.allclose(out, ref, atol=2e-3, rtol=2e-3), (out, ref)

    print("KERNEL_OK")
</pallas_src>

<mosaic_0001>
module attributes {stable_mosaic.version = 11 : i64} {
  func.func @kernel(%arg0: i32, %arg1: memref<16x256x64xf32, #tpu.memory_space<vmem>>, %arg2: memref<16x256xf32, #tpu.memory_space<vmem>>, %arg3: memref<9xf32, #tpu.memory_space<smem>>, %arg4: memref<2xf32, #tpu.memory_space<smem>>, %arg5: memref<16x1x1xf32, #tpu.memory_space<vmem>>, %arg6: memref<16x16x96xf32, #tpu.memory_space<vmem>>, %arg7: memref<16x1x96xf32, #tpu.memory_space<vmem>>) attributes {dimension_semantics = [#tpu.dimension_semantics<parallel>], iteration_bounds = array<i64: 2>, scalar_prefetch = 0 : i64, scratch_operands = 2 : i64, tpu.core_type = #tpu.core_type<tc>, window_params = [{transform_indices = @transform_0, window_bounds = array<i64: 16, 256, 64>}, {pipeline_mode = #tpu.pipeline_mode<synchronous>, transform_indices = @transform_1, window_bounds = array<i64: 16, 256>}, {transform_indices = @transform_2, window_bounds = array<i64: 9>}, {transform_indices = @transform_3, window_bounds = array<i64: 2>}, {transform_indices = @transform_4, window_bounds = array<i64: 16, 1, 1>}]} {
    %cst = arith.constant 0.000000e+00 : f32
    %0 = vector.broadcast %cst : f32 to vector<16x16x96xf32>
    %c0 = arith.constant 0 : index
    %c0_0 = arith.constant 0 : index
    %c0_1 = arith.constant 0 : index
    %1 = vector.load %arg6[%c0, %c0_0, %c0_1] : memref<16x16x96xf32, #tpu.memory_space<vmem>>, vector<16x16x96xf32>
    tpu.vector_store %arg6[%c0, %c0_0, %c0_1], %0 {strides = array<i32>} : memref<16x16x96xf32, #tpu.memory_space<vmem>>, vector<16x16x96xf32>,
    %cst_2 = arith.constant 0.000000e+00 : f32
    %2 = vector.broadcast %cst_2 : f32 to vector<16x1x96xf32>
    %c0_3 = arith.constant 0 : index
    %c0_4 = arith.constant 0 : index
    %c0_5 = arith.constant 0 : index
    %3 = vector.load %arg7[%c0_3, %c0_4, %c0_5] : memref<16x1x96xf32, #tpu.memory_space<vmem>>, vector<16x1x96xf32>
    tpu.vector_store %arg7[%c0_3, %c0_4, %c0_5], %2 {strides = array<i32>} : memref<16x1x96xf32, #tpu.memory_space<vmem>>, vector<16x1x96xf32>,
    %c0_6 = arith.constant 0 : index
    %c0_7 = arith.constant 0 : index
    %4 = vector.load %arg2[%c0_6, %c0_7] : memref<16x256xf32, #tpu.memory_space<vmem>>, vector<16x256xf32>
    %c0_8 = arith.constant 0 : index
    %c0_9 = arith.constant 0 : index
    %c0_10 = arith.constant 0 : index
    %5 = vector.load %arg1[%c0_8, %c0_9, %c0_10] : memref<16x256x64xf32, #tpu.memory_space<vmem>>, vector<1x256x64xf32>
    %6 = vector.shape_cast %5 : vector<1x256x64xf32> to vector<256x64xf32>
    %cst_11 = arith.constant dense<0.000000e+00> : vector<16x64xf32>
    %7 = tpu.matmul %4, %6, %cst_11 {dimension_numbers = #tpu.dot_dimension_numbers<[1], [0], [0], [1], [0, 0, 1, 1], [], []>} : vector<16x256xf32>, vector<256x64xf32>, vector<16x64xf32> -> vector<16x64xf32>
    %c0_12 = arith.constant 0 : index
    %c0_13 = arith.constant 0 : index
    %c16 = arith.constant 16 : index
    %8 = vector.load %arg6[%c0_12, %c0_13, %c16] : memref<16x16x96xf32, #tpu.memory_space<vmem>>, vector<1x16x64xf32>
    %9 = vector.shape_cast %8 : vector<1x16x64xf32> to vector<16x64xf32>
    %10 = vector.shape_cast %7 : vector<16x64xf32> to vector<1x16x64xf32>
    tpu.vector_store %arg6[%c0_12, %c0_13, %c16], %10 {strides = array<i32>} : memref<16x16x96xf32, #tpu.memory_space<vmem>>, vector<1x16x64xf32>,
    %c0_14 = arith.constant 0 : index
    %c0_15 = arith.constant 0 : index
    %11 = vector.load %arg2[%c0_14, %c0_15] : memref<16x256xf32, #tpu.memory_space<vmem>>, vector<16x256xf32>
    %c1 = arith.constant 1 : index
    %c0_16 = arith.constant 0 : index
    %c0_17 = arith.constant 0 : index
    %12 = vector.load %arg1[%c1, %c0_16, %c0_17] : memref<16x256x64xf32, #tpu.memory_space<vmem>>, vector<1x256x64xf32>
    %13 = vector.shape_cast %12 : vector<1x256x64xf32> to vector<256x64xf32>
    %cst_18 = arith.constant dense<0.000000e+00> : vector<16x64xf32>
    %14 = tpu.matmul %11, %13, %cst_18 {dimension_numbers = #tpu.dot_dimension_numbers<[1], [0], [0], [1], [0, 0, 1, 1], [], []>} : vector<16x256xf32>, vector<256x64xf32>, vector<16x64xf32> -> vector<16x64xf32>
    %c1_19 = arith.constant 1 : index
    %c0_20 = arith.constant 0 : index
    %c16_21 = arith.constant 16 : index
    %15 = vector.load %arg6[%c1_19, %c0_20, %c16_21] : memref<16x16x96xf32, #tpu.memory_space<vmem>>, vector<1x16x64xf32>
    %16 = vector.shape_cast %15 : vector<1x16x64xf32> to vector<16x64xf32>
    %17 = vector.shape_cast %14 : vector<16x64xf32> to vector<1x16x64xf32>
    tpu.vector_store %arg6[%c1_19, %c0_20, %c16_21], %17 {strides = array<i32>} : memref<16x16x96xf32, #tpu.memory_space<vmem>>, vector<1x16x64xf32>,
    %c0_22 = arith.constant 0 : index
    %c0_23 = arith.constant 0 : index
    %18 = vector.load %arg2[%c0_22, %c0_23] : memref<16x256xf32, #tpu.memory_space<vmem>>, vector<16x256xf32>
    %c2 = arith.constant 2 : index
    %c0_24 = arith.constant 0 : index
    %c0_25 = arith.constant 0 : index
    %19 = vector.load %arg1[%c2, %c0_24, %c0_25] : memref<16x256x64xf32, #tpu.memory_space<vmem>>, vector<1x256x64xf32>
    %20 = vector.shape_cast %19 : vector<1x256x64xf32> to vector<256x64xf32>
    %cst_26 = arith.constant dense<0.000000e+00> : vector<16x64xf32>
    %21 = tpu.matmul %18, %20, %cst_26 {dimension_numbers = #tpu.dot_dimension_numbers<[1], [0], [0], [1], [0, 0, 1, 1], [], []>} : vector<16x256xf32>, vector<256x64xf32>, vector<16x64xf32> -> vector<16x64xf32>
    %c2_27 = arith.constant 2 : index
    %c0_28 = arith.constant 0 : index
    %c16_29 = arith.constant 16 : index
    %22 = vector.load %arg6[%c2_27, %c0_28, %c16_29] : memref<16x16x96xf32, #tpu.memory_space<vmem>>, vector<1x16x64xf32>
    %23 = vector.shape_cast %22 : vector<1x16x64xf32> to vector<16x64xf32>
    %24 = vector.shape_cast %21 : vector<16x64xf32> to vector<1x16x64xf32>
    tpu.vector_store %arg6[%c2_27, %c0_28, %c16_29], %24 {strides = array<i32>} : memref<16x16x96xf32, #tpu.memory_space<vmem>>, vector<1x16x64xf32>,
    %c0_30 = arith.constant 0 : index
    %c0_31 = arith.constant 0 : index
    %25 = vector.load %arg2[%c0_30, %c0_31] : memref<16x256xf32, #tpu.memory_space<vmem>>, vector<16x256xf32>
    %c3 = arith.constant 3 : index
    %c0_32 = arith.constant 0 : index
    %c0_33 = arith.constant 0 : index
    %26 = vector.load %arg1[%c3, %c0_32, %c0_33] : memref<16x256x64xf32, #tpu.memory_space<vmem>>, vector<1x256x64xf32>
    %27 = vector.shape_cast %26 : vector<1x256x64xf32> to vector<256x64xf32>
    %cst_34 = arith.constant dense<0.000000e+00> : vector<16x64xf32>
    %28 = tpu.matmul %25, %27, %cst_34 {dimension_numbers = #tpu.dot_dimension_numbers<[1], [0], [0], [1], [0, 0, 1, 1], [], []>} : vector<16x256xf32>, vector<256x64xf32>, vector<16x64xf32> -> vector<16x64xf32>
    %c3_35 = arith.constant 3 : index
    %c0_36 = arith.constant 0 : index
    %c16_37 = arith.constant 16 : index
    %29 = vector.load %arg6[%c3_35, %c0_36, %c16_37] : memref<16x16x96xf32, #tpu.memory_space<vmem>>, vector<1x16x64xf32>
    %30 = vector.shape_cast %29 : vector<1x16x64xf32> to vector<16x64xf32>
    %31 = vector.shape_cast %28 : vector<16x64xf32> to vector<1x16x64xf32>
    tpu.vector_store %arg6[%c3_35, %c0_36, %c16_37], %31 {strides = array<i32>} : memref<16x16x96xf32, #tpu.memory_space<vmem>>, vector<1x16x64xf32>,
    %c0_38 = arith.constant 0 : index
    %c0_39 = arith.constant 0 : index
    %32 = vector.load %arg2[%c0_38, %c0_39] : memref<16x256xf32, #tpu.memory_space<vmem>>, vector<16x256xf32>
    %c4 = arith.constant 4 : index
    %c0_40 = arith.constant 0 : index
    %c0_41 = arith.constant 0 : index
    %33 = vector.load %arg1[%c4, %c0_40, %c0_41] : memref<16x256x64xf32, #tpu.memory_space<vmem>>, vector<1x256x64xf32>
    %34 = vector.shape_cast %33 : vector<1x256x64xf32> to vector<256x64xf32>
    %cst_42 = arith.constant dense<0.000000e+00> : vector<16x64xf32>
    %35 = tpu.matmul %32, %34, %cst_42 {dimension_numbers = #tpu.dot_dimension_numbers<[1], [0], [0], [1], [0, 0, 1, 1], [], []>} : vector<16x256xf32>, vector<256x64xf32>, vector<16x64xf32> -> vector<16x64xf32>
    %c4_43 = arith.constant 4 : index
    %c0_44 = arith.constant 0 : index
    %c16_45 = arith.constant 16 : index
    %36 = vector.load %arg6[%c4_43, %c0_44, %c16_45] : memref<16x16x96xf32, #tpu.memory_space<vmem>>, vector<1x16x64xf32>
    %37 = vector.shape_cast %36 : vector<1x16x64xf32> to vector<16x64xf32>
    %38 = vector.shape_cast %35 : vector<16x64xf32> to vector<1x16x64xf32>
    tpu.vector_store %arg6[%c4_43, %c0_44, %c16_45], %38 {strides = array<i32>} : memref<16x16x96xf32, #tpu.memory_space<vmem>>, vector<1x16x64xf32>,
    %c0_46 = arith.constant 0 : index
    %c0_47 = arith.constant 0 : index
    %39 = vector.load %arg2[%c0_46, %c0_47] : memref<16x256xf32, #tpu.memory_space<vmem>>, vector<16x256xf32>
    %c5 = arith.constant 5 : index
    %c0_48 = arith.constant 0 : index
    %c0_49 = arith.constant 0 : index
    %40 = vector.load %arg1[%c5, %c0_48, %c0_49] : memref<16x256x64xf32, #tpu.memory_space<vmem>>, vector<1x256x64xf32>
    %41 = vector.shape_cast %40 : vector<1x256x64xf32> to vector<256x64xf32>
    %cst_50 = arith.constant dense<0.000000e+00> : vector<16x64xf32>
    %42 = tpu.matmul %39, %41, %cst_50 {dimension_numbers = #tpu.dot_dimension_numbers<[1], [0], [0], [1], [0, 0, 1, 1], [], []>} : vector<16x256xf32>, vector<256x64xf32>, vector<16x64xf32> -> vector<16x64xf32>
    %c5_51 = arith.constant 5 : index
    %c0_52 = arith.constant 0 : index
    %c16_53 = arith.constant 16 : index
    %43 = vector.load %arg6[%c5_51, %c0_52, %c16_53] : memref<16x16x96xf32, #tpu.memory_space<vmem>>, vector<1x16x64xf32>
    %44 = vector.shape_cast %43 : vector<1x16x64xf32> to vector<16x64xf32>
    %45 = vector.shape_cast %42 : vector<16x64xf32> to vector<1x16x64xf32>
    tpu.vector_store %arg6[%c5_51, %c0_52, %c16_53], %45 {strides = array<i32>} : memref<16x16x96xf32, #tpu.memory_space<vmem>>, vector<1x16x64xf32>,
    %c0_54 = arith.constant 0 : index
    %c0_55 = arith.constant 0 : index
    %46 = vector.load %arg2[%c0_54, %c0_55] : memref<16x256xf32, #tpu.memory_space<vmem>>, vector<16x256xf32>
    %c6 = arith.constant 6 : index
    %c0_56 = arith.constant 0 : index
    %c0_57 = arith.constant 0 : index
    %47 = vector.load %arg1[%c6, %c0_56, %c0_57] : memref<16x256x64xf32, #tpu.memory_space<vmem>>, vector<1x256x64xf32>
    %48 = vector.shape_cast %47 : vector<1x256x64xf32> to vector<256x64xf32>
    %cst_58 = arith.constant dense<0.000000e+00> : vector<16x64xf32>
    %49 = tpu.matmul %46, %48, %cst_58 {dimension_numbers = #tpu.dot_dimension_numbers<[1], [0], [0], [1], [0, 0, 1, 1], [], []>} : vector<16x256xf32>, vector<256x64xf32>, vector<16x64xf32> -> vector<16x64xf32>
    %c6_59 = arith.constant 6 : index
    %c0_60 = arith.constant 0 : index
    %c16_61 = arith.constant 16 : index
    %50 = vector.load %arg6[%c6_59, %c0_60, %c16_61] : memref<16x16x96xf32, #tpu.memory_space<vmem>>, vector<1x16x64xf32>
    %51 = vector.shape_cast %50 : vector<1x16x64xf32> to vector<16x64xf32>
    %52 = vector.shape_cast %49 : vector<16x64xf32> to vector<1x16x64xf32>
    tpu.vector_store %arg6[%c6_59, %c0_60, %c16_61], %52 {strides = array<i32>} : memref<16x16x96xf32, #tpu.memory_space<vmem>>, vector<1x16x64xf32>,
    %c0_62 = arith.constant 0 : index
    %c0_63 = arith.constant 0 : index
    %53 = vector.load %arg2[%c0_62, %c0_63] : memref<16x256xf32, #tpu.memory_space<vmem>>, vector<16x256xf32>
    %c7 = arith.constant 7 : index
    %c0_64 = arith.constant 0 : index
    %c0_65 = arith.constant 0 : index
    %54 = vector.load %arg1[%c7, %c0_64, %c0_65] : memref<16x256x64xf32, #tpu.memory_space<vmem>>, vector<1x256x64xf32>
    %55 = vector.shape_cast %54 : vector<1x256x64xf32> to vector<256x64xf32>
    %cst_66 = arith.constant dense<0.000000e+00> : vector<16x64xf32>
    %56 = tpu.matmul %53, %55, %cst_66 {dimension_numbers = #tpu.dot_dimension_numbers<[1], [0], [0], [1], [0, 0, 1, 1], [], []>} : vector<16x256xf32>, vector<256x64xf32>, vector<16x64xf32> -> vector<16x64xf32>
    %c7_67 = arith.constant 7 : index
    %c0_68 = arith.constant 0 : index
    %c16_69 = arith.constant 16 : index
    %57 = vector.load %arg6[%c7_67, %c0_68, %c16_69] : memref<16x16x96xf32, #tpu.memory_space<vmem>>, vector<1x16x64xf32>
    %58 = vector.shape_cast %57 : vector<1x16x64xf32> to vector<16x64xf32>
    %59 = vector.shape_cast %56 : vector<16x64xf32> to vector<1x16x64xf32>
    tpu.vector_store %arg6[%c7_67, %c0_68, %c16_69], %59 {strides = array<i32>} : memref<16x16x96xf32, #tpu.memory_space<vmem>>, vector<1x16x64xf32>,
    %c0_70 = arith.constant 0 : index
    %c0_71 = arith.constant 0 : index
    %60 = vector.load %arg2[%c0_70, %c0_71] : memref<16x256xf32, #tpu.memory_space<vmem>>, vector<16x256xf32>
    %c8 = arith.constant 8 : index
    %c0_72 = arith.constant 0 : index
    %c0_73 = arith.constant 0 : index
    %61 = vector.load %arg1[%c8, %c0_72, %c0_73] : memref<16x256x64xf32, #tpu.memory_space<vmem>>, vector<1x256x64xf32>
    %62 = vector.shape_cast %61 : vector<1x256x64xf32> to vector<256x64xf32>
    %cst_74 = arith.constant dense<0.000000e+00> : vector<16x64xf32>
    %63 = tpu.matmul %60, %62, %cst_74 {dimension_numbers = #tpu.dot_dimension_numbers<[1], [0], [0], [1], [0, 0, 1, 1], [], []>} : vector<16x256xf32>, vector<256x64xf32>, vector<16x64xf32> -> vector<16x64xf32>
    %c8_75 = arith.constant 8 : index
    %c0_76 = arith.constant 0 : index
    %c16_77 = arith.constant 16 : index
    %64 = vector.load %arg6[%c8_75, %c0_76, %c16_77] : memref<16x16x96xf32, #tpu.memory_space<vmem>>, vector<1x16x64xf32>
    %65 = vector.shape_cast %64 : vector<1x16x64xf32> to vector<16x64xf32>
    %66 = vector.shape_cast %63 : vector<16x64xf32> to vector<1x16x64xf32>
    tpu.vector_store %arg6[%c8_75, %c0_76, %c16_77], %66 {strides = array<i32>} : memref<16x16x96xf32, #tpu.memory_space<vmem>>, vector<1x16x64xf32>,
    %c0_78 = arith.constant 0 : index
    %c0_79 = arith.constant 0 : index
    %67 = vector.load %arg2[%c0_78, %c0_79] : memref<16x256xf32, #tpu.memory_space<vmem>>, vector<16x256xf32>
    %c9 = arith.constant 9 : index
    %c0_80 = arith.constant 0 : index
    %c0_81 = arith.constant 0 : index
    %68 = vector.load %arg1[%c9, %c0_80, %c0_81] : memref<16x256x64xf32, #tpu.memory_space<vmem>>, vector<1x256x64xf32>
    %69 = vector.shape_cast %68 : vector<1x256x64xf32> to vector<256x64xf32>
    %cst_82 = arith.constant dense<0.000000e+00> : vector<16x64xf32>
    %70 = tpu.matmul %67, %69, %cst_82 {dimension_numbers = #tpu.dot_dimension_numbers<[1], [0], [0], [1], [0, 0, 1, 1], [], []>} : vector<16x256xf32>, vector<256x64xf32>, vector<16x64xf32> -> vector<16x64xf32>
    %c9_83 = arith.constant 9 : index
    %c0_84 = arith.constant 0 : index
    %c16_85 = arith.constant 16 : index
    %71 = vector.load %arg6[%c9_83, %c0_84, %c16_85] : memref<16x16x96xf32, #tpu.memory_space<vmem>>, vector<1x16x64xf32>
    %72 = vector.shape_cast %71 : vector<1x16x64xf32> to vector<16x64xf32>
    %73 = vector.shape_cast %70 : vector<16x64xf32> to vector<1x16x64xf32>
    tpu.vector_store %arg6[%c9_83, %c0_84, %c16_85], %73 {strides = array<i32>} : memref<16x16x96xf32, #tpu.memory_space<vmem>>, vector<1x16x64xf32>,
    %c0_86 = arith.constant 0 : index
    %c0_87 = arith.constant 0 : index
    %74 = vector.load %arg2[%c0_86, %c0_87] : memref<16x256xf32, #tpu.memory_space<vmem>>, vector<16x256xf32>
    %c10 = arith.constant 10 : index
    %c0_88 = arith.constant 0 : index
    %c0_89 = arith.constant 0 : index
    %75 = vector.load %arg1[%c10, %c0_88, %c0_89] : memref<16x256x64xf32, #tpu.memory_space<vmem>>, vector<1x256x64xf32>
    %76 = vector.shape_cast %75 : vector<1x256x64xf32> to vector<256x64xf32>
    %cst_90 = arith.constant dense<0.000000e+00> : vector<16x64xf32>
    %77 = tpu.matmul %74, %76, %cst_90 {dimension_numbers = #tpu.dot_dimension_numbers<[1], [0], [0], [1], [0, 0, 1, 1], [], []>} : vector<16x256xf32>, vector<256x64xf32>, vector<16x64xf32> -> vector<16x64xf32>
    %c10_91 = arith.constant 10 : index
    %c0_92 = arith.constant 0 : index
    %c16_93 = arith.constant 16 : index
    %78 = vector.load %arg6[%c10_91, %c0_92, %c16_93] : memref<16x16x96xf32, #tpu.memory_space<vmem>>, vector<1x16x64xf32>
    %79 = vector.shape_cast %78 : vector<1x16x64xf32> to vector<16x64xf32>
    %80 = vector.shape_cast %77 : vector<16x64xf32> to vector<1x16x64xf32>
    tpu.vector_store %arg6[%c10_91, %c0_92, %c16_93], %80 {strides = array<i32>} : memref<16x16x96xf32, #tpu.memory_space<vmem>>, vector<1x16x64xf32>,
    %c0_94 = arith.constant 0 : index
    %c0_95 = arith.constant 0 : index
    %81 = vector.load %arg2[%c0_94, %c0_95] : memref<16x256xf32, #tpu.memory_space<vmem>>, vector<16x256xf32>
    %c11 = arith.constant 11 : index
    %c0_96 = arith.constant 0 : index
    %c0_97 = arith.constant 0 : index
    %82 = vector.load %arg1[%c11, %c0_96, %c0_97] : memref<16x256x64xf32, #tpu.memory_space<vmem>>, vector<1x256x64xf32>
    %83 = vector.shape_cast %82 : vector<1x256x64xf32> to vector<256x64xf32>
    %cst_98 = arith.constant dense<0.000000e+00> : vector<16x64xf32>
    %84 = tpu.matmul %81, %83, %cst_98 {dimension_numbers = #tpu.dot_dimension_numbers<[1], [0], [0], [1], [0, 0, 1, 1], [], []>} : vector<16x256xf32>, vector<256x64xf32>, vector<16x64xf32> -> vector<16x64xf32>
    %c11_99 = arith.constant 11 : index
    %c0_100 = arith.constant 0 : index
    %c16_101 = arith.constant 16 : index
    %85 = vector.load %arg6[%c11_99, %c0_100, %c16_101] : memref<16x16x96xf32, #tpu.memory_space<vmem>>, vector<1x16x64xf32>
    %86 = vector.shape_cast %85 : vector<1x16x64xf32> to vector<16x64xf32>
    %87 = vector.shape_cast %84 : vector<16x64xf32> to vector<1x16x64xf32>
    tpu.vector_store %arg6[%c11_99, %c0_100, %c16_101], %87 {strides = array<i32>} : memref<16x16x96xf32, #tpu.memory_space<vmem>>, vector<1x16x64xf32>,
    %c0_102 = arith.constant 0 : index
    %c0_103 = arith.constant 0 : index
    %88 = vector.load %arg2[%c0_102, %c0_103] : memref<16x256xf32, #tpu.memory_space<vmem>>, vector<16x256xf32>
    %c12 = arith.constant 12 : index
    %c0_104 = arith.constant 0 : index
    %c0_105 = arith.constant 0 : index
    %89 = vector.load %arg1[%c12, %c0_104, %c0_105] : memref<16x256x64xf32, #tpu.memory_space<vmem>>, vector<1x256x64xf32>
    %90 = vector.shape_cast %89 : vector<1x256x64xf32> to vector<256x64xf32>
    %cst_106 = arith.constant dense<0.000000e+00> : vector<16x64xf32>
    %91 = tpu.matmul %88, %90, %cst_106 {dimension_numbers = #tpu.dot_dimension_numbers<[1], [0], [0], [1], [0, 0, 1, 1], [], []>} : vector<16x256xf32>, vector<256x64xf32>, vector<16x64xf32> -> vector<16x64xf32>
    %c12_107 = arith.constant 12 : index
    %c0_108 = arith.constant 0 : index
    %c16_109 = arith.constant 16 : index
    %92 = vector.load %arg6[%c12_107, %c0_108, %c16_109] : memref<16x16x96xf32, #tpu.memory_space<vmem>>, vector<1x16x64xf32>
    %93 = vector.shape_cast %92 : vector<1x16x64xf32> to vector<16x64xf32>
    %94 = vector.shape_cast %91 : vector<16x64xf32> to vector<1x16x64xf32>
    tpu.vector_store %arg6[%c12_107, %c0_108, %c16_109], %94 {strides = array<i32>} : memref<16x16x96xf32, #tpu.memory_space<vmem>>, vector<1x16x64xf32>,
    %c0_110 = arith.constant 0 : index
    %c0_111 = arith.constant 0 : index
    %95 = vector.load %arg2[%c0_110, %c0_111] : memref<16x256xf32, #tpu.memory_space<vmem>>, vector<16x256xf32>
    %c13 = arith.constant 13 : index
    %c0_112 = arith.constant 0 : index
    %c0_113 = arith.constant 0 : index
    %96 = vector.load %arg1[%c13, %c0_112, %c0_113] : memref<16x256x64xf32, #tpu.memory_space<vmem>>, vector<1x256x64xf32>
    %97 = vector.shape_cast %96 : vector<1x256x64xf32> to vector<256x64xf32>
    %cst_114 = arith.constant dense<0.000000e+00> : vector<16x64xf32>
    %98 = tpu.matmul %95, %97, %cst_114 {dimension_numbers = #tpu.dot_dimension_numbers<[1], [0], [0], [1], [0, 0, 1, 1], [], []>} : vector<16x256xf32>, vector<256x64xf32>, vector<16x64xf32> -> vector<16x64xf32>
    %c13_115 = arith.constant 13 : index
    %c0_116 = arith.constant 0 : index
    %c16_117 = arith.constant 16 : index
    %99 = vector.load %arg6[%c13_115, %c0_116, %c16_117] : memref<16x16x96xf32, #tpu.memory_space<vmem>>, vector<1x16x64xf32>
    %100 = vector.shape_cast %99 : vector<1x16x64xf32> to vector<16x64xf32>
    %101 = vector.shape_cast %98 : vector<16x64xf32> to vector<1x16x64xf32>
    tpu.vector_store %arg6[%c13_115, %c0_116, %c16_117], %101 {strides = array<i32>} : memref<16x16x96xf32, #tpu.memory_space<vmem>>, vector<1x16x64xf32>,
    %c0_118 = arith.constant 0 : index
    %c0_119 = arith.constant 0 : index
    %102 = vector.load %arg2[%c0_118, %c0_119] : memref<16x256xf32, #tpu.memory_space<vmem>>, vector<16x256xf32>
    %c14 = arith.constant 14 : index
    %c0_120 = arith.constant 0 : index
    %c0_121 = arith.constant 0 : index
    %103 = vector.load %arg1[%c14, %c0_120, %c0_121] : memref<16x256x64xf32, #tpu.memory_space<vmem>>, vector<1x256x64xf32>
    %104 = vector.shape_cast %103 : vector<1x256x64xf32> to vector<256x64xf32>
    %cst_122 = arith.constant dense<0.000000e+00> : vector<16x64xf32>
    %105 = tpu.matmul %102, %104, %cst_122 {dimension_numbers = #tpu.dot_dimension_numbers<[1], [0], [0], [1], [0, 0, 1, 1], [], []>} : vector<16x256xf32>, vector<256x64xf32>, vector<16x64xf32> -> vector<16x64xf32>
    %c14_123 = arith.constant 14 : index
    %c0_124 = arith.constant 0 : index
    %c16_125 = arith.constant 16 : index
    %106 = vector.load %arg6[%c14_123, %c0_124, %c16_125] : memref<16x16x96xf32, #tpu.memory_space<vmem>>, vector<1x16x64xf32>
    %107 = vector.shape_cast %106 : vector<1x16x64xf32> to vector<16x64xf32>
    %108 = vector.shape_cast %105 : vector<16x64xf32> to vector<1x16x64xf32>
    tpu.vector_store %arg6[%c14_123, %c0_124, %c16_125], %108 {strides = array<i32>} : memref<16x16x96xf32, #tpu.memory_space<vmem>>, vector<1x16x64xf32>,
    %c0_126 = arith.constant 0 : index
    %c0_127 = arith.constant 0 : index
    %109 = vector.load %arg2[%c0_126, %c0_127] : memref<16x256xf32, #tpu.memory_space<vmem>>, vector<16x256xf32>
    %c15 = arith.constant 15 : index
    %c0_128 = arith.constant 0 : index
    %c0_129 = arith.constant 0 : index
    %110 = vector.load %arg1[%c15, %c0_128, %c0_129] : memref<16x256x64xf32, #tpu.memory_space<vmem>>, vector<1x256x64xf32>
    %111 = vector.shape_cast %110 : vector<1x256x64xf32> to vector<256x64xf32>
    %cst_130 = arith.constant dense<0.000000e+00> : vector<16x64xf32>
    %112 = tpu.matmul %109, %111, %cst_130 {dimension_numbers = #tpu.dot_dimension_numbers<[1], [0], [0], [1], [0, 0, 1, 1], [], []>} : vector<16x256xf32>, vector<256x64xf32>, vector<16x64xf32> -> vector<16x64xf32>
    %c15_131 = arith.constant 15 : index
    %c0_132 = arith.constant 0 : index
    %c16_133 = arith.constant 16 : index
    %113 = vector.load %arg6[%c15_131, %c0_132, %c16_133] : memref<16x16x96xf32, #tpu.memory_space<vmem>>, vector<1x16x64xf32>
    %114 = vector.shape_cast %113 : vector<1x16x64xf32> to vector<16x64xf32>
    %115 = vector.shape_cast %112 : vector<16x64xf32> to vector<1x16x64xf32>
    tpu.vector_store %arg6[%c15_131, %c0_132, %c16_133], %115 {strides = array<i32>} : memref<16x16x96xf32, #tpu.memory_space<vmem>>, vector<1x16x64xf32>,
    %116 = tpu.iota {dimensions = array<i32: 2>} : vector<1x1x64xi32>
    %c8_i32 = arith.constant 8 : i32
    %c0_i32 = arith.constant 0 : i32
    %117 = arith.cmpi eq, %c8_i32, %c0_i32 : i32
    %c1_i32 = arith.constant 1 : i32
    %118 = arith.select %117, %c1_i32, %c8_i32 : i32
    %119 = vector.broadcast %118 : i32 to vector<1x1x64xi32>
    %120 = arith.remsi %116, %119 : vector<1x1x64xi32>
    %c0_i32_134 = arith.constant 0 : i32
    %121 = vector.broadcast %c0_i32_134 : i32 to vector<1x1x64xi32>
    %122 = arith.cmpi ne, %120, %121 : vector<1x1x64xi32>
    %c0_i32_135 = arith.constant 0 : i32
    %123 = vector.broadcast %c0_i32_135 : i32 to vector<1x1x64xi32>
    %124 = arith.cmpi slt, %120, %123 : vector<1x1x64xi32>
    %c0_i32_136 = arith.constant 0 : i32
    %125 = arith.cmpi slt, %118, %c0_i32_136 : i32
    %126 = vector.broadcast %125 : i1 to vector<1x1x64xi1>
    %127 = vector.broadcast %126 : vector<1x1x64xi1> to vector<1x1x64xi1>
    %128 = arith.xori %124, %127 : vector<1x1x64xi1>
    %129 = arith.andi %128, %122 : vector<1x1x64xi1>
    %130 = vector.broadcast %118 : i32 to vector<1x1x64xi32>
    %131 = arith.addi %120, %130 : vector<1x1x64xi32>
    %132 = arith.select %129, %131, %120 : vector<1x1x64xi1>, vector<1x1x64xi32>
    %c1_i32_137 = arith.constant 1 : i32
    %133 = vector.broadcast %c1_i32_137 : i32 to vector<1x1x64xi32>
    %134 = arith.cmpi sge, %132, %133 : vector<1x1x64xi32>
    %c6_i32 = arith.constant 6 : i32
    %135 = vector.broadcast %c6_i32 : i32 to vector<1x1x64xi32>
    %136 = arith.cmpi sle, %132, %135 : vector<1x1x64xi32>
    %cst_138 = arith.constant 0.000000e+00 : f32
    %137 = vector.broadcast %cst_138 : f32 to vector<16x1x64xf32>
    %c0_139 = arith.constant 0 : index
    %c0_140 = arith.constant 0 : index
    %c7_141 = arith.constant 7 : index
    %138 = vector.load %arg6[%c0_139, %c0_140, %c7_141] : memref<16x16x96xf32, #tpu.memory_space<vmem>>, vector<16x1x64xf32>
    %cst_142 = arith.constant 0.000000e+00 : f32
    %139 = vector.shape_cast %134 : vector<1x1x64xi1> to vector<1x1x64xi1>
    %140 = vector.broadcast %139 : vector<1x1x64xi1> to vector<16x1x64xi1>
    %141 = vector.broadcast %cst_142 : f32 to vector<16x1x64xf32>
    %142 = arith.select %140, %138, %141 : vector<16x1x64xi1>, vector<16x1x64xf32>
    %143 = arith.addf %137, %142 : vector<16x1x64xf32>
    %c0_143 = arith.constant 0 : index
    %c1_144 = arith.constant 1 : index
    %c8_145 = arith.constant 8 : index
    %144 = vector.load %arg6[%c0_143, %c1_144, %c8_145] : memref<16x16x96xf32, #tpu.memory_space<vmem>>, vector<16x1x64xf32>
    %145 = arith.addf %143, %144 : vector<16x1x64xf32>
    %c0_146 = arith.constant 0 : index
    %c2_147 = arith.constant 2 : index
    %c9_148 = arith.constant 9 : index
    %146 = vector.load %arg6[%c0_146, %c2_147, %c9_148] : memref<16x16x96xf32, #tpu.memory_space<vmem>>, vector<16x1x64xf32>
    %cst_149 = arith.constant 0.000000e+00 : f32
    %147 = vector.shape_cast %136 : vector<1x1x64xi1> to vector<1x1x64xi1>
    %148 = vector.broadcast %147 : vector<1x1x64xi1> to vector<16x1x64xi1>
    %149 = vector.broadcast %cst_149 : f32 to vector<16x1x64xf32>
    %150 = arith.select %148, %146, %149 : vector<16x1x64xi1>, vector<16x1x64xf32>
    %151 = arith.addf %145, %150 : vector<16x1x64xf32>
    %c0_150 = arith.constant 0 : index
    %c3_151 = arith.constant 3 : index
    %c15_152 = arith.constant 15 : index
    %152 = vector.load %arg6[%c0_150, %c3_151, %c15_152] : memref<16x16x96xf32, #tpu.memory_space<vmem>>, vector<16x1x64xf32>
    %cst_153 = arith.constant 0.000000e+00 : f32
    %153 = vector.shape_cast %134 : vector<1x1x64xi1> to vector<1x1x64xi1>
    %154 = vector.broadcast %153 : vector<1x1x64xi1> to vector<16x1x64xi1>
    %155 = vector.broadcast %cst_153 : f32 to vector<16x1x64xf32>
    %156 = arith.select %154, %152, %155 : vector<16x1x64xi1>, vector<16x1x64xf32>
    %157 = arith.addf %151, %156 : vector<16x1x64xf32>
    %c0_154 = arith.constant 0 : index
    %c4_155 = arith.constant 4 : index
    %c16_156 = arith.constant 16 : index
    %158 = vector.load %arg6[%c0_154, %c4_155, %c16_156] : memref<16x16x96xf32, #tpu.memory_space<vmem>>, vector<16x1x64xf32>
    %159 = arith.addf %157, %158 : vector<16x1x64xf32>
    %c0_157 = arith.constant 0 : index
    %c5_158 = arith.constant 5 : index
    %c17 = arith.constant 17 : index
    %160 = vector.load %arg6[%c0_157, %c5_158, %c17] : memref<16x16x96xf32, #tpu.memory_space<vmem>>, vector<16x1x64xf32>
    %cst_159 = arith.constant 0.000000e+00 : f32
    %161 = vector.shape_cast %136 : vector<1x1x64xi1> to vector<1x1x64xi1>
    %162 = vector.broadcast %161 : vector<1x1x64xi1> to vector<16x1x64xi1>
    %163 = vector.broadcast %cst_159 : f32 to vector<16x1x64xf32>
    %164 = arith.select %162, %160, %163 : vector<16x1x64xi1>, vector<16x1x64xf32>
    %165 = arith.addf %159, %164 : vector<16x1x64xf32>
    %c0_160 = arith.constant 0 : index
    %c6_161 = arith.constant 6 : index
    %c23 = arith.constant 23 : index
    %166 = vector.load %arg6[%c0_160, %c6_161, %c23] : memref<16x16x96xf32, #tpu.memory_space<vmem>>, vector<16x1x64xf32>
    %cst_162 = arith.constant 0.000000e+00 : f32
    %167 = vector.shape_cast %134 : vector<1x1x64xi1> to vector<1x1x64xi1>
    %168 = vector.broadcast %167 : vector<1x1x64xi1> to vector<16x1x64xi1>
    %169 = vector.broadcast %cst_162 : f32 to vector<16x1x64xf32>
    %170 = arith.select %168, %166, %169 : vector<16x1x64xi1>, vector<16x1x64xf32>
    %171 = arith.addf %165, %170 : vector<16x1x64xf32>
    %c0_163 = arith.constant 0 : index
    %c7_164 = arith.constant 7 : index
    %c24 = arith.constant 24 : index
    %172 = vector.load %arg6[%c0_163, %c7_164, %c24] : memref<16x16x96xf32, #tpu.memory_space<vmem>>, vector<16x1x64xf32>
    %173 = arith.addf %171, %172 : vector<16x1x64xf32>
    %c0_165 = arith.constant 0 : index
    %c8_166 = arith.constant 8 : index
    %c25 = arith.constant 25 : index
    %174 = vector.load %arg6[%c0_165, %c8_166, %c25] : memref<16x16x96xf32, #tpu.memory_space<vmem>>, vector<16x1x64xf32>
    %cst_167 = arith.constant 0.000000e+00 : f32
    %175 = vector.shape_cast %136 : vector<1x1x64xi1> to vector<1x1x64xi1>
    %176 = vector.broadcast %175 : vector<1x1x64xi1> to vector<16x1x64xi1>
    %177 = vector.broadcast %cst_167 : f32 to vector<16x1x64xf32>
    %178 = arith.select %176, %174, %177 : vector<16x1x64xi1>, vector<16x1x64xf32>
    %179 = arith.addf %173, %178 : vector<16x1x64xf32>
    %c0_168 = arith.constant 0 : index
    %180 = memref.load %arg4[%c0_168] : memref<2xf32, #tpu.memory_space<smem>>
    %181 = vector.broadcast %180 : f32 to vector<16x1x64xf32>
    %182 = arith.addf %179, %181 : vector<16x1x64xf32>
    %cst_169 = arith.constant dense<0.000000e+00> : vector<16x1xf32>
    %183 = vector.multi_reduction <add>, %182, %cst_169 [2] : vector<16x1x64xf32> to vector<16x1xf32>
    %184 = vector.shape_cast %183 : vector<16x1xf32> to vector<16x1x1xf32>
    %cst_170 = arith.constant 6.400000e+01 : f32
    %185 = vector.broadcast %cst_170 : f32 to vector<16x1x1xf32>
    %186 = arith.divf %184, %185 : vector<16x1x1xf32>
    %187 = vector.broadcast %186 : vector<16x1x1xf32> to vector<16x1x64xf32>
    %188 = arith.subf %182, %187 : vector<16x1x64xf32>
    %189 = arith.mulf %188, %188 : vector<16x1x64xf32>
    %cst_171 = arith.constant dense<0.000000e+00> : vector<16x1xf32>
    %190 = vector.multi_reduction <add>, %189, %cst_171 [2] : vector<16x1x64xf32> to vector<16x1xf32>
    %191 = vector.shape_cast %190 : vector<16x1xf32> to vector<16x1x1xf32>
    %cst_172 = arith.constant 6.400000e+01 : f32
    %192 = vector.broadcast %cst_172 : f32 to vector<16x1x1xf32>
    %193 = arith.divf %191, %192 : vector<16x1x1xf32>
    %194 = vector.broadcast %186 : vector<16x1x1xf32> to vector<16x1x64xf32>
    %195 = arith.subf %182, %194 : vector<16x1x64xf32>
    %cst_173 = arith.constant 9.99999974E-6 : f32
    %196 = vector.broadcast %cst_173 : f32 to vector<16x1x1xf32>
    %197 = arith.addf %193, %196 : vector<16x1x1xf32>
    %198 = math.rsqrt %197 : vector<16x1x1xf32>
    %199 = vector.broadcast %198 : vector<16x1x1xf32> to vector<16x1x64xf32>
    %200 = arith.mulf %195, %199 : vector<16x1x64xf32>
    %cst_174 = arith.constant 0.000000e+00 : f32
    %201 = vector.broadcast %cst_174 : f32 to vector<16x1x64xf32>
    %202 = arith.maximumf %200, %201 : vector<16x1x64xf32>
    %c0_175 = arith.constant 0 : index
    %c0_176 = arith.constant 0 : index
    %c16_177 = arith.constant 16 : index
    %203 = vector.load %arg7[%c0_175, %c0_176, %c16_177] : memref<16x1x96xf32, #tpu.memory_space<vmem>>, vector<16x1x64xf32>
    tpu.vector_store %arg7[%c0_175, %c0_176, %c16_177], %202 {strides = array<i32>} : memref<16x1x96xf32, #tpu.memory_space<vmem>>, vector<16x1x64xf32>,
    %cst_178 = arith.constant 0.000000e+00 : f32
    %204 = vector.broadcast %cst_178 : f32 to vector<16x1x64xf32>
    %c0_179 = arith.constant 0 : index
    %c0_180 = arith.constant 0 : index
    %c7_181 = arith.constant 7 : index
    %205 = vector.load %arg7[%c0_179, %c0_180, %c7_181] : memref<16x1x96xf32, #tpu.memory_space<vmem>>, vector<16x1x64xf32>
    %c0_182 = arith.constant 0 : index
    %206 = memref.load %arg3[%c0_182] : memref<9xf32, #tpu.memory_space<smem>>
    %cst_183 = arith.constant 0.000000e+00 : f32
    %207 = vector.shape_cast %134 : vector<1x1x64xi1> to vector<1x1x64xi1>
    %208 = vector.broadcast %207 : vector<1x1x64xi1> to vector<16x1x64xi1>
    %209 = vector.broadcast %cst_183 : f32 to vector<16x1x64xf32>
    %210 = arith.select %208, %205, %209 : vector<16x1x64xi1>, vector<16x1x64xf32>
    %211 = vector.broadcast %206 : f32 to vector<16x1x64xf32>
    %212 = arith.mulf %211, %210 : vector<16x1x64xf32>
    %213 = arith.addf %204, %212 : vector<16x1x64xf32>
    %c0_184 = arith.constant 0 : index
    %c0_185 = arith.constant 0 : index
    %c8_186 = arith.constant 8 : index
    %214 = vector.load %arg7[%c0_184, %c0_185, %c8_186] : memref<16x1x96xf32, #tpu.memory_space<vmem>>, vector<16x1x64xf32>
    %c1_187 = arith.constant 1 : index
    %215 = memref.load %arg3[%c1_187] : memref<9xf32, #tpu.memory_space<smem>>
    %216 = vector.broadcast %215 : f32 to vector<16x1x64xf32>
    %217 = arith.mulf %216, %214 : vector<16x1x64xf32>
    %218 = arith.addf %213, %217 : vector<16x1x64xf32>
    %c0_188 = arith.constant 0 : index
    %c0_189 = arith.constant 0 : index
    %c9_190 = arith.constant 9 : index
    %219 = vector.load %arg7[%c0_188, %c0_189, %c9_190] : memref<16x1x96xf32, #tpu.memory_space<vmem>>, vector<16x1x64xf32>
    %c2_191 = arith.constant 2 : index
    %220 = memref.load %arg3[%c2_191] : memref<9xf32, #tpu.memory_space<smem>>
    %cst_192 = arith.constant 0.000000e+00 : f32
    %221 = vector.shape_cast %136 : vector<1x1x64xi1> to vector<1x1x64xi1>
    %222 = vector.broadcast %221 : vector<1x1x64xi1> to vector<16x1x64xi1>
    %223 = vector.broadcast %cst_192 : f32 to vector<16x1x64xf32>
    %224 = arith.select %222, %219, %223 : vector<16x1x64xi1>, vector<16x1x64xf32>
    %225 = vector.broadcast %220 : f32 to vector<16x1x64xf32>
    %226 = arith.mulf %225, %224 : vector<16x1x64xf32>
    %227 = arith.addf %218, %226 : vector<16x1x64xf32>
    %c0_193 = arith.constant 0 : index
    %c0_194 = arith.constant 0 : index
    %c15_195 = arith.constant 15 : index
    %228 = vector.load %arg7[%c0_193, %c0_194, %c15_195] : memref<16x1x96xf32, #tpu.memory_space<vmem>>, vector<16x1x64xf32>
    %c3_196 = arith.constant 3 : index
    %229 = memref.load %arg3[%c3_196] : memref<9xf32, #tpu.memory_space<smem>>
    %cst_197 = arith.constant 0.000000e+00 : f32
    %230 = vector.shape_cast %134 : vector<1x1x64xi1> to vector<1x1x64xi1>
    %231 = vector.broadcast %230 : vector<1x1x64xi1> to vector<16x1x64xi1>
    %232 = vector.broadcast %cst_197 : f32 to vector<16x1x64xf32>
    %233 = arith.select %231, %228, %232 : vector<16x1x64xi1>, vector<16x1x64xf32>
    %234 = vector.broadcast %229 : f32 to vector<16x1x64xf32>
    %235 = arith.mulf %234, %233 : vector<16x1x64xf32>
    %236 = arith.addf %227, %235 : vector<16x1x64xf32>
    %c0_198 = arith.constant 0 : index
    %c0_199 = arith.constant 0 : index
    %c16_200 = arith.constant 16 : index
    %237 = vector.load %arg7[%c0_198, %c0_199, %c16_200] : memref<16x1x96xf32, #tpu.memory_space<vmem>>, vector<16x1x64xf32>
    %c4_201 = arith.constant 4 : index
    %238 = memref.load %arg3[%c4_201] : memref<9xf32, #tpu.memory_space<smem>>
    %239 = vector.broadcast %238 : f32 to vector<16x1x64xf32>
    %240 = arith.mulf %239, %237 : vector<16x1x64xf32>
    %241 = arith.addf %236, %240 : vector<16x1x64xf32>
    %c0_202 = arith.constant 0 : index
    %c0_203 = arith.constant 0 : index
    %c17_204 = arith.constant 17 : index
    %242 = vector.load %arg7[%c0_202, %c0_203, %c17_204] : memref<16x1x96xf32, #tpu.memory_space<vmem>>, vector<16x1x64xf32>
    %c5_205 = arith.constant 5 : index
    %243 = memref.load %arg3[%c5_205] : memref<9xf32, #tpu.memory_space<smem>>
    %cst_206 = arith.constant 0.000000e+00 : f32
    %244 = vector.shape_cast %136 : vector<1x1x64xi1> to vector<1x1x64xi1>
    %245 = vector.broadcast %244 : vector<1x1x64xi1> to vector<16x1x64xi1>
    %246 = vector.broadcast %cst_206 : f32 to vector<16x1x64xf32>
    %247 = arith.select %245, %242, %246 : vector<16x1x64xi1>, vector<16x1x64xf32>
    %248 = vector.broadcast %243 : f32 to vector<16x1x64xf32>
    %249 = arith.mulf %248, %247 : vector<16x1x64xf32>
    %250 = arith.addf %241, %249 : vector<16x1x64xf32>
    %c0_207 = arith.constant 0 : index
    %c0_208 = arith.constant 0 : index
    %c23_209 = arith.constant 23 : index
    %251 = vector.load %arg7[%c0_207, %c0_208, %c23_209] : memref<16x1x96xf32, #tpu.memory_space<vmem>>, vector<16x1x64xf32>
    %c6_210 = arith.constant 6 : index
    %252 = memref.load %arg3[%c6_210] : memref<9xf32, #tpu.memory_space<smem>>
    %cst_211 = arith.constant 0.000000e+00 : f32
    %253 = vector.shape_cast %134 : vector<1x1x64xi1> to vector<1x1x64xi1>
    %254 = vector.broadcast %253 : vector<1x1x64xi1> to vector<16x1x64xi1>
    %255 = vector.broadcast %cst_211 : f32 to vector<16x1x64xf32>
    %256 = arith.select %254, %251, %255 : vector<16x1x64xi1>, vector<16x1x64xf32>
    %257 = vector.broadcast %252 : f32 to vector<16x1x64xf32>
    %258 = arith.mulf %257, %256 : vector<16x1x64xf32>
    %259 = arith.addf %250, %258 : vector<16x1x64xf32>
    %c0_212 = arith.constant 0 : index
    %c0_213 = arith.constant 0 : index
    %c24_214 = arith.constant 24 : index
    %260 = vector.load %arg7[%c0_212, %c0_213, %c24_214] : memref<16x1x96xf32, #tpu.memory_space<vmem>>, vector<16x1x64xf32>
    %c7_215 = arith.constant 7 : index
    %261 = memref.load %arg3[%c7_215] : memref<9xf32, #tpu.memory_space<smem>>
    %262 = vector.broadcast %261 : f32 to vector<16x1x64xf32>
    %263 = arith.mulf %262, %260 : vector<16x1x64xf32>
    %264 = arith.addf %259, %263 : vector<16x1x64xf32>
    %c0_216 = arith.constant 0 : index
    %c0_217 = arith.constant 0 : index
    %c25_218 = arith.constant 25 : index
    %265 = vector.load %arg7[%c0_216, %c0_217, %c25_218] : memref<16x1x96xf32, #tpu.memory_space<vmem>>, vector<16x1x64xf32>
    %c8_219 = arith.constant 8 : index
    %266 = memref.load %arg3[%c8_219] : memref<9xf32, #tpu.memory_space<smem>>
    %cst_220 = arith.constant 0.000000e+00 : f32
    %267 = vector.shape_cast %136 : vector<1x1x64xi1> to vector<1x1x64xi1>
    %268 = vector.broadcast %267 : vector<1x1x64xi1> to vector<16x1x64xi1>
    %269 = vector.broadcast %cst_220 : f32 to vector<16x1x64xf32>
    %270 = arith.select %268, %265, %269 : vector<16x1x64xi1>, vector<16x1x64xf32>
    %271 = vector.broadcast %266 : f32 to vector<16x1x64xf32>
    %272 = arith.mulf %271, %270 : vector<16x1x64xf32>
    %273 = arith.addf %264, %272 : vector<16x1x64xf32>
    %c1_221 = arith.constant 1 : index
    %274 = memref.load %arg4[%c1_221] : memref<2xf32, #tpu.memory_space<smem>>
    %275 = vector.broadcast %274 : f32 to vector<16x1x64xf32>
    %276 = arith.addf %273, %275 : vector<16x1x64xf32>
    %cst_222 = arith.constant dense<0.000000e+00> : vector<16x1xf32>
    %277 = vector.multi_reduction <add>, %276, %cst_222 [2] : vector<16x1x64xf32> to vector<16x1xf32>
    %278 = vector.shape_cast %277 : vector<16x1xf32> to vector<16x1x1xf32>
    %cst_223 = arith.constant 6.400000e+01 : f32
    %279 = vector.broadcast %cst_223 : f32 to vector<16x1x1xf32>
    %280 = arith.divf %278, %279 : vector<16x1x1xf32>
    %281 = vector.broadcast %280 : vector<16x1x1xf32> to vector<16x1x64xf32>
    %282 = arith.subf %276, %281 : vector<16x1x64xf32>
    %283 = arith.mulf %282, %282 : vector<16x1x64xf32>
    %cst_224 = arith.constant dense<0.000000e+00> : vector<16x1xf32>
    %284 = vector.multi_reduction <add>, %283, %cst_224 [2] : vector<16x1x64xf32> to vector<16x1xf32>
    %285 = vector.shape_cast %284 : vector<16x1xf32> to vector<16x1x1xf32>
    %cst_225 = arith.constant 6.400000e+01 : f32
    %286 = vector.broadcast %cst_225 : f32 to vector<16x1x1xf32>
    %287 = arith.divf %285, %286 : vector<16x1x1xf32>
    %288 = vector.broadcast %280 : vector<16x1x1xf32> to vector<16x1x64xf32>
    %289 = arith.subf %276, %288 : vector<16x1x64xf32>
    %cst_226 = arith.constant 9.99999974E-6 : f32
    %290 = vector.broadcast %cst_226 : f32 to vector<16x1x1xf32>
    %291 = arith.addf %287, %290 : vector<16x1x1xf32>
    %292 = math.rsqrt %291 : vector<16x1x1xf32>
    %293 = vector.broadcast %292 : vector<16x1x1xf32> to vector<16x1x64xf32>
    %294 = arith.mulf %289, %293 : vector<16x1x64xf32>
    %cst_227 = arith.constant 0.000000e+00 : f32
    %295 = vector.broadcast %cst_227 : f32 to vector<16x1x64xf32>
    %296 = arith.maximumf %294, %295 : vector<16x1x64xf32>
    %cst_228 = arith.constant dense<0.000000e+00> : vector<16x1xf32>
    %297 = vector.multi_reduction <add>, %296, %cst_228 [2] : vector<16x1x64xf32> to vector<16x1xf32>
    %298 = vector.shape_cast %297 : vector<16x1xf32> to vector<16x1x1xf32>
    %cst_229 = arith.constant 6.400000e+01 : f32
    %299 = vector.broadcast %cst_229 : f32 to vector<16x1x1xf32>
    %300 = arith.divf %298, %299 : vector<16x1x1xf32>
    %c0_230 = arith.constant 0 : index
    %c0_231 = arith.constant 0 : index
    %c0_232 = arith.constant 0 : index
    %301 = vector.load %arg5[%c0_230, %c0_231, %c0_232] : memref<16x1x1xf32, #tpu.memory_space<vmem>>, vector<16x1x1xf32>
    tpu.vector_store %arg5[%c0_230, %c0_231, %c0_232], %300 {strides = array<i32>} : memref<16x1x1xf32, #tpu.memory_space<vmem>>, vector<16x1x1xf32>,
    return
  }
  func.func @transform_0(%arg0: i32) -> (i32, i32, i32) {
    %c0_i32 = arith.constant 0 : i32
    %c0_i32_0 = arith.constant 0 : i32
    %c0_i32_1 = arith.constant 0 : i32
    return %arg0, %c0_i32, %c0_i32_0 : i32, i32, i32
  }
  func.func @transform_1(%arg0: i32) -> (i32, i32) {
    %c0_i32 = arith.constant 0 : i32
    %c0_i32_0 = arith.constant 0 : i32
    %c0_i32_1 = arith.constant 0 : i32
    return %c0_i32, %c0_i32_0 : i32, i32
  }
  func.func @transform_2(%arg0: i32) -> i32 {
    %c0_i32 = arith.constant 0 : i32
    %c0_i32_0 = arith.constant 0 : i32
    return %c0_i32 : i32
  }
  func.func @transform_3(%arg0: i32) -> i32 {
    %c0_i32 = arith.constant 0 : i32
    %c0_i32_0 = arith.constant 0 : i32
    return %c0_i32 : i32
  }
  func.func @transform_4(%arg0: i32) -> (i32, i32, i32) {
    %c0_i32 = arith.constant 0 : i32
    %c0_i32_0 = arith.constant 0 : i32
    %c0_i32_1 = arith.constant 0 : i32
    return %arg0, %c0_i32, %c0_i32_0 : i32, i32, i32
  }
}

</mosaic_0001>

<llo_original>
// kernel: tpu_custom_call.1
$region0: #{tpu_custom_call.1}
  #allocation0 [shape = 'u32[]', space=smem, size = 0x4, offset = 0x4, fixed_abs, tag = 'smem constant byte address 0x4 - core index']
  #allocation1 [shape = 'u32[72,128]{1,0:T(1,128)}', space=vmem, size = 0x9000, scoped, tag = 'internal scratch']
  #allocation2 [shape = 'f32[16,16,96]{2,1,0:T(8,128)}', space=vmem, size = 0x20000, scoped, tag = 'scratch operand']
  #allocation3 [shape = 'f32[16,1,96]{2,1,0:T(1,128)}', space=vmem, size = 0x2000, scoped, tag = 'scratch operand']
  %s0 = inlined_call_operand.vmem [shape: f32[32,256,64], index: 0, kind: input, shape index: {}]
  %s1 = inlined_call_operand.vmem [shape: f32[16,256], index: 1, kind: input, shape index: {}]
  %s2 = inlined_call_operand.vmem [shape: f32[9], index: 2, kind: input, shape index: {}]
  %s3 = inlined_call_operand.vmem [shape: f32[2], index: 3, kind: input, shape index: {}]
  %s4 = inlined_call_operand.vmem [shape: f32[32,1,1], index: 4, kind: output, shape index: {}]
  %s5 = sld [smem:[#allocation0]]
  $region57: #{tpu_custom_call.1} parent=0
    _
  %s7 = ssub.s32 1, %s5
  %s8 = scalar_select 0, %s7, %s5
  $region1: #{tpu_custom_call.1} parent=0
    #allocation4 [shape = 'u8[512]{0}', space=smem, size = 0x200, scoped, tag = 'input window, operand 2, single buffered']
    #allocation5 [shape = 's32[2]{0}', space=sflag, size = 0x8, scoped, tag = 'scoped memory for tpu_custom_call.1']
    #allocation6 [shape = 'u8[512]{0}', space=smem, size = 0x200, scoped, tag = 'input window, operand 3, single buffered']
    #allocation7 [shape = 's32[1]{0}', space=sflag, size = 0x4, scoped, tag = 'scoped memory for tpu_custom_call.1']
    %9 = vsyncpa [#allocation5], 0
    %10 = vsyncpa [#allocation7], 0
    loop: start=0, step=1, limit=4
    $region2: #{tpu_custom_call.1} parent=1 // loop_pre_header
      _
    $region3: #{tpu_custom_call.1} parent=1 // loop_header
      %s12 = sphi 0, %s16
      %p13 = scmp.ge.s32.totalorder %s12, 4
      %s22 = sphi 0, %s24
      %s25 = sphi 0, %s22
      %s26 = sphi 0, %s25
      %s42 = sphi 0, %s26
      %s46 = sphi 0, %s46
      %s48 = sphi 0, %s46
      %s49 = sphi 0, %s48
      %s63 = sphi 0, %s49
      %s67 = sphi 0, %s67
      %s69 = sphi 0, %s67
      %s70 = sphi 0, %s69
      %s84 = sphi 0, %s70
      %s88 = sphi 0, %s88
      %s90 = sphi 0, %s88
      %s91 = sphi 0, %s90
      %s105 = sphi 0, %s91
      %s111 = sphi 0, %s113
      %s114 = sphi 0, %s111
      %s115 = sphi 0, %s114
      %s131 = sphi 0, %s115
    $region4: #{tpu_custom_call.1} parent=1 // loop_header_branch
      %15 = sbr.rel (%p13) target = $region8
    $region5: #{tpu_custom_call.1} parent=1 // loop_body
      %s17 = ssub.s32 %s12, 1
      %s18 = ssub.s32 %s12, 2
      %s19 = sadd.s32 %s12, 1
      %s20 = ssub.s32 %s12, %s19
      %p21 = scmp.eq.s32.totalorder %s20, 0
      %s23 = sadd.s32 %s22, 1
      %s24 = scalar_select %p21, %s22, %s23
      %p27 = pneg %p21
      %p28 = scmp.eq.s32.totalorder %s12, 1
      %p29 = por %p27, %p28
      %p30 = scmp.ne.s32.totalorder %s22, %s25
      %p31 = scmp.eq.s32.totalorder %s12, 0
      %p32 = por %p30, %p31
      %p33 = scmp.ne.s32.totalorder %s22, %s25
      %p34 = scmp.eq.s32.totalorder %s17, 1
      %p35 = por %p33, %p34
      %p36 = scmp.ne.s32.totalorder %s25, %s26
      %p37 = scmp.eq.s32.totalorder %s17, 0
      %p38 = por %p36, %p37
      %p39 = scmp.ne.s32.totalorder %s25, %s26
      %p40 = scmp.eq.s32.totalorder %s18, 1
      %p41 = por %p39, %p40
      %p43 = scmp.ne.s32.totalorder %s26, %s42
      %p44 = scmp.eq.s32.totalorder %s18, 0
      %p45 = por %p43, %p44
      %s47 = sadd.s32 %s46, 1
      %p50 = scmp.eq.s32.totalorder %s12, 1
      %p51 = scmp.ne.s32.totalorder %s46, %s48
      %p52 = scmp.eq.s32.totalorder %s12, 0
      %p53 = por %p51, %p52
      %p54 = scmp.ne.s32.totalorder %s46, %s48
      %p55 = scmp.eq.s32.totalorder %s17, 1
      %p56 = por %p54, %p55
      %p57 = scmp.ne.s32.totalorder %s48, %s49
      %p58 = scmp.eq.s32.totalorder %s17, 0
      %p59 = por %p57, %p58
      %p60 = scmp.ne.s32.totalorder %s48, %s49
      %p61 = scmp.eq.s32.totalorder %s18, 1
      %p62 = por %p60, %p61
      %p64 = scmp.ne.s32.totalorder %s49, %s63
      %p65 = scmp.eq.s32.totalorder %s18, 0
      %p66 = por %p64, %p65
      %s68 = sadd.s32 %s67, 1
      %p71 = scmp.eq.s32.totalorder %s12, 1
      %p72 = scmp.ne.s32.totalorder %s67, %s69
      %p73 = scmp.eq.s32.totalorder %s12, 0
      %p74 = por %p72, %p73
      %p75 = scmp.ne.s32.totalorder %s67, %s69
      %p76 = scmp.eq.s32.totalorder %s17, 1
      %p77 = por %p75, %p76
      %p78 = scmp.ne.s32.totalorder %s69, %s70
      %p79 = scmp.eq.s32.totalorder %s17, 0
      %p80 = por %p78, %p79
      %p81 = scmp.ne.s32.totalorder %s69, %s70
      %p82 = scmp.eq.s32.totalorder %s18, 1
      %p83 = por %p81, %p82
      %p85 = scmp.ne.s32.totalorder %s70, %s84
      %p86 = scmp.eq.s32.totalorder %s18, 0
      %p87 = por %p85, %p86
      %s89 = sadd.s32 %s88, 1
      %p92 = scmp.eq.s32.totalorder %s12, 1
      %p93 = scmp.ne.s32.totalorder %s88, %s90
      %p94 = scmp.eq.s32.totalorder %s12, 0
      %p95 = por %p93, %p94
      %p96 = scmp.ne.s32.totalorder %s88, %s90
      %p97 = scmp.eq.s32.totalorder %s17, 1
      %p98 = por %p96, %p97
      %p99 = scmp.ne.s32.totalorder %s90, %s91
      %p100 = scmp.eq.s32.totalorder %s17, 0
      %p101 = por %p99, %p100
      %p102 = scmp.ne.s32.totalorder %s90, %s91
      %p103 = scmp.eq.s32.totalorder %s18, 1
      %p104 = por %p102, %p103
      %p106 = scmp.ne.s32.totalorder %s91, %s105
      %p107 = scmp.eq.s32.totalorder %s18, 0
      %p108 = por %p106, %p107
      %s109 = ssub.s32 %s12, %s19
      %p110 = scmp.eq.s32.totalorder %s109, 0
      %s112 = sadd.s32 %s111, 1
      %s113 = scalar_select %p110, %s111, %s112
      %p116 = pneg %p110
      %p117 = scmp.eq.s32.totalorder %s12, 1
      %p118 = por %p116, %p117
      %p119 = scmp.ne.s32.totalorder %s111, %s114
      %p120 = scmp.eq.s32.totalorder %s12, 0
      %p121 = por %p119, %p120
      %p122 = scmp.ne.s32.totalorder %s111, %s114
      %p123 = scmp.eq.s32.totalorder %s17, 1
      %p124 = por %p122, %p123
      %p125 = scmp.ne.s32.totalorder %s114, %s115
      %p126 = scmp.eq.s32.totalorder %s17, 0
      %p127 = por %p125, %p126
      %p128 = scmp.ne.s32.totalorder %s114, %s115
      %p129 = scmp.eq.s32.totalorder %s18, 1
      %p130 = por %p128, %p129
      %p132 = scmp.ne.s32.totalorder %s115, %s131
      %p133 = scmp.eq.s32.totalorder %s18, 0
      %p134 = por %p132, %p133
      %p135 = scmp.le.s32.totalorder 1, %s12
      %p136 = scmp.lt.s32.totalorder %s12, 3
      %p137 = pnand %p135, %p136
      %p138 = pneg %p137
      // Predicated region
      $region9: #{tpu_custom_call.1} parent=5 // pred_check
        _
      $region10: #{tpu_custom_call.1} parent=5 // pred_check_branch
        %140 = sbr.rel (%p137) target = $region12
      $region11: #{tpu_custom_call.1} parent=5 // pred_region
        %s141 = ssub.s32 %s12, 1
        // Predicated region
        $region13: #{tpu_custom_call.1} parent=11 // pred_check
          %p142 = pneg %p59
        $region14: #{tpu_custom_call.1} parent=11 // pred_check_branch
          %144 = sbr.rel (%p142) target = $region16
        $region15: #{tpu_custom_call.1} parent=11 // pred_region
          _
        $region16: #{tpu_custom_call.1} parent=11 // pred_fallthru
          _
        // Predicated region
        $region17: #{tpu_custom_call.1} parent=11 // pred_check
          %p145 = pneg %p80
        $region18: #{tpu_custom_call.1} parent=11 // pred_check_branch
          %147 = sbr.rel (%p145) target = $region20
        $region19: #{tpu_custom_call.1} parent=11 // pred_region
          %149 = vsyncadd [#allocation5], 0
          %s151 = sshll.u32 %s2, 4
          %s152 = int_to_ptr.vmem [resolvable:$true] %s151
          %154 = dma.vmem_to_smem %s152, 16, [#allocation4], [#allocation5]
        $region20: #{tpu_custom_call.1} parent=11 // pred_fallthru
          _
        // Predicated region
        $region21: #{tpu_custom_call.1} parent=11 // pred_check
          %p155 = pneg %p101
        $region22: #{tpu_custom_call.1} parent=11 // pred_check_branch
          %157 = sbr.rel (%p155) target = $region24
        $region23: #{tpu_custom_call.1} parent=11 // pred_region
          %159 = vsyncadd [#allocation7], 0
          %s161 = sshll.u32 %s3, 4
          %s162 = int_to_ptr.vmem [resolvable:$true] %s161
          %164 = dma.vmem_to_smem %s162, 16, [#allocation6], [#allocation7]
        $region24: #{tpu_custom_call.1} parent=11 // pred_fallthru
          _
      $region12: #{tpu_custom_call.1} parent=5 // pred_fallthru
        _
      %p165 = scmp.lt.s32.totalorder %s12, 2
      // Predicated region
      $region25: #{tpu_custom_call.1} parent=5 // pred_check
        %p166 = pneg %p165
      $region26: #{tpu_custom_call.1} parent=5 // pred_check_branch
        %168 = sbr.rel (%p166) target = $region28
      $region27: #{tpu_custom_call.1} parent=5 // pred_region
        // Predicated region
        $region29: #{tpu_custom_call.1} parent=27 // pred_check
          %p169 = pneg %p32
        $region30: #{tpu_custom_call.1} parent=27 // pred_check_branch
          %171 = sbr.rel (%p169) target = $region32
        $region31: #{tpu_custom_call.1} parent=27 // pred_region
          %s172 = smul.u32 16, %s12
          %p173 = scmp.lt.s32.totalorder %s172, 31
          %s174 = scalar_select %p173, %s172, 31
          %s175 = smul.addr %s174, 32
          %s176 = smul.addr %s175, 8
          %s177 = scalar_lea.vmem %s0, %s176
          %s178 = smul.u32 16, %s12
        $region32: #{tpu_custom_call.1} parent=27 // pred_fallthru
          _
      $region28: #{tpu_custom_call.1} parent=5 // pred_fallthru
        _
      %p179 = scmp.le.s32.totalorder 1, %s12
      %p180 = scmp.lt.s32.totalorder %s12, 3
      %p181 = pnand %p179, %p180
      %p182 = pneg %p181
      // Predicated region
      $region33: #{tpu_custom_call.1} parent=5 // pred_check
        _
      $region34: #{tpu_custom_call.1} parent=5 // pred_check_branch
        %184 = sbr.rel (%p181) target = $region36
      $region35: #{tpu_custom_call.1} parent=5 // pred_region
        %s185 = ssub.s32 %s12, 1
        // Predicated region
        $region37: #{tpu_custom_call.1} parent=35 // pred_check
          %p186 = pneg %p80
        $region38: #{tpu_custom_call.1} parent=35 // pred_check_branch
          %188 = sbr.rel (%p186) target = $region40
        $region39: #{tpu_custom_call.1} parent=35 // pred_region
          %190 = dma.done [#allocation5], 16
        $region40: #{tpu_custom_call.1} parent=35 // pred_fallthru
          _
        // Predicated region
        $region41: #{tpu_custom_call.1} parent=35 // pred_check
          %p191 = pneg %p101
        $region42: #{tpu_custom_call.1} parent=35 // pred_check_branch
          %193 = sbr.rel (%p191) target = $region44
        $region43: #{tpu_custom_call.1} parent=35 // pred_region
          %195 = dma.done [#allocation7], 16
        $region44: #{tpu_custom_call.1} parent=35 // pred_fallthru
          _
        %196 = sfence
        %s197 = smul.u32 16, %s17
        %p198 = scmp.lt.s32.totalorder %s197, 31
        %s199 = scalar_select %p198, %s197, 31
        %s200 = smul.addr %s199, 32
        %s201 = smul.addr %s200, 8
        %s202 = scalar_lea.vmem %s0, %s201
        %p203 = pneg %p38
        %p204 = pneg %p35
        %p205 = pneg %p59
        %p206 = pneg %p56
        %p207 = pneg %p80
        %p208 = pneg %p77
        %p209 = pneg %p101
        %p210 = pneg %p98
        %p211 = pneg %p127
        %p212 = pneg %p124
        %s213 = smul.u32 16, %s17
        %p214 = scmp.lt.s32.totalorder %s213, 31
        %s215 = scalar_select %p214, %s213, 31
        %s216 = scalar_lea.vmem %s4, %s215
        %s217 = smul.u32 16, %s17
        %p218 = scmp.lt.s32.totalorder %s217, 31
        %s219 = scalar_select %p218, %s217, 31
        %s220 = smul.addr %s219, 32
        %s221 = smul.addr %s220, 8
        %s222 = scalar_lea.vmem %s0, %s221
        %s223 = smul.u32 16, %s17
        %s224 = smul.u32 16, %s17
        %p225 = scmp.lt.s32.totalorder %s224, 31
        %s226 = scalar_select %p225, %s224, 31
        %s227 = scalar_lea.vmem %s4, %s226
        %s228 = smul.u32 16, %s17
        %vm229 = vcmask 785408
        %230 = vst.msk [vmem:[#allocation2] sm:$0xff] %vm229, 0.0
        %231 = vst.msk [vmem:[#allocation2 + $0x8] sm:$0xff] %vm229, 0.0
        %232 = vst.msk [vmem:[#allocation2 + $0x10] sm:$0xff] %vm229, 0.0
        %233 = vst.msk [vmem:[#allocation2 + $0x18] sm:$0xff] %vm229, 0.0
        %234 = vst.msk [vmem:[#allocation2 + $0x20] sm:$0xff] %vm229, 0.0
        %235 = vst.msk [vmem:[#allocation2 + $0x28] sm:$0xff] %vm229, 0.0
        %236 = vst.msk [vmem:[#allocation2 + $0x30] sm:$0xff] %vm229, 0.0
        %237 = vst.msk [vmem:[#allocation2 + $0x38] sm:$0xff] %vm229, 0.0
        %238 = vst.msk [vmem:[#allocation2 + $0x40] sm:$0xff] %vm229, 0.0
        %239 = vst.msk [vmem:[#allocation2 + $0x48] sm:$0xff] %vm229, 0.0
        %240 = vst.msk [vmem:[#allocation2 + $0x50] sm:$0xff] %vm229, 0.0
        %241 = vst.msk [vmem:[#allocation2 + $0x58] sm:$0xff] %vm229, 0.0
        %242 = vst.msk [vmem:[#allocation2 + $0x60] sm:$0xff] %vm229, 0.0
        %243 = vst.msk [vmem:[#allocation2 + $0x68] sm:$0xff] %vm229, 0.0
        %244 = vst.msk [vmem:[#allocation2 + $0x70] sm:$0xff] %vm229, 0.0
        %245 = vst.msk [vmem:[#allocation2 + $0x78] sm:$0xff] %vm229, 0.0
        %246 = vst.msk [vmem:[#allocation2 + $0x80] sm:$0xff] %vm229, 0.0
        %247 = vst.msk [vmem:[#allocation2 + $0x88] sm:$0xff] %vm229, 0.0
        %248 = vst.msk [vmem:[#allocation2 + $0x90] sm:$0xff] %vm229, 0.0
        %249 = vst.msk [vmem:[#allocation2 + $0x98] sm:$0xff] %vm229, 0.0
        %250 = vst.msk [vmem:[#allocation2 + $0xa0] sm:$0xff] %vm229, 0.0
        %251 = vst.msk [vmem:[#allocation2 + $0xa8] sm:$0xff] %vm229, 0.0
        %252 = vst.msk [vmem:[#allocation2 + $0xb0] sm:$0xff] %vm229, 0.0
        %253 = vst.msk [vmem:[#allocation2 + $0xb8] sm:$0xff] %vm229, 0.0
        %254 = vst.msk [vmem:[#allocation2 + $0xc0] sm:$0xff] %vm229, 0.0
        %255 = vst.msk [vmem:[#allocation2 + $0xc8] sm:$0xff] %vm229, 0.0
        %256 = vst.msk [vmem:[#allocation2 + $0xd0] sm:$0xff] %vm229, 0.0
        %257 = vst.msk [vmem:[#allocation2 + $0xd8] sm:$0xff] %vm229, 0.0
        %258 = vst.msk [vmem:[#allocation2 + $0xe0] sm:$0xff] %vm229, 0.0
        %259 = vst.msk [vmem:[#allocation2 + $0xe8] sm:$0xff] %vm229, 0.0
        %260 = vst.msk [vmem:[#allocation2 + $0xf0] sm:$0xff] %vm229, 0.0
        %261 = vst.msk [vmem:[#allocation2 + $0xf8] sm:$0xff] %vm229, 0.0
        %vm262 = vcmask 778240
        %263 = vst.msk [vmem:[#allocation3] sm:$0x1] %vm262, 0.0
        %264 = vst.msk [vmem:[#allocation3 + $0x1] sm:$0x1] %vm262, 0.0
        %265 = vst.msk [vmem:[#allocation3 + $0x2] sm:$0x1] %vm262, 0.0
        %266 = vst.msk [vmem:[#allocation3 + $0x3] sm:$0x1] %vm262, 0.0
        %267 = vst.msk [vmem:[#allocation3 + $0x4] sm:$0x1] %vm262, 0.0
        %268 = vst.msk [vmem:[#allocation3 + $0x5] sm:$0x1] %vm262, 0.0
        %269 = vst.msk [vmem:[#allocation3 + $0x6] sm:$0x1] %vm262, 0.0
        %270 = vst.msk [vmem:[#allocation3 + $0x7] sm:$0x1] %vm262, 0.0
        %271 = vst.msk [vmem:[#allocation3 + $0x8] sm:$0x1] %vm262, 0.0
        %272 = vst.msk [vmem:[#allocation3 + $0x9] sm:$0x1] %vm262, 0.0
        %273 = vst.msk [vmem:[#allocation3 + $0xa] sm:$0x1] %vm262, 0.0
        %274 = vst.msk [vmem:[#allocation3 + $0xb] sm:$0x1] %vm262, 0.0
        %275 = vst.msk [vmem:[#allocation3 + $0xc] sm:$0x1] %vm262, 0.0
        %276 = vst.msk [vmem:[#allocation3 + $0xd] sm:$0x1] %vm262, 0.0
        %277 = vst.msk [vmem:[#allocation3 + $0xe] sm:$0x1] %vm262, 0.0
        %278 = vst.msk [vmem:[#allocation3 + $0xf] sm:$0x1] %vm262, 0.0
        %v279 = vld [vmem:[%s1] sm:$0xff]
        %v280 = vld [vmem:[%s1 + $0x8] sm:$0xff]
        %v281 = vld [vmem:[%s1 + $0x10] sm:$0xff]
        %v282 = vld [vmem:[%s1 + $0x18] sm:$0xff]
        %v283 = vld [vmem:[%s222] sm:$0xff]
        %v284 = vld [vmem:[%s222 + $0x8] sm:$0xff]
        %v285 = vld [vmem:[%s222 + $0x10] sm:$0xff]
        %v286 = vld [vmem:[%s222 + $0x18] sm:$0xff]
        %v287 = vld [vmem:[%s222 + $0x20] sm:$0xff]
        %v288 = vld [vmem:[%s222 + $0x28] sm:$0xff]
        %v289 = vld [vmem:[%s222 + $0x30] sm:$0xff]
        %v290 = vld [vmem:[%s222 + $0x38] sm:$0xff]
        %v291 = vld [vmem:[%s222 + $0x40] sm:$0xff]
        %v292 = vld [vmem:[%s222 + $0x48] sm:$0xff]
        %v293 = vld [vmem:[%s222 + $0x50] sm:$0xff]
        %v294 = vld [vmem:[%s222 + $0x58] sm:$0xff]
        %v295 = vld [vmem:[%s222 + $0x60] sm:$0xff]
        %v296 = vld [vmem:[%s222 + $0x68] sm:$0xff]
        %v297 = vld [vmem:[%s222 + $0x70] sm:$0xff]
        %v298 = vld [vmem:[%s222 + $0x78] sm:$0xff]
        %v299 = vld [vmem:[%s222 + $0x80] sm:$0xff]
        %v300 = vld [vmem:[%s222 + $0x88] sm:$0xff]
        %v301 = vld [vmem:[%s222 + $0x90] sm:$0xff]
        %v302 = vld [vmem:[%s222 + $0x98] sm:$0xff]
        %v303 = vld [vmem:[%s222 + $0xa0] sm:$0xff]
        %v304 = vld [vmem:[%s222 + $0xa8] sm:$0xff]
        %v305 = vld [vmem:[%s222 + $0xb0] sm:$0xff]
        %v306 = vld [vmem:[%s222 + $0xb8] sm:$0xff]
        %v307 = vld [vmem:[%s222 + $0xc0] sm:$0xff]
        %v308 = vld [vmem:[%s222 + $0xc8] sm:$0xff]
        %v309 = vld [vmem:[%s222 + $0xd0] sm:$0xff]
        %v310 = vld [vmem:[%s222 + $0xd8] sm:$0xff]
        %v311 = vld [vmem:[%s222 + $0xe0] sm:$0xff]
        %v312 = vld [vmem:[%s222 + $0xe8] sm:$0xff]
        %v313 = vld [vmem:[%s222 + $0xf0] sm:$0xff]
        %v314 = vld [vmem:[%s222 + $0xf8] sm:$0xff]
        %315 = vmatpush.msra.mxu0 %v298
        %316 = vmatpush.msra.mxu0 %v297
        %317 = vmatpush.msra.mxu0 %v296
        %318 = vmatpush.msra.mxu0 %v295
        %319 = vmatpush.msra.mxu0 %v294
        %320 = vmatpush.msra.mxu0 %v293
        %321 = vmatpush.msra.mxu0 %v292
        %322 = vmatpush.msra.mxu0 %v291
        %323 = vmatpush.msra.mxu0 %v290
        %324 = vmatpush.msra.mxu0 %v289
        %325 = vmatpush.msra.mxu0 %v288
        %326 = vmatpush.msra.mxu0 %v287
        %327 = vmatpush.msra.mxu0 %v286
        %328 = vmatpush.msra.mxu0 %v285
        %329 = vmatpush.msra.mxu0 %v284
        %330 = vmatpush.msra.mxu0 %v283
        %331 = vmatmul.f32.gmra.mxu0 %v279
        %v332 = vpop.f32.mrf.mxu0
        %v333 = vadd.f32 0.0, %v332
        %334 = vmatmul.f32.gmra.mxu0 %v281
        %v335 = vpop.f32.mrf.mxu0
        %v336 = vadd.f32 0.0, %v335
        %337 = vdwg.mxu0
        %338 = vmatpush.msra.mxu0 %v314
        %339 = vmatpush.msra.mxu0 %v313
        %340 = vmatpush.msra.mxu0 %v312
        %341 = vmatpush.msra.mxu0 %v311
        %342 = vmatpush.msra.mxu0 %v310
        %343 = vmatpush.msra.mxu0 %v309
        %344 = vmatpush.msra.mxu0 %v308
        %345 = vmatpush.msra.mxu0 %v307
        %346 = vmatpush.msra.mxu0 %v306
        %347 = vmatpush.msra.mxu0 %v305
        %348 = vmatpush.msra.mxu0 %v304
        %349 = vmatpush.msra.mxu0 %v303
        %350 = vmatpush.msra.mxu0 %v302
        %351 = vmatpush.msra.mxu0 %v301
        %352 = vmatpush.msra.mxu0 %v300
        %353 = vmatpush.msra.mxu0 %v299
        %354 = vmatmul.f32.gmra.mxu0 %v280
        %v355 = vpop.f32.mrf.mxu0
        %v356 = vadd.f32 %v333, %v355
        %357 = vmatmul.f32.gmra.mxu0 %v282
        %v358 = vpop.f32.mrf.mxu0
        %v359 = vadd.f32 %v336, %v358
        %360 = vdwg.mxu0
        %363 = vrot.lane.b32.xlu0 %v356, 16
        %v364 = vpop.permute.xlu0 %363
        %365 = vrot.lane.b32.xlu0 %v359, 16
        %v366 = vpop.permute.xlu0 %365
        %vm369 = vcmask 654464
        %370 = vst.msk [vmem:[#allocation2] sm:$0xff] %vm369, %v364
        %371 = vst.msk [vmem:[#allocation2 + $0x8] sm:$0xff] %vm369, %v366
        %v372 = vld [vmem:[%s1] sm:$0xff]
        %v373 = vld [vmem:[%s1 + $0x8] sm:$0xff]
        %v374 = vld [vmem:[%s1 + $0x10] sm:$0xff]
        %v375 = vld [vmem:[%s1 + $0x18] sm:$0xff]
        %s376 = scalar_lea.vmem %s222, 256
        %v377 = vld [vmem:[%s376] sm:$0xff]
        %v378 = vld [vmem:[%s376 + $0x8] sm:$0xff]
        %v379 = vld [vmem:[%s376 + $0x10] sm:$0xff]
        %v380 = vld [vmem:[%s376 + $0x18] sm:$0xff]
        %v381 = vld [vmem:[%s376 + $0x20] sm:$0xff]
        %v382 = vld [vmem:[%s376 + $0x28] sm:$0xff]
        %v383 = vld [vmem:[%s376 + $0x30] sm:$0xff]
        %v384 = vld [vmem:[%s376 + $0x38] sm:$0xff]
        %v385 = vld [vmem:[%s376 + $0x40] sm:$0xff]
        %v386 = vld [vmem:[%s376 + $0x48] sm:$0xff]
        %v387 = vld [vmem:[%s376 + $0x50] sm:$0xff]
        %v388 = vld [vmem:[%s376 + $0x58] sm:$0xff]
        %v389 = vld [vmem:[%s376 + $0x60] sm:$0xff]
        %v390 = vld [vmem:[%s376 + $0x68] sm:$0xff]
        %v391 = vld [vmem:[%s376 + $0x70] sm:$0xff]
        %v392 = vld [vmem:[%s376 + $0x78] sm:$0xff]
        %v393 = vld [vmem:[%s376 + $0x80] sm:$0xff]
        %v394 = vld [vmem:[%s376 + $0x88] sm:$0xff]
        %v395 = vld [vmem:[%s376 + $0x90] sm:$0xff]
        %v396 = vld [vmem:[%s376 + $0x98] sm:$0xff]
        %v397 = vld [vmem:[%s376 + $0xa0] sm:$0xff]
        %v398 = vld [vmem:[%s376 + $0xa8] sm:$0xff]
        %v399 = vld [vmem:[%s376 + $0xb0] sm:$0xff]
        %v400 = vld [vmem:[%s376 + $0xb8] sm:$0xff]
        %v401 = vld [vmem:[%s376 + $0xc0] sm:$0xff]
        %v402 = vld [vmem:[%s376 + $0xc8] sm:$0xff]
        %v403 = vld [vmem:[%s376 + $0xd0] sm:$0xff]
        %v404 = vld [vmem:[%s376 + $0xd8] sm:$0xff]
        %v405 = vld [vmem:[%s376 + $0xe0] sm:$0xff]
        %v406 = vld [vmem:[%s376 + $0xe8] sm:$0xff]
        %v407 = vld [vmem:[%s376 + $0xf0] sm:$0xff]
        %v408 = vld [vmem:[%s376 + $0xf8] sm:$0xff]
        %409 = vmatpush.msra.mxu0 %v392
        %410 = vmatpush.msra.mxu0 %v391
        %411 = vmatpush.msra.mxu0 %v390
        %412 = vmatpush.msra.mxu0 %v389
        %413 = vmatpush.msra.mxu0 %v388
        %414 = vmatpush.msra.mxu0 %v387
        %415 = vmatpush.msra.mxu0 %v386
        %416 = vmatpush.msra.mxu0 %v385
        %417 = vmatpush.msra.mxu0 %v384
        %418 = vmatpush.msra.mxu0 %v383
        %419 = vmatpush.msra.mxu0 %v382
        %420 = vmatpush.msra.mxu0 %v381
        %421 = vmatpush.msra.mxu0 %v380
        %422 = vmatpush.msra.mxu0 %v379
        %423 = vmatpush.msra.mxu0 %v378
        %424 = vmatpush.msra.mxu0 %v377
        %425 = vmatmul.f32.gmra.mxu0 %v372
        %v426 = vpop.f32.mrf.mxu0
        %v427 = vadd.f32 0.0, %v426
        %428 = vmatmul.f32.gmra.mxu0 %v374
        %v429 = vpop.f32.mrf.mxu0
        %v430 = vadd.f32 0.0, %v429
        %431 = vdwg.mxu0
        %432 = vmatpush.msra.mxu0 %v408
        %433 = vmatpush.msra.mxu0 %v407
        %434 = vmatpush.msra.mxu0 %v406
        %435 = vmatpush.msra.mxu0 %v405
        %436 = vmatpush.msra.mxu0 %v404
        %437 = vmatpush.msra.mxu0 %v403
        %438 = vmatpush.msra.mxu0 %v402
        %439 = vmatpush.msra.mxu0 %v401
        %440 = vmatpush.msra.mxu0 %v400
        %441 = vmatpush.msra.mxu0 %v399
        %442 = vmatpush.msra.mxu0 %v398
        %443 = vmatpush.msra.mxu0 %v397
        %444 = vmatpush.msra.mxu0 %v396
        %445 = vmatpush.msra.mxu0 %v395
        %446 = vmatpush.msra.mxu0 %v394
        %447 = vmatpush.msra.mxu0 %v393
        %448 = vmatmul.f32.gmra.mxu0 %v373
        %v449 = vpop.f32.mrf.mxu0
        %v450 = vadd.f32 %v427, %v449
        %451 = vmatmul.f32.gmra.mxu0 %v375
        %v452 = vpop.f32.mrf.mxu0
        %v453 = vadd.f32 %v430, %v452
        %454 = vdwg.mxu0
        %457 = vrot.lane.b32.xlu0 %v450, 16
        %v458 = vpop.permute.xlu0 %457
        %459 = vrot.lane.b32.xlu0 %v453, 16
        %v460 = vpop.permute.xlu0 %459
        %s463 = scalar_lea.vmem [#allocation2], 16
        %464 = vst.msk [vmem:[%s463] sm:$0xff] %vm369, %v458
        %465 = vst.msk [vmem:[%s463 + $0x8] sm:$0xff] %vm369, %v460
        %v466 = vld [vmem:[%s1] sm:$0xff]
        %v467 = vld [vmem:[%s1 + $0x8] sm:$0xff]
        %v468 = vld [vmem:[%s1 + $0x10] sm:$0xff]
        %v469 = vld [vmem:[%s1 + $0x18] sm:$0xff]
        %s470 = scalar_lea.vmem %s222, 512
        %v471 = vld [vmem:[%s470] sm:$0xff]
        %v472 = vld [vmem:[%s470 + $0x8] sm:$0xff]
        %v473 = vld [vmem:[%s470 + $0x10] sm:$0xff]
        %v474 = vld [vmem:[%s470 + $0x18] sm:$0xff]
        %v475 = vld [vmem:[%s470 + $0x20] sm:$0xff]
        %v476 = vld [vmem:[%s470 + $0x28] sm:$0xff]
        %v477 = vld [vmem:[%s470 + $0x30] sm:$0xff]
        %v478 = vld [vmem:[%s470 + $0x38] sm:$0xff]
        %v479 = vld [vmem:[%s470 + $0x40] sm:$0xff]
        %v480 = vld [vmem:[%s470 + $0x48] sm:$0xff]
        %v481 = vld [vmem:[%s470 + $0x50] sm:$0xff]
        %v482 = vld [vmem:[%s470 + $0x58] sm:$0xff]
        %v483 = vld [vmem:[%s470 + $0x60] sm:$0xff]
        %v484 = vld [vmem:[%s470 + $0x68] sm:$0xff]
        %v485 = vld [vmem:[%s470 + $0x70] sm:$0xff]
        %v486 = vld [vmem:[%s470 + $0x78] sm:$0xff]
        %v487 = vld [vmem:[%s470 + $0x80] sm:$0xff]
        %v488 = vld [vmem:[%s470 + $0x88] sm:$0xff]
        %v489 = vld [vmem:[%s470 + $0x90] sm:$0xff]
        %v490 = vld [vmem:[%s470 + $0x98] sm:$0xff]
        %v491 = vld [vmem:[%s470 + $0xa0] sm:$0xff]
        %v492 = vld [vmem:[%s470 + $0xa8] sm:$0xff]
        %v493 = vld [vmem:[%s470 + $0xb0] sm:$0xff]
        %v494 = vld [vmem:[%s470 + $0xb8] sm:$0xff]
        %v495 = vld [vmem:[%s470 + $0xc0] sm:$0xff]
        %v496 = vld [vmem:[%s470 + $0xc8] sm:$0xff]
        %v497 = vld [vmem:[%s470 + $0xd0] sm:$0xff]
        %v498 = vld [vmem:[%s470 + $0xd8] sm:$0xff]
        %v499 = vld [vmem:[%s470 + $0xe0] sm:$0xff]
        %v500 = vld [vmem:[%s470 + $0xe8] sm:$0xff]
        %v501 = vld [vmem:[%s470 + $0xf0] sm:$0xff]
        %v502 = vld [vmem:[%s470 + $0xf8] sm:$0xff]
        %503 = vmatpush.msra.mxu0 %v486
        %504 = vmatpush.msra.mxu0 %v485
        %505 = vmatpush.msra.mxu0 %v484
        %506 = vmatpush.msra.mxu0 %v483
        %507 = vmatpush.msra.mxu0 %v482
        %508 = vmatpush.msra.mxu0 %v481
        %509 = vmatpush.msra.mxu0 %v480
        %510 = vmatpush.msra.mxu0 %v479
        %511 = vmatpush.msra.mxu0 %v478
        %512 = vmatpush.msra.mxu0 %v477
        %513 = vmatpush.msra.mxu0 %v476
        %514 = vmatpush.msra.mxu0 %v475
        %515 = vmatpush.msra.mxu0 %v474
        %516 = vmatpush.msra.mxu0 %v473
        %517 = vmatpush.msra.mxu0 %v472
        %518 = vmatpush.msra.mxu0 %v471
        %519 = vmatmul.f32.gmra.mxu0 %v466
        %v520 = vpop.f32.mrf.mxu0
        %v521 = vadd.f32 0.0, %v520
        %522 = vmatmul.f32.gmra.mxu0 %v468
        %v523 = vpop.f32.mrf.mxu0
        %v524 = vadd.f32 0.0, %v523
        %525 = vdwg.mxu0
        %526 = vmatpush.msra.mxu0 %v502
        %527 = vmatpush.msra.mxu0 %v501
        %528 = vmatpush.msra.mxu0 %v500
        %529 = vmatpush.msra.mxu0 %v499
        %530 = vmatpush.msra.mxu0 %v498
        %531 = vmatpush.msra.mxu0 %v497
        %532 = vmatpush.msra.mxu0 %v496
        %533 = vmatpush.msra.mxu0 %v495
        %534 = vmatpush.msra.mxu0 %v494
        %535 = vmatpush.msra.mxu0 %v493
        %536 = vmatpush.msra.mxu0 %v492
        %537 = vmatpush.msra.mxu0 %v491
        %538 = vmatpush.msra.mxu0 %v490
        %539 = vmatpush.msra.mxu0 %v489
        %540 = vmatpush.msra.mxu0 %v488
        %541 = vmatpush.msra.mxu0 %v487
        %542 = vmatmul.f32.gmra.mxu0 %v467
        %v543 = vpop.f32.mrf.mxu0
        %v544 = vadd.f32 %v521, %v543
        %545 = vmatmul.f32.gmra.mxu0 %v469
        %v546 = vpop.f32.mrf.mxu0
        %v547 = vadd.f32 %v524, %v546
        %548 = vdwg.mxu0
        %551 = vrot.lane.b32.xlu0 %v544, 16
        %v552 = vpop.permute.xlu0 %551
        %553 = vrot.lane.b32.xlu0 %v547, 16
        %v554 = vpop.permute.xlu0 %553
        %s557 = scalar_lea.vmem [#allocation2], 32
        %558 = vst.msk [vmem:[%s557] sm:$0xff] %vm369, %v552
        %559 = vst.msk [vmem:[%s557 + $0x8] sm:$0xff] %vm369, %v554
        %v560 = vld [vmem:[%s1] sm:$0xff]
        %v561 = vld [vmem:[%s1 + $0x8] sm:$0xff]
        %v562 = vld [vmem:[%s1 + $0x10] sm:$0xff]
        %v563 = vld [vmem:[%s1 + $0x18] sm:$0xff]
        %s564 = scalar_lea.vmem %s222, 768
        %v565 = vld [vmem:[%s564] sm:$0xff]
        %v566 = vld [vmem:[%s564 + $0x8] sm:$0xff]
        %v567 = vld [vmem:[%s564 + $0x10] sm:$0xff]
        %v568 = vld [vmem:[%s564 + $0x18] sm:$0xff]
        %v569 = vld [vmem:[%s564 + $0x20] sm:$0xff]
        %v570 = vld [vmem:[%s564 + $0x28] sm:$0xff]
        %v571 = vld [vmem:[%s564 + $0x30] sm:$0xff]
        %v572 = vld [vmem:[%s564 + $0x38] sm:$0xff]
        %v573 = vld [vmem:[%s564 + $0x40] sm:$0xff]
        %v574 = vld [vmem:[%s564 + $0x48] sm:$0xff]
        %v575 = vld [vmem:[%s564 + $0x50] sm:$0xff]
        %v576 = vld [vmem:[%s564 + $0x58] sm:$0xff]
        %v577 = vld [vmem:[%s564 + $0x60] sm:$0xff]
        %v578 = vld [vmem:[%s564 + $0x68] sm:$0xff]
        %v579 = vld [vmem:[%s564 + $0x70] sm:$0xff]
        %v580 = vld [vmem:[%s564 + $0x78] sm:$0xff]
        %v581 = vld [vmem:[%s564 + $0x80] sm:$0xff]
        %v582 = vld [vmem:[%s564 + $0x88] sm:$0xff]
        %v583 = vld [vmem:[%s564 + $0x90] sm:$0xff]
        %v584 = vld [vmem:[%s564 + $0x98] sm:$0xff]
        %v585 = vld [vmem:[%s564 + $0xa0] sm:$0xff]
        %v586 = vld [vmem:[%s564 + $0xa8] sm:$0xff]
        %v587 = vld [vmem:[%s564 + $0xb0] sm:$0xff]
        %v588 = vld [vmem:[%s564 + $0xb8] sm:$0xff]
        %v589 = vld [vmem:[%s564 + $0xc0] sm:$0xff]
        %v590 = vld [vmem:[%s564 + $0xc8] sm:$0xff]
        %v591 = vld [vmem:[%s564 + $0xd0] sm:$0xff]
        %v592 = vld [vmem:[%s564 + $0xd8] sm:$0xff]
        %v593 = vld [vmem:[%s564 + $0xe0] sm:$0xff]
        %v594 = vld [vmem:[%s564 + $0xe8] sm:$0xff]
        %v595 = vld [vmem:[%s564 + $0xf0] sm:$0xff]
        %v596 = vld [vmem:[%s564 + $0xf8] sm:$0xff]
        %597 = vmatpush.msra.mxu0 %v580
        %598 = vmatpush.msra.mxu0 %v579
        %599 = vmatpush.msra.mxu0 %v578
        %600 = vmatpush.msra.mxu0 %v577
        %601 = vmatpush.msra.mxu0 %v576
        %602 = vmatpush.msra.mxu0 %v575
        %603 = vmatpush.msra.mxu0 %v574
        %604 = vmatpush.msra.mxu0 %v573
        %605 = vmatpush.msra.mxu0 %v572
        %606 = vmatpush.msra.mxu0 %v571
        %607 = vmatpush.msra.mxu0 %v570
        %608 = vmatpush.msra.mxu0 %v569
        %609 = vmatpush.msra.mxu0 %v568
        %610 = vmatpush.msra.mxu0 %v567
        %611 = vmatpush.msra.mxu0 %v566
        %612 = vmatpush.msra.mxu0 %v565
        %613 = vmatmul.f32.gmra.mxu0 %v560
        %v614 = vpop.f32.mrf.mxu0
        %v615 = vadd.f32 0.0, %v614
        %616 = vmatmul.f32.gmra.mxu0 %v562
        %v617 = vpop.f32.mrf.mxu0
        %v618 = vadd.f32 0.0, %v617
        %619 = vdwg.mxu0
        %620 = vmatpush.msra.mxu0 %v596
        %621 = vmatpush.msra.mxu0 %v595
        %622 = vmatpush.msra.mxu0 %v594
        %623 = vmatpush.msra.mxu0 %v593
        %624 = vmatpush.msra.mxu0 %v592
        %625 = vmatpush.msra.mxu0 %v591
        %626 = vmatpush.msra.mxu0 %v590
        %627 = vmatpush.msra.mxu0 %v589
        %628 = vmatpush.msra.mxu0 %v588
        %629 = vmatpush.msra.mxu0 %v587
        %630 = vmatpush.msra.mxu0 %v586
        %631 = vmatpush.msra.mxu0 %v585
        %632 = vmatpush.msra.mxu0 %v584
        %633 = vmatpush.msra.mxu0 %v583
        %634 = vmatpush.msra.mxu0 %v582
        %635 = vmatpush.msra.mxu0 %v581
        %636 = vmatmul.f32.gmra.mxu0 %v561
        %v637 = vpop.f32.mrf.mxu0
        %v638 = vadd.f32 %v615, %v637
        %639 = vmatmul.f32.gmra.mxu0 %v563
        %v640 = vpop.f32.mrf.mxu0
        %v641 = vadd.f32 %v618, %v640
        %642 = vdwg.mxu0
        %645 = vrot.lane.b32.xlu0 %v638, 16
        %v646 = vpop.permute.xlu0 %645
        %647 = vrot.lane.b32.xlu0 %v641, 16
        %v648 = vpop.permute.xlu0 %647
        %s651 = scalar_lea.vmem [#allocation2], 48
        %652 = vst.msk [vmem:[%s651] sm:$0xff] %vm369, %v646
        %653 = vst.msk [vmem:[%s651 + $0x8] sm:$0xff] %vm369, %v648
        %v654 = vld [vmem:[%s1] sm:$0xff]
        %v655 = vld [vmem:[%s1 + $0x8] sm:$0xff]
        %v656 = vld [vmem:[%s1 + $0x10] sm:$0xff]
        %v657 = vld [vmem:[%s1 + $0x18] sm:$0xff]
        %s658 = scalar_lea.vmem %s222, 1024
        %v659 = vld [vmem:[%s658] sm:$0xff]
        %v660 = vld [vmem:[%s658 + $0x8] sm:$0xff]
        %v661 = vld [vmem:[%s658 + $0x10] sm:$0xff]
        %v662 = vld [vmem:[%s658 + $0x18] sm:$0xff]
        %v663 = vld [vmem:[%s658 + $0x20] sm:$0xff]
        %v664 = vld [vmem:[%s658 + $0x28] sm:$0xff]
        %v665 = vld [vmem:[%s658 + $0x30] sm:$0xff]
        %v666 = vld [vmem:[%s658 + $0x38] sm:$0xff]
        %v667 = vld [vmem:[%s658 + $0x40] sm:$0xff]
        %v668 = vld [vmem:[%s658 + $0x48] sm:$0xff]
        %v669 = vld [vmem:[%s658 + $0x50] sm:$0xff]
        %v670 = vld [vmem:[%s658 + $0x58] sm:$0xff]
        %v671 = vld [vmem:[%s658 + $0x60] sm:$0xff]
        %v672 = vld [vmem:[%s658 + $0x68] sm:$0xff]
        %v673 = vld [vmem:[%s658 + $0x70] sm:$0xff]
        %v674 = vld [vmem:[%s658 + $0x78] sm:$0xff]
        %v675 = vld [vmem:[%s658 + $0x80] sm:$0xff]
        %v676 = vld [vmem:[%s658 + $0x88] sm:$0xff]
        %v677 = vld [vmem:[%s658 + $0x90] sm:$0xff]
        %v678 = vld [vmem:[%s658 + $0x98] sm:$0xff]
        %v679 = vld [vmem:[%s658 + $0xa0] sm:$0xff]
        %v680 = vld [vmem:[%s658 + $0xa8] sm:$0xff]
        %v681 = vld [vmem:[%s658 + $0xb0] sm:$0xff]
        %v682 = vld [vmem:[%s658 + $0xb8] sm:$0xff]
        %v683 = vld [vmem:[%s658 + $0xc0] sm:$0xff]
        %v684 = vld [vmem:[%s658 + $0xc8] sm:$0xff]
        %v685 = vld [vmem:[%s658 + $0xd0] sm:$0xff]
        %v686 = vld [vmem:[%s658 + $0xd8] sm:$0xff]
        %v687 = vld [vmem:[%s658 + $0xe0] sm:$0xff]
        %v688 = vld [vmem:[%s658 + $0xe8] sm:$0xff]
        %v689 = vld [vmem:[%s658 + $0xf0] sm:$0xff]
        %v690 = vld [vmem:[%s658 + $0xf8] sm:$0xff]
        %691 = vmatpush.msra.mxu0 %v674
        %692 = vmatpush.msra.mxu0 %v673
        %693 = vmatpush.msra.mxu0 %v672
        %694 = vmatpush.msra.mxu0 %v671
        %695 = vmatpush.msra.mxu0 %v670
        %696 = vmatpush.msra.mxu0 %v669
        %697 = vmatpush.msra.mxu0 %v668
        %698 = vmatpush.msra.mxu0 %v667
        %699 = vmatpush.msra.mxu0 %v666
        %700 = vmatpush.msra.mxu0 %v665
        %701 = vmatpush.msra.mxu0 %v664
        %702 = vmatpush.msra.mxu0 %v663
        %703 = vmatpush.msra.mxu0 %v662
        %704 = vmatpush.msra.mxu0 %v661
        %705 = vmatpush.msra.mxu0 %v660
        %706 = vmatpush.msra.mxu0 %v659
        %707 = vmatmul.f32.gmra.mxu0 %v654
        %v708 = vpop.f32.mrf.mxu0
        %v709 = vadd.f32 0.0, %v708
        %710 = vmatmul.f32.gmra.mxu0 %v656
        %v711 = vpop.f32.mrf.mxu0
        %v712 = vadd.f32 0.0, %v711
        %713 = vdwg.mxu0
        %714 = vmatpush.msra.mxu0 %v690
        %715 = vmatpush.msra.mxu0 %v689
        %716 = vmatpush.msra.mxu0 %v688
        %717 = vmatpush.msra.mxu0 %v687
        %718 = vmatpush.msra.mxu0 %v686
        %719 = vmatpush.msra.mxu0 %v685
        %720 = vmatpush.msra.mxu0 %v684
        %721 = vmatpush.msra.mxu0 %v683
        %722 = vmatpush.msra.mxu0 %v682
        %723 = vmatpush.msra.mxu0 %v681
        %724 = vmatpush.msra.mxu0 %v680
        %725 = vmatpush.msra.mxu0 %v679
        %726 = vmatpush.msra.mxu0 %v678
        %727 = vmatpush.msra.mxu0 %v677
        %728 = vmatpush.msra.mxu0 %v676
        %729 = vmatpush.msra.mxu0 %v675
        %730 = vmatmul.f32.gmra.mxu0 %v655
        %v731 = vpop.f32.mrf.mxu0
        %v732 = vadd.f32 %v709, %v731
        %733 = vmatmul.f32.gmra.mxu0 %v657
        %v734 = vpop.f32.mrf.mxu0
        %v735 = vadd.f32 %v712, %v734
        %736 = vdwg.mxu0
        %739 = vrot.lane.b32.xlu0 %v732, 16
        %v740 = vpop.permute.xlu0 %739
        %741 = vrot.lane.b32.xlu0 %v735, 16
        %v742 = vpop.permute.xlu0 %741
        %s745 = scalar_lea.vmem [#allocation2], 64
        %746 = vst.msk [vmem:[%s745] sm:$0xff] %vm369, %v740
        %747 = vst.msk [vmem:[%s745 + $0x8] sm:$0xff] %vm369, %v742
        %v748 = vld [vmem:[%s1] sm:$0xff]
        %v749 = vld [vmem:[%s1 + $0x8] sm:$0xff]
        %v750 = vld [vmem:[%s1 + $0x10] sm:$0xff]
        %v751 = vld [vmem:[%s1 + $0x18] sm:$0xff]
        %s752 = scalar_lea.vmem %s222, 1280
        %v753 = vld [vmem:[%s752] sm:$0xff]
        %v754 = vld [vmem:[%s752 + $0x8] sm:$0xff]
        %v755 = vld [vmem:[%s752 + $0x10] sm:$0xff]
        %v756 = vld [vmem:[%s752 + $0x18] sm:$0xff]
        %v757 = vld [vmem:[%s752 + $0x20] sm:$0xff]
        %v758 = vld [vmem:[%s752 + $0x28] sm:$0xff]
        %v759 = vld [vmem:[%s752 + $0x30] sm:$0xff]
        %v760 = vld [vmem:[%s752 + $0x38] sm:$0xff]
        %v761 = vld [vmem:[%s752 + $0x40] sm:$0xff]
        %v762 = vld [vmem:[%s752 + $0x48] sm:$0xff]
        %v763 = vld [vmem:[%s752 + $0x50] sm:$0xff]
        %v764 = vld [vmem:[%s752 + $0x58] sm:$0xff]
        %v765 = vld [vmem:[%s752 + $0x60] sm:$0xff]
        %v766 = vld [vmem:[%s752 + $0x68] sm:$0xff]
        %v767 = vld [vmem:[%s752 + $0x70] sm:$0xff]
        %v768 = vld [vmem:[%s752 + $0x78] sm:$0xff]
        %v769 = vld [vmem:[%s752 + $0x80] sm:$0xff]
        %v770 = vld [vmem:[%s752 + $0x88] sm:$0xff]
        %v771 = vld [vmem:[%s752 + $0x90] sm:$0xff]
        %v772 = vld [vmem:[%s752 + $0x98] sm:$0xff]
        %v773 = vld [vmem:[%s752 + $0xa0] sm:$0xff]
        %v774 = vld [vmem:[%s752 + $0xa8] sm:$0xff]
        %v775 = vld [vmem:[%s752 + $0xb0] sm:$0xff]
        %v776 = vld [vmem:[%s752 + $0xb8] sm:$0xff]
        %v777 = vld [vmem:[%s752 + $0xc0] sm:$0xff]
        %v778 = vld [vmem:[%s752 + $0xc8] sm:$0xff]
        %v779 = vld [vmem:[%s752 + $0xd0] sm:$0xff]
        %v780 = vld [vmem:[%s752 + $0xd8] sm:$0xff]
        %v781 = vld [vmem:[%s752 + $0xe0] sm:$0xff]
        %v782 = vld [vmem:[%s752 + $0xe8] sm:$0xff]
        %v783 = vld [vmem:[%s752 + $0xf0] sm:$0xff]
        %v784 = vld [vmem:[%s752 + $0xf8] sm:$0xff]
        %785 = vmatpush.msra.mxu0 %v768
        %786 = vmatpush.msra.mxu0 %v767
        %787 = vmatpush.msra.mxu0 %v766
        %788 = vmatpush.msra.mxu0 %v765
        %789 = vmatpush.msra.mxu0 %v764
        %790 = vmatpush.msra.mxu0 %v763
        %791 = vmatpush.msra.mxu0 %v762
        %792 = vmatpush.msra.mxu0 %v761
        %793 = vmatpush.msra.mxu0 %v760
        %794 = vmatpush.msra.mxu0 %v759
        %795 = vmatpush.msra.mxu0 %v758
        %796 = vmatpush.msra.mxu0 %v757
        %797 = vmatpush.msra.mxu0 %v756
        %798 = vmatpush.msra.mxu0 %v755
        %799 = vmatpush.msra.mxu0 %v754
        %800 = vmatpush.msra.mxu0 %v753
        %801 = vmatmul.f32.gmra.mxu0 %v748
        %v802 = vpop.f32.mrf.mxu0
        %v803 = vadd.f32 0.0, %v802
        %804 = vmatmul.f32.gmra.mxu0 %v750
        %v805 = vpop.f32.mrf.mxu0
        %v806 = vadd.f32 0.0, %v805
        %807 = vdwg.mxu0
        %808 = vmatpush.msra.mxu0 %v784
        %809 = vmatpush.msra.mxu0 %v783
        %810 = vmatpush.msra.mxu0 %v782
        %811 = vmatpush.msra.mxu0 %v781
        %812 = vmatpush.msra.mxu0 %v780
        %813 = vmatpush.msra.mxu0 %v779
        %814 = vmatpush.msra.mxu0 %v778
        %815 = vmatpush.msra.mxu0 %v777
        %816 = vmatpush.msra.mxu0 %v776
        %817 = vmatpush.msra.mxu0 %v775
        %818 = vmatpush.msra.mxu0 %v774
        %819 = vmatpush.msra.mxu0 %v773
        %820 = vmatpush.msra.mxu0 %v772
        %821 = vmatpush.msra.mxu0 %v771
        %822 = vmatpush.msra.mxu0 %v770
        %823 = vmatpush.msra.mxu0 %v769
        %824 = vmatmul.f32.gmra.mxu0 %v749
        %v825 = vpop.f32.mrf.mxu0
        %v826 = vadd.f32 %v803, %v825
        %827 = vmatmul.f32.gmra.mxu0 %v751
        %v828 = vpop.f32.mrf.mxu0
        %v829 = vadd.f32 %v806, %v828
        %830 = vdwg.mxu0
        %833 = vrot.lane.b32.xlu0 %v826, 16
        %v834 = vpop.permute.xlu0 %833
        %835 = vrot.lane.b32.xlu0 %v829, 16
        %v836 = vpop.permute.xlu0 %835
        %s839 = scalar_lea.vmem [#allocation2], 80
        %840 = vst.msk [vmem:[%s839] sm:$0xff] %vm369, %v834
        %841 = vst.msk [vmem:[%s839 + $0x8] sm:$0xff] %vm369, %v836
        %v842 = vld [vmem:[%s1] sm:$0xff]
        %v843 = vld [vmem:[%s1 + $0x8] sm:$0xff]
        %v844 = vld [vmem:[%s1 + $0x10] sm:$0xff]
        %v845 = vld [vmem:[%s1 + $0x18] sm:$0xff]
        %s846 = scalar_lea.vmem %s222, 1536
        %v847 = vld [vmem:[%s846] sm:$0xff]
        %v848 = vld [vmem:[%s846 + $0x8] sm:$0xff]
        %v849 = vld [vmem:[%s846 + $0x10] sm:$0xff]
        %v850 = vld [vmem:[%s846 + $0x18] sm:$0xff]
        %v851 = vld [vmem:[%s846 + $0x20] sm:$0xff]
        %v852 = vld [vmem:[%s846 + $0x28] sm:$0xff]
        %v853 = vld [vmem:[%s846 + $0x30] sm:$0xff]
        %v854 = vld [vmem:[%s846 + $0x38] sm:$0xff]
        %v855 = vld [vmem:[%s846 + $0x40] sm:$0xff]
        %v856 = vld [vmem:[%s846 + $0x48] sm:$0xff]
        %v857 = vld [vmem:[%s846 + $0x50] sm:$0xff]
        %v858 = vld [vmem:[%s846 + $0x58] sm:$0xff]
        %v859 = vld [vmem:[%s846 + $0x60] sm:$0xff]
        %v860 = vld [vmem:[%s846 + $0x68] sm:$0xff]
        %v861 = vld [vmem:[%s846 + $0x70] sm:$0xff]
        %v862 = vld [vmem:[%s846 + $0x78] sm:$0xff]
        %v863 = vld [vmem:[%s846 + $0x80] sm:$0xff]
        %v864 = vld [vmem:[%s846 + $0x88] sm:$0xff]
        %v865 = vld [vmem:[%s846 + $0x90] sm:$0xff]
        %v866 = vld [vmem:[%s846 + $0x98] sm:$0xff]
        %v867 = vld [vmem:[%s846 + $0xa0] sm:$0xff]
        %v868 = vld [vmem:[%s846 + $0xa8] sm:$0xff]
        %v869 = vld [vmem:[%s846 + $0xb0] sm:$0xff]
        %v870 = vld [vmem:[%s846 + $0xb8] sm:$0xff]
        %v871 = vld [vmem:[%s846 + $0xc0] sm:$0xff]
        %v872 = vld [vmem:[%s846 + $0xc8] sm:$0xff]
        %v873 = vld [vmem:[%s846 + $0xd0] sm:$0xff]
        %v874 = vld [vmem:[%s846 + $0xd8] sm:$0xff]
        %v875 = vld [vmem:[%s846 + $0xe0] sm:$0xff]
        %v876 = vld [vmem:[%s846 + $0xe8] sm:$0xff]
        %v877 = vld [vmem:[%s846 + $0xf0] sm:$0xff]
        %v878 = vld [vmem:[%s846 + $0xf8] sm:$0xff]
        %879 = vmatpush.msra.mxu0 %v862
        %880 = vmatpush.msra.mxu0 %v861
        %881 = vmatpush.msra.mxu0 %v860
        %882 = vmatpush.msra.mxu0 %v859
        %883 = vmatpush.msra.mxu0 %v858
        %884 = vmatpush.msra.mxu0 %v857
        %885 = vmatpush.msra.mxu0 %v856
        %886 = vmatpush.msra.mxu0 %v855
        %887 = vmatpush.msra.mxu0 %v854
        %888 = vmatpush.msra.mxu0 %v853
        %889 = vmatpush.msra.mxu0 %v852
        %890 = vmatpush.msra.mxu0 %v851
        %891 = vmatpush.msra.mxu0 %v850
        %892 = vmatpush.msra.mxu0 %v849
        %893 = vmatpush.msra.mxu0 %v848
        %894 = vmatpush.msra.mxu0 %v847
        %895 = vmatmul.f32.gmra.mxu0 %v842
        %v896 = vpop.f32.mrf.mxu0
        %v897 = vadd.f32 0.0, %v896
        %898 = vmatmul.f32.gmra.mxu0 %v844
        %v899 = vpop.f32.mrf.mxu0
        %v900 = vadd.f32 0.0, %v899
        %901 = vdwg.mxu0
        %902 = vmatpush.msra.mxu0 %v878
        %903 = vmatpush.msra.mxu0 %v877
        %904 = vmatpush.msra.mxu0 %v876
        %905 = vmatpush.msra.mxu0 %v875
        %906 = vmatpush.msra.mxu0 %v874
        %907 = vmatpush.msra.mxu0 %v873
        %908 = vmatpush.msra.mxu0 %v872
        %909 = vmatpush.msra.mxu0 %v871
        %910 = vmatpush.msra.mxu0 %v870
        %911 = vmatpush.msra.mxu0 %v869
        %912 = vmatpush.msra.mxu0 %v868
        %913 = vmatpush.msra.mxu0 %v867
        %914 = vmatpush.msra.mxu0 %v866
        %915 = vmatpush.msra.mxu0 %v865
        %916 = vmatpush.msra.mxu0 %v864
        %917 = vmatpush.msra.mxu0 %v863
        %918 = vmatmul.f32.gmra.mxu0 %v843
        %v919 = vpop.f32.mrf.mxu0
        %v920 = vadd.f32 %v897, %v919
        %921 = vmatmul.f32.gmra.mxu0 %v845
        %v922 = vpop.f32.mrf.mxu0
        %v923 = vadd.f32 %v900, %v922
        %924 = vdwg.mxu0
        %927 = vrot.lane.b32.xlu0 %v920, 16
        %v928 = vpop.permute.xlu0 %927
        %929 = vrot.lane.b32.xlu0 %v923, 16
        %v930 = vpop.permute.xlu0 %929
        %s933 = scalar_lea.vmem [#allocation2], 96
        %934 = vst.msk [vmem:[%s933] sm:$0xff] %vm369, %v928
        %935 = vst.msk [vmem:[%s933 + $0x8] sm:$0xff] %vm369, %v930
        %v936 = vld [vmem:[%s1] sm:$0xff]
        %v937 = vld [vmem:[%s1 + $0x8] sm:$0xff]
        %v938 = vld [vmem:[%s1 + $0x10] sm:$0xff]
        %v939 = vld [vmem:[%s1 + $0x18] sm:$0xff]
        %s940 = scalar_lea.vmem %s222, 1792
        %v941 = vld [vmem:[%s940] sm:$0xff]
        %v942 = vld [vmem:[%s940 + $0x8] sm:$0xff]
        %v943 = vld [vmem:[%s940 + $0x10] sm:$0xff]
        %v944 = vld [vmem:[%s940 + $0x18] sm:$0xff]
        %v945 = vld [vmem:[%s940 + $0x20] sm:$0xff]
        %v946 = vld [vmem:[%s940 + $0x28] sm:$0xff]
        %v947 = vld [vmem:[%s940 + $0x30] sm:$0xff]
        %v948 = vld [vmem:[%s940 + $0x38] sm:$0xff]
        %v949 = vld [vmem:[%s940 + $0x40] sm:$0xff]
        %v950 = vld [vmem:[%s940 + $0x48] sm:$0xff]
        %v951 = vld [vmem:[%s940 + $0x50] sm:$0xff]
        %v952 = vld [vmem:[%s940 + $0x58] sm:$0xff]
        %v953 = vld [vmem:[%s940 + $0x60] sm:$0xff]
        %v954 = vld [vmem:[%s940 + $0x68] sm:$0xff]
        %v955 = vld [vmem:[%s940 + $0x70] sm:$0xff]
        %v956 = vld [vmem:[%s940 + $0x78] sm:$0xff]
        %v957 = vld [vmem:[%s940 + $0x80] sm:$0xff]
        %v958 = vld [vmem:[%s940 + $0x88] sm:$0xff]
        %v959 = vld [vmem:[%s940 + $0x90] sm:$0xff]
        %v960 = vld [vmem:[%s940 + $0x98] sm:$0xff]
        %v961 = vld [vmem:[%s940 + $0xa0] sm:$0xff]
        %v962 = vld [vmem:[%s940 + $0xa8] sm:$0xff]
        %v963 = vld [vmem:[%s940 + $0xb0] sm:$0xff]
        %v964 = vld [vmem:[%s940 + $0xb8] sm:$0xff]
        %v965 = vld [vmem:[%s940 + $0xc0] sm:$0xff]
        %v966 = vld [vmem:[%s940 + $0xc8] sm:$0xff]
        %v967 = vld [vmem:[%s940 + $0xd0] sm:$0xff]
        %v968 = vld [vmem:[%s940 + $0xd8] sm:$0xff]
        %v969 = vld [vmem:[%s940 + $0xe0] sm:$0xff]
        %v970 = vld [vmem:[%s940 + $0xe8] sm:$0xff]
        %v971 = vld [vmem:[%s940 + $0xf0] sm:$0xff]
        %v972 = vld [vmem:[%s940 + $0xf8] sm:$0xff]
        %973 = vmatpush.msra.mxu0 %v956
        %974 = vmatpush.msra.mxu0 %v955
        %975 = vmatpush.msra.mxu0 %v954
        %976 = vmatpush.msra.mxu0 %v953
        %977 = vmatpush.msra.mxu0 %v952
        %978 = vmatpush.msra.mxu0 %v951
        %979 = vmatpush.msra.mxu0 %v950
        %980 = vmatpush.msra.mxu0 %v949
        %981 = vmatpush.msra.mxu0 %v948
        %982 = vmatpush.msra.mxu0 %v947
        %983 = vmatpush.msra.mxu0 %v946
        %984 = vmatpush.msra.mxu0 %v945
        %985 = vmatpush.msra.mxu0 %v944
        %986 = vmatpush.msra.mxu0 %v943
        %987 = vmatpush.msra.mxu0 %v942
        %988 = vmatpush.msra.mxu0 %v941
        %989 = vmatmul.f32.gmra.mxu0 %v936
        %v990 = vpop.f32.mrf.mxu0
        %v991 = vadd.f32 0.0, %v990
        %992 = vmatmul.f32.gmra.mxu0 %v938
        %v993 = vpop.f32.mrf.mxu0
        %v994 = vadd.f32 0.0, %v993
        %995 = vdwg.mxu0
        %996 = vmatpush.msra.mxu0 %v972
        %997 = vmatpush.msra.mxu0 %v971
        %998 = vmatpush.msra.mxu0 %v970
        %999 = vmatpush.msra.mxu0 %v969
        %1000 = vmatpush.msra.mxu0 %v968
        %1001 = vmatpush.msra.mxu0 %v967
        %1002 = vmatpush.msra.mxu0 %v966
        %1003 = vmatpush.msra.mxu0 %v965
        %1004 = vmatpush.msra.mxu0 %v964
        %1005 = vmatpush.msra.mxu0 %v963
        %1006 = vmatpush.msra.mxu0 %v962
        %1007 = vmatpush.msra.mxu0 %v961
        %1008 = vmatpush.msra.mxu0 %v960
        %1009 = vmatpush.msra.mxu0 %v959
        %1010 = vmatpush.msra.mxu0 %v958
        %1011 = vmatpush.msra.mxu0 %v957
        %1012 = vmatmul.f32.gmra.mxu0 %v937
        %v1013 = vpop.f32.mrf.mxu0
        %v1014 = vadd.f32 %v991, %v1013
        %1015 = vmatmul.f32.gmra.mxu0 %v939
        %v1016 = vpop.f32.mrf.mxu0
        %v1017 = vadd.f32 %v994, %v1016
        %1018 = vdwg.mxu0
        %1021 = vrot.lane.b32.xlu0 %v1014, 16
        %v1022 = vpop.permute.xlu0 %1021
        %1023 = vrot.lane.b32.xlu0 %v1017, 16
        %v1024 = vpop.permute.xlu0 %1023
        %s1027 = scalar_lea.vmem [#allocation2], 112
        %1028 = vst.msk [vmem:[%s1027] sm:$0xff] %vm369, %v1022
        %1029 = vst.msk [vmem:[%s1027 + $0x8] sm:$0xff] %vm369, %v1024
        %v1030 = vld [vmem:[%s1] sm:$0xff]
        %v1031 = vld [vmem:[%s1 + $0x8] sm:$0xff]
        %v1032 = vld [vmem:[%s1 + $0x10] sm:$0xff]
        %v1033 = vld [vmem:[%s1 + $0x18] sm:$0xff]
        %s1034 = scalar_lea.vmem %s222, 2048
        %v1035 = vld [vmem:[%s1034] sm:$0xff]
        %v1036 = vld [vmem:[%s1034 + $0x8] sm:$0xff]
        %v1037 = vld [vmem:[%s1034 + $0x10] sm:$0xff]
        %v1038 = vld [vmem:[%s1034 + $0x18] sm:$0xff]
        %v1039 = vld [vmem:[%s1034 + $0x20] sm:$0xff]
        %v1040 = vld [vmem:[%s1034 + $0x28] sm:$0xff]
        %v1041 = vld [vmem:[%s1034 + $0x30] sm:$0xff]
        %v1042 = vld [vmem:[%s1034 + $0x38] sm:$0xff]
        %v1043 = vld [vmem:[%s1034 + $0x40] sm:$0xff]
        %v1044 = vld [vmem:[%s1034 + $0x48] sm:$0xff]
        %v1045 = vld [vmem:[%s1034 + $0x50] sm:$0xff]
        %v1046 = vld [vmem:[%s1034 + $0x58] sm:$0xff]
        %v1047 = vld [vmem:[%s1034 + $0x60] sm:$0xff]
        %v1048 = vld [vmem:[%s1034 + $0x68] sm:$0xff]
        %v1049 = vld [vmem:[%s1034 + $0x70] sm:$0xff]
        %v1050 = vld [vmem:[%s1034 + $0x78] sm:$0xff]
        %v1051 = vld [vmem:[%s1034 + $0x80] sm:$0xff]
        %v1052 = vld [vmem:[%s1034 + $0x88] sm:$0xff]
        %v1053 = vld [vmem:[%s1034 + $0x90] sm:$0xff]
        %v1054 = vld [vmem:[%s1034 + $0x98] sm:$0xff]
        %v1055 = vld [vmem:[%s1034 + $0xa0] sm:$0xff]
        %v1056 = vld [vmem:[%s1034 + $0xa8] sm:$0xff]
        %v1057 = vld [vmem:[%s1034 + $0xb0] sm:$0xff]
        %v1058 = vld [vmem:[%s1034 + $0xb8] sm:$0xff]
        %v1059 = vld [vmem:[%s1034 + $0xc0] sm:$0xff]
        %v1060 = vld [vmem:[%s1034 + $0xc8] sm:$0xff]
        %v1061 = vld [vmem:[%s1034 + $0xd0] sm:$0xff]
        %v1062 = vld [vmem:[%s1034 + $0xd8] sm:$0xff]
        %v1063 = vld [vmem:[%s1034 + $0xe0] sm:$0xff]
        %v1064 = vld [vmem:[%s1034 + $0xe8] sm:$0xff]
        %v1065 = vld [vmem:[%s1034 + $0xf0] sm:$0xff]
        %v1066 = vld [vmem:[%s1034 + $0xf8] sm:$0xff]
        %1067 = vmatpush.msra.mxu0 %v1050
        %1068 = vmatpush.msra.mxu0 %v1049
        %1069 = vmatpush.msra.mxu0 %v1048
        %1070 = vmatpush.msra.mxu0 %v1047
        %1071 = vmatpush.msra.mxu0 %v1046
        %1072 = vmatpush.msra.mxu0 %v1045
        %1073 = vmatpush.msra.mxu0 %v1044
        %1074 = vmatpush.msra.mxu0 %v1043
        %1075 = vmatpush.msra.mxu0 %v1042
        %1076 = vmatpush.msra.mxu0 %v1041
        %1077 = vmatpush.msra.mxu0 %v1040
        %1078 = vmatpush.msra.mxu0 %v1039
        %1079 = vmatpush.msra.mxu0 %v1038
        %1080 = vmatpush.msra.mxu0 %v1037
        %1081 = vmatpush.msra.mxu0 %v1036
        %1082 = vmatpush.msra.mxu0 %v1035
        %1083 = vmatmul.f32.gmra.mxu0 %v1030
        %v1084 = vpop.f32.mrf.mxu0
        %v1085 = vadd.f32 0.0, %v1084
        %1086 = vmatmul.f32.gmra.mxu0 %v1032
        %v1087 = vpop.f32.mrf.mxu0
        %v1088 = vadd.f32 0.0, %v1087
        %1089 = vdwg.mxu0
        %1090 = vmatpush.msra.mxu0 %v1066
        %1091 = vmatpush.msra.mxu0 %v1065
        %1092 = vmatpush.msra.mxu0 %v1064
        %1093 = vmatpush.msra.mxu0 %v1063
        %1094 = vmatpush.msra.mxu0 %v1062
        %1095 = vmatpush.msra.mxu0 %v1061
        %1096 = vmatpush.msra.mxu0 %v1060
        %1097 = vmatpush.msra.mxu0 %v1059
        %1098 = vmatpush.msra.mxu0 %v1058
        %1099 = vmatpush.msra.mxu0 %v1057
        %1100 = vmatpush.msra.mxu0 %v1056
        %1101 = vmatpush.msra.mxu0 %v1055
        %1102 = vmatpush.msra.mxu0 %v1054
        %1103 = vmatpush.msra.mxu0 %v1053
        %1104 = vmatpush.msra.mxu0 %v1052
        %1105 = vmatpush.msra.mxu0 %v1051
        %1106 = vmatmul.f32.gmra.mxu0 %v1031
        %v1107 = vpop.f32.mrf.mxu0
        %v1108 = vadd.f32 %v1085, %v1107
        %1109 = vmatmul.f32.gmra.mxu0 %v1033
        %v1110 = vpop.f32.mrf.mxu0
        %v1111 = vadd.f32 %v1088, %v1110
        %1112 = vdwg.mxu0
        %1115 = vrot.lane.b32.xlu0 %v1108, 16
        %v1116 = vpop.permute.xlu0 %1115
        %1117 = vrot.lane.b32.xlu0 %v1111, 16
        %v1118 = vpop.permute.xlu0 %1117
        %s1121 = scalar_lea.vmem [#allocation2], 128
        %1122 = vst.msk [vmem:[%s1121] sm:$0xff] %vm369, %v1116
        %1123 = vst.msk [vmem:[%s1121 + $0x8] sm:$0xff] %vm369, %v1118
        %v1124 = vld [vmem:[%s1] sm:$0xff]
        %v1125 = vld [vmem:[%s1 + $0x8] sm:$0xff]
        %v1126 = vld [vmem:[%s1 + $0x10] sm:$0xff]
        %v1127 = vld [vmem:[%s1 + $0x18] sm:$0xff]
        %s1128 = scalar_lea.vmem %s222, 2304
        %v1129 = vld [vmem:[%s1128] sm:$0xff]
        %v1130 = vld [vmem:[%s1128 + $0x8] sm:$0xff]
        %v1131 = vld [vmem:[%s1128 + $0x10] sm:$0xff]
        %v1132 = vld [vmem:[%s1128 + $0x18] sm:$0xff]
        %v1133 = vld [vmem:[%s1128 + $0x20] sm:$0xff]
        %v1134 = vld [vmem:[%s1128 + $0x28] sm:$0xff]
        %v1135 = vld [vmem:[%s1128 + $0x30] sm:$0xff]
        %v1136 = vld [vmem:[%s1128 + $0x38] sm:$0xff]
        %v1137 = vld [vmem:[%s1128 + $0x40] sm:$0xff]
        %v1138 = vld [vmem:[%s1128 + $0x48] sm:$0xff]
        %v1139 = vld [vmem:[%s1128 + $0x50] sm:$0xff]
        %v1140 = vld [vmem:[%s1128 + $0x58] sm:$0xff]
        %v1141 = vld [vmem:[%s1128 + $0x60] sm:$0xff]
        %v1142 = vld [vmem:[%s1128 + $0x68] sm:$0xff]
        %v1143 = vld [vmem:[%s1128 + $0x70] sm:$0xff]
        %v1144 = vld [vmem:[%s1128 + $0x78] sm:$0xff]
        %v1145 = vld [vmem:[%s1128 + $0x80] sm:$0xff]
        %v1146 = vld [vmem:[%s1128 + $0x88] sm:$0xff]
        %v1147 = vld [vmem:[%s1128 + $0x90] sm:$0xff]
        %v1148 = vld [vmem:[%s1128 + $0x98] sm:$0xff]
        %v1149 = vld [vmem:[%s1128 + $0xa0] sm:$0xff]
        %v1150 = vld [vmem:[%s1128 + $0xa8] sm:$0xff]
        %v1151 = vld [vmem:[%s1128 + $0xb0] sm:$0xff]
        %v1152 = vld [vmem:[%s1128 + $0xb8] sm:$0xff]
        %v1153 = vld [vmem:[%s1128 + $0xc0] sm:$0xff]
        %v1154 = vld [vmem:[%s1128 + $0xc8] sm:$0xff]
        %v1155 = vld [vmem:[%s1128 + $0xd0] sm:$0xff]
        %v1156 = vld [vmem:[%s1128 + $0xd8] sm:$0xff]
        %v1157 = vld [vmem:[%s1128 + $0xe0] sm:$0xff]
        %v1158 = vld [vmem:[%s1128 + $0xe8] sm:$0xff]
        %v1159 = vld [vmem:[%s1128 + $0xf0] sm:$0xff]
        %v1160 = vld [vmem:[%s1128 + $0xf8] sm:$0xff]
        %1161 = vmatpush.msra.mxu0 %v1144
        %1162 = vmatpush.msra.mxu0 %v1143
        %1163 = vmatpush.msra.mxu0 %v1142
        %1164 = vmatpush.msra.mxu0 %v1141
        %1165 = vmatpush.msra.mxu0 %v1140
        %1166 = vmatpush.msra.mxu0 %v1139
        %1167 = vmatpush.msra.mxu0 %v1138
        %1168 = vmatpush.msra.mxu0 %v1137
        %1169 = vmatpush.msra.mxu0 %v1136
        %1170 = vmatpush.msra.mxu0 %v1135
        %1171 = vmatpush.msra.mxu0 %v1134
        %1172 = vmatpush.msra.mxu0 %v1133
        %1173 = vmatpush.msra.mxu0 %v1132
        %1174 = vmatpush.msra.mxu0 %v1131
        %1175 = vmatpush.msra.mxu0 %v1130
        %1176 = vmatpush.msra.mxu0 %v1129
        %1177 = vmatmul.f32.gmra.mxu0 %v1124
        %v1178 = vpop.f32.mrf.mxu0
        %v1179 = vadd.f32 0.0, %v1178
        %1180 = vmatmul.f32.gmra.mxu0 %v1126
        %v1181 = vpop.f32.mrf.mxu0
        %v1182 = vadd.f32 0.0, %v1181
        %1183 = vdwg.mxu0
        %1184 = vmatpush.msra.mxu0 %v1160
        %1185 = vmatpush.msra.mxu0 %v1159
        %1186 = vmatpush.msra.mxu0 %v1158
        %1187 = vmatpush.msra.mxu0 %v1157
        %1188 = vmatpush.msra.mxu0 %v1156
        %1189 = vmatpush.msra.mxu0 %v1155
        %1190 = vmatpush.msra.mxu0 %v1154
        %1191 = vmatpush.msra.mxu0 %v1153
        %1192 = vmatpush.msra.mxu0 %v1152
        %1193 = vmatpush.msra.mxu0 %v1151
        %1194 = vmatpush.msra.mxu0 %v1150
        %1195 = vmatpush.msra.mxu0 %v1149
        %1196 = vmatpush.msra.mxu0 %v1148
        %1197 = vmatpush.msra.mxu0 %v1147
        %1198 = vmatpush.msra.mxu0 %v1146
        %1199 = vmatpush.msra.mxu0 %v1145
        %1200 = vmatmul.f32.gmra.mxu0 %v1125
        %v1201 = vpop.f32.mrf.mxu0
        %v1202 = vadd.f32 %v1179, %v1201
        %1203 = vmatmul.f32.gmra.mxu0 %v1127
        %v1204 = vpop.f32.mrf.mxu0
        %v1205 = vadd.f32 %v1182, %v1204
        %1206 = vdwg.mxu0
        %1209 = vrot.lane.b32.xlu0 %v1202, 16
        %v1210 = vpop.permute.xlu0 %1209
        %1211 = vrot.lane.b32.xlu0 %v1205, 16
        %v1212 = vpop.permute.xlu0 %1211
        %s1215 = scalar_lea.vmem [#allocation2], 144
        %1216 = vst.msk [vmem:[%s1215] sm:$0xff] %vm369, %v1210
        %1217 = vst.msk [vmem:[%s1215 + $0x8] sm:$0xff] %vm369, %v1212
        %v1218 = vld [vmem:[%s1] sm:$0xff]
        %v1219 = vld [vmem:[%s1 + $0x8] sm:$0xff]
        %v1220 = vld [vmem:[%s1 + $0x10] sm:$0xff]
        %v1221 = vld [vmem:[%s1 + $0x18] sm:$0xff]
        %s1222 = scalar_lea.vmem %s222, 2560
        %v1223 = vld [vmem:[%s1222] sm:$0xff]
        %v1224 = vld [vmem:[%s1222 + $0x8] sm:$0xff]
        %v1225 = vld [vmem:[%s1222 + $0x10] sm:$0xff]
        %v1226 = vld [vmem:[%s1222 + $0x18] sm:$0xff]
        %v1227 = vld [vmem:[%s1222 + $0x20] sm:$0xff]
        %v1228 = vld [vmem:[%s1222 + $0x28] sm:$0xff]
        %v1229 = vld [vmem:[%s1222 + $0x30] sm:$0xff]
        %v1230 = vld [vmem:[%s1222 + $0x38] sm:$0xff]
        %v1231 = vld [vmem:[%s1222 + $0x40] sm:$0xff]
        %v1232 = vld [vmem:[%s1222 + $0x48] sm:$0xff]
        %v1233 = vld [vmem:[%s1222 + $0x50] sm:$0xff]
        %v1234 = vld [vmem:[%s1222 + $0x58] sm:$0xff]
        %v1235 = vld [vmem:[%s1222 + $0x60] sm:$0xff]
        %v1236 = vld [vmem:[%s1222 + $0x68] sm:$0xff]
        %v1237 = vld [vmem:[%s1222 + $0x70] sm:$0xff]
        %v1238 = vld [vmem:[%s1222 + $0x78] sm:$0xff]
        %v1239 = vld [vmem:[%s1222 + $0x80] sm:$0xff]
        %v1240 = vld [vmem:[%s1222 + $0x88] sm:$0xff]
        %v1241 = vld [vmem:[%s1222 + $0x90] sm:$0xff]
        %v1242 = vld [vmem:[%s1222 + $0x98] sm:$0xff]
        %v1243 = vld [vmem:[%s1222 + $0xa0] sm:$0xff]
        %v1244 = vld [vmem:[%s1222 + $0xa8] sm:$0xff]
        %v1245 = vld [vmem:[%s1222 + $0xb0] sm:$0xff]
        %v1246 = vld [vmem:[%s1222 + $0xb8] sm:$0xff]
        %v1247 = vld [vmem:[%s1222 + $0xc0] sm:$0xff]
        %v1248 = vld [vmem:[%s1222 + $0xc8] sm:$0xff]
        %v1249 = vld [vmem:[%s1222 + $0xd0] sm:$0xff]
        %v1250 = vld [vmem:[%s1222 + $0xd8] sm:$0xff]
        %v1251 = vld [vmem:[%s1222 + $0xe0] sm:$0xff]
        %v1252 = vld [vmem:[%s1222 + $0xe8] sm:$0xff]
        %v1253 = vld [vmem:[%s1222 + $0xf0] sm:$0xff]
        %v1254 = vld [vmem:[%s1222 + $0xf8] sm:$0xff]
        %1255 = vmatpush.msra.mxu0 %v1238
        %1256 = vmatpush.msra.mxu0 %v1237
        %1257 = vmatpush.msra.mxu0 %v1236
        %1258 = vmatpush.msra.mxu0 %v1235
        %1259 = vmatpush.msra.mxu0 %v1234
        %1260 = vmatpush.msra.mxu0 %v1233
        %1261 = vmatpush.msra.mxu0 %v1232
        %1262 = vmatpush.msra.mxu0 %v1231
        %1263 = vmatpush.msra.mxu0 %v1230
        %1264 = vmatpush.msra.mxu0 %v1229
        %1265 = vmatpush.msra.mxu0 %v1228
        %1266 = vmatpush.msra.mxu0 %v1227
        %1267 = vmatpush.msra.mxu0 %v1226
        %1268 = vmatpush.msra.mxu0 %v1225
        %1269 = vmatpush.msra.mxu0 %v1224
        %1270 = vmatpush.msra.mxu0 %v1223
        %1271 = vmatmul.f32.gmra.mxu0 %v1218
        %v1272 = vpop.f32.mrf.mxu0
        %v1273 = vadd.f32 0.0, %v1272
        %1274 = vmatmul.f32.gmra.mxu0 %v1220
        %v1275 = vpop.f32.mrf.mxu0
        %v1276 = vadd.f32 0.0, %v1275
        %1277 = vdwg.mxu0
        %1278 = vmatpush.msra.mxu0 %v1254
        %1279 = vmatpush.msra.mxu0 %v1253
        %1280 = vmatpush.msra.mxu0 %v1252
        %1281 = vmatpush.msra.mxu0 %v1251
        %1282 = vmatpush.msra.mxu0 %v1250
        %1283 = vmatpush.msra.mxu0 %v1249
        %1284 = vmatpush.msra.mxu0 %v1248
        %1285 = vmatpush.msra.mxu0 %v1247
        %1286 = vmatpush.msra.mxu0 %v1246
        %1287 = vmatpush.msra.mxu0 %v1245
        %1288 = vmatpush.msra.mxu0 %v1244
        %1289 = vmatpush.msra.mxu0 %v1243
        %1290 = vmatpush.msra.mxu0 %v1242
        %1291 = vmatpush.msra.mxu0 %v1241
        %1292 = vmatpush.msra.mxu0 %v1240
        %1293 = vmatpush.msra.mxu0 %v1239
        %1294 = vmatmul.f32.gmra.mxu0 %v1219
        %v1295 = vpop.f32.mrf.mxu0
        %v1296 = vadd.f32 %v1273, %v1295
        %1297 = vmatmul.f32.gmra.mxu0 %v1221
        %v1298 = vpop.f32.mrf.mxu0
        %v1299 = vadd.f32 %v1276, %v1298
        %1300 = vdwg.mxu0
        %1303 = vrot.lane.b32.xlu0 %v1296, 16
        %v1304 = vpop.permute.xlu0 %1303
        %1305 = vrot.lane.b32.xlu0 %v1299, 16
        %v1306 = vpop.permute.xlu0 %1305
        %s1309 = scalar_lea.vmem [#allocation2], 160
        %1310 = vst.msk [vmem:[%s1309] sm:$0xff] %vm369, %v1304
        %1311 = vst.msk [vmem:[%s1309 + $0x8] sm:$0xff] %vm369, %v1306
        %v1312 = vld [vmem:[%s1] sm:$0xff]
        %v1313 = vld [vmem:[%s1 + $0x8] sm:$0xff]
        %v1314 = vld [vmem:[%s1 + $0x10] sm:$0xff]
        %v1315 = vld [vmem:[%s1 + $0x18] sm:$0xff]
        %s1316 = scalar_lea.vmem %s222, 2816
        %v1317 = vld [vmem:[%s1316] sm:$0xff]
        %v1318 = vld [vmem:[%s1316 + $0x8] sm:$0xff]
        %v1319 = vld [vmem:[%s1316 + $0x10] sm:$0xff]
        %v1320 = vld [vmem:[%s1316 + $0x18] sm:$0xff]
        %v1321 = vld [vmem:[%s1316 + $0x20] sm:$0xff]
        %v1322 = vld [vmem:[%s1316 + $0x28] sm:$0xff]
        %v1323 = vld [vmem:[%s1316 + $0x30] sm:$0xff]
        %v1324 = vld [vmem:[%s1316 + $0x38] sm:$0xff]
        %v1325 = vld [vmem:[%s1316 + $0x40] sm:$0xff]
        %v1326 = vld [vmem:[%s1316 + $0x48] sm:$0xff]
        %v1327 = vld [vmem:[%s1316 + $0x50] sm:$0xff]
        %v1328 = vld [vmem:[%s1316 + $0x58] sm:$0xff]
        %v1329 = vld [vmem:[%s1316 + $0x60] sm:$0xff]
        %v1330 = vld [vmem:[%s1316 + $0x68] sm:$0xff]
        %v1331 = vld [vmem:[%s1316 + $0x70] sm:$0xff]
        %v1332 = vld [vmem:[%s1316 + $0x78] sm:$0xff]
        %v1333 = vld [vmem:[%s1316 + $0x80] sm:$0xff]
        %v1334 = vld [vmem:[%s1316 + $0x88] sm:$0xff]
        %v1335 = vld [vmem:[%s1316 + $0x90] sm:$0xff]
        %v1336 = vld [vmem:[%s1316 + $0x98] sm:$0xff]
        %v1337 = vld [vmem:[%s1316 + $0xa0] sm:$0xff]
        %v1338 = vld [vmem:[%s1316 + $0xa8] sm:$0xff]
        %v1339 = vld [vmem:[%s1316 + $0xb0] sm:$0xff]
        %v1340 = vld [vmem:[%s1316 + $0xb8] sm:$0xff]
        %v1341 = vld [vmem:[%s1316 + $0xc0] sm:$0xff]
        %v1342 = vld [vmem:[%s1316 + $0xc8] sm:$0xff]
        %v1343 = vld [vmem:[%s1316 + $0xd0] sm:$0xff]
        %v1344 = vld [vmem:[%s1316 + $0xd8] sm:$0xff]
        %v1345 = vld [vmem:[%s1316 + $0xe0] sm:$0xff]
        %v1346 = vld [vmem:[%s1316 + $0xe8] sm:$0xff]
        %v1347 = vld [vmem:[%s1316 + $0xf0] sm:$0xff]
        %v1348 = vld [vmem:[%s1316 + $0xf8] sm:$0xff]
        %1349 = vmatpush.msra.mxu0 %v1332
        %1350 = vmatpush.msra.mxu0 %v1331
        %1351 = vmatpush.msra.mxu0 %v1330
        %1352 = vmatpush.msra.mxu0 %v1329
        %1353 = vmatpush.msra.mxu0 %v1328
        %1354 = vmatpush.msra.mxu0 %v1327
        %1355 = vmatpush.msra.mxu0 %v1326
        %1356 = vmatpush.msra.mxu0 %v1325
        %1357 = vmatpush.msra.mxu0 %v1324
        %1358 = vmatpush.msra.mxu0 %v1323
        %1359 = vmatpush.msra.mxu0 %v1322
        %1360 = vmatpush.msra.mxu0 %v1321
        %1361 = vmatpush.msra.mxu0 %v1320
        %1362 = vmatpush.msra.mxu0 %v1319
        %1363 = vmatpush.msra.mxu0 %v1318
        %1364 = vmatpush.msra.mxu0 %v1317
        %1365 = vmatmul.f32.gmra.mxu0 %v1312
        %v1366 = vpop.f32.mrf.mxu0
        %v1367 = vadd.f32 0.0, %v1366
        %1368 = vmatmul.f32.gmra.mxu0 %v1314
        %v1369 = vpop.f32.mrf.mxu0
        %v1370 = vadd.f32 0.0, %v1369
        %1371 = vdwg.mxu0
        %1372 = vmatpush.msra.mxu0 %v1348
        %1373 = vmatpush.msra.mxu0 %v1347
        %1374 = vmatpush.msra.mxu0 %v1346
        %1375 = vmatpush.msra.mxu0 %v1345
        %1376 = vmatpush.msra.mxu0 %v1344
        %1377 = vmatpush.msra.mxu0 %v1343
        %1378 = vmatpush.msra.mxu0 %v1342
        %1379 = vmatpush.msra.mxu0 %v1341
        %1380 = vmatpush.msra.mxu0 %v1340
        %1381 = vmatpush.msra.mxu0 %v1339
        %1382 = vmatpush.msra.mxu0 %v1338
        %1383 = vmatpush.msra.mxu0 %v1337
        %1384 = vmatpush.msra.mxu0 %v1336
        %1385 = vmatpush.msra.mxu0 %v1335
        %1386 = vmatpush.msra.mxu0 %v1334
        %1387 = vmatpush.msra.mxu0 %v1333
        %1388 = vmatmul.f32.gmra.mxu0 %v1313
        %v1389 = vpop.f32.mrf.mxu0
        %v1390 = vadd.f32 %v1367, %v1389
        %1391 = vmatmul.f32.gmra.mxu0 %v1315
        %v1392 = vpop.f32.mrf.mxu0
        %v1393 = vadd.f32 %v1370, %v1392
        %1394 = vdwg.mxu0
        %1397 = vrot.lane.b32.xlu0 %v1390, 16
        %v1398 = vpop.permute.xlu0 %1397
        %1399 = vrot.lane.b32.xlu0 %v1393, 16
        %v1400 = vpop.permute.xlu0 %1399
        %s1403 = scalar_lea.vmem [#allocation2], 176
        %1404 = vst.msk [vmem:[%s1403] sm:$0xff] %vm369, %v1398
        %1405 = vst.msk [vmem:[%s1403 + $0x8] sm:$0xff] %vm369, %v1400
        %v1406 = vld [vmem:[%s1] sm:$0xff]
        %v1407 = vld [vmem:[%s1 + $0x8] sm:$0xff]
        %v1408 = vld [vmem:[%s1 + $0x10] sm:$0xff]
        %v1409 = vld [vmem:[%s1 + $0x18] sm:$0xff]
        %s1410 = scalar_lea.vmem %s222, 3072
        %v1411 = vld [vmem:[%s1410] sm:$0xff]
        %v1412 = vld [vmem:[%s1410 + $0x8] sm:$0xff]
        %v1413 = vld [vmem:[%s1410 + $0x10] sm:$0xff]
        %v1414 = vld [vmem:[%s1410 + $0x18] sm:$0xff]
        %v1415 = vld [vmem:[%s1410 + $0x20] sm:$0xff]
        %v1416 = vld [vmem:[%s1410 + $0x28] sm:$0xff]
        %v1417 = vld [vmem:[%s1410 + $0x30] sm:$0xff]
        %v1418 = vld [vmem:[%s1410 + $0x38] sm:$0xff]
        %v1419 = vld [vmem:[%s1410 + $0x40] sm:$0xff]
        %v1420 = vld [vmem:[%s1410 + $0x48] sm:$0xff]
        %v1421 = vld [vmem:[%s1410 + $0x50] sm:$0xff]
        %v1422 = vld [vmem:[%s1410 + $0x58] sm:$0xff]
        %v1423 = vld [vmem:[%s1410 + $0x60] sm:$0xff]
        %v1424 = vld [vmem:[%s1410 + $0x68] sm:$0xff]
        %v1425 = vld [vmem:[%s1410 + $0x70] sm:$0xff]
        %v1426 = vld [vmem:[%s1410 + $0x78] sm:$0xff]
        %v1427 = vld [vmem:[%s1410 + $0x80] sm:$0xff]
        %v1428 = vld [vmem:[%s1410 + $0x88] sm:$0xff]
        %v1429 = vld [vmem:[%s1410 + $0x90] sm:$0xff]
        %v1430 = vld [vmem:[%s1410 + $0x98] sm:$0xff]
        %v1431 = vld [vmem:[%s1410 + $0xa0] sm:$0xff]
        %v1432 = vld [vmem:[%s1410 + $0xa8] sm:$0xff]
        %v1433 = vld [vmem:[%s1410 + $0xb0] sm:$0xff]
        %v1434 = vld [vmem:[%s1410 + $0xb8] sm:$0xff]
        %v1435 = vld [vmem:[%s1410 + $0xc0] sm:$0xff]
        %v1436 = vld [vmem:[%s1410 + $0xc8] sm:$0xff]
        %v1437 = vld [vmem:[%s1410 + $0xd0] sm:$0xff]
        %v1438 = vld [vmem:[%s1410 + $0xd8] sm:$0xff]
        %v1439 = vld [vmem:[%s1410 + $0xe0] sm:$0xff]
        %v1440 = vld [vmem:[%s1410 + $0xe8] sm:$0xff]
        %v1441 = vld [vmem:[%s1410 + $0xf0] sm:$0xff]
        %v1442 = vld [vmem:[%s1410 + $0xf8] sm:$0xff]
        %1443 = vmatpush.msra.mxu0 %v1426
        %1444 = vmatpush.msra.mxu0 %v1425
        %1445 = vmatpush.msra.mxu0 %v1424
        %1446 = vmatpush.msra.mxu0 %v1423
        %1447 = vmatpush.msra.mxu0 %v1422
        %1448 = vmatpush.msra.mxu0 %v1421
        %1449 = vmatpush.msra.mxu0 %v1420
        %1450 = vmatpush.msra.mxu0 %v1419
        %1451 = vmatpush.msra.mxu0 %v1418
        %1452 = vmatpush.msra.mxu0 %v1417
        %1453 = vmatpush.msra.mxu0 %v1416
        %1454 = vmatpush.msra.mxu0 %v1415
        %1455 = vmatpush.msra.mxu0 %v1414
        %1456 = vmatpush.msra.mxu0 %v1413
        %1457 = vmatpush.msra.mxu0 %v1412
        %1458 = vmatpush.msra.mxu0 %v1411
        %1459 = vmatmul.f32.gmra.mxu0 %v1406
        %v1460 = vpop.f32.mrf.mxu0
        %v1461 = vadd.f32 0.0, %v1460
        %1462 = vmatmul.f32.gmra.mxu0 %v1408
        %v1463 = vpop.f32.mrf.mxu0
        %v1464 = vadd.f32 0.0, %v1463
        %1465 = vdwg.mxu0
        %1466 = vmatpush.msra.mxu0 %v1442
        %1467 = vmatpush.msra.mxu0 %v1441
        %1468 = vmatpush.msra.mxu0 %v1440
        %1469 = vmatpush.msra.mxu0 %v1439
        %1470 = vmatpush.msra.mxu0 %v1438
        %1471 = vmatpush.msra.mxu0 %v1437
        %1472 = vmatpush.msra.mxu0 %v1436
        %1473 = vmatpush.msra.mxu0 %v1435
        %1474 = vmatpush.msra.mxu0 %v1434
        %1475 = vmatpush.msra.mxu0 %v1433
        %1476 = vmatpush.msra.mxu0 %v1432
        %1477 = vmatpush.msra.mxu0 %v1431
        %1478 = vmatpush.msra.mxu0 %v1430
        %1479 = vmatpush.msra.mxu0 %v1429
        %1480 = vmatpush.msra.mxu0 %v1428
        %1481 = vmatpush.msra.mxu0 %v1427
        %1482 = vmatmul.f32.gmra.mxu0 %v1407
        %v1483 = vpop.f32.mrf.mxu0
        %v1484 = vadd.f32 %v1461, %v1483
        %1485 = vmatmul.f32.gmra.mxu0 %v1409
        %v1486 = vpop.f32.mrf.mxu0
        %v1487 = vadd.f32 %v1464, %v1486
        %1488 = vdwg.mxu0
        %1491 = vrot.lane.b32.xlu0 %v1484, 16
        %v1492 = vpop.permute.xlu0 %1491
        %1493 = vrot.lane.b32.xlu0 %v1487, 16
        %v1494 = vpop.permute.xlu0 %1493
        %s1497 = scalar_lea.vmem [#allocation2], 192
        %1498 = vst.msk [vmem:[%s1497] sm:$0xff] %vm369, %v1492
        %1499 = vst.msk [vmem:[%s1497 + $0x8] sm:$0xff] %vm369, %v1494
        %v1500 = vld [vmem:[%s1] sm:$0xff]
        %v1501 = vld [vmem:[%s1 + $0x8] sm:$0xff]
        %v1502 = vld [vmem:[%s1 + $0x10] sm:$0xff]
        %v1503 = vld [vmem:[%s1 + $0x18] sm:$0xff]
        %s1504 = scalar_lea.vmem %s222, 3328
        %v1505 = vld [vmem:[%s1504] sm:$0xff]
        %v1506 = vld [vmem:[%s1504 + $0x8] sm:$0xff]
        %v1507 = vld [vmem:[%s1504 + $0x10] sm:$0xff]
        %v1508 = vld [vmem:[%s1504 + $0x18] sm:$0xff]
        %v1509 = vld [vmem:[%s1504 + $0x20] sm:$0xff]
        %v1510 = vld [vmem:[%s1504 + $0x28] sm:$0xff]
        %v1511 = vld [vmem:[%s1504 + $0x30] sm:$0xff]
        %v1512 = vld [vmem:[%s1504 + $0x38] sm:$0xff]
        %v1513 = vld [vmem:[%s1504 + $0x40] sm:$0xff]
        %v1514 = vld [vmem:[%s1504 + $0x48] sm:$0xff]
        %v1515 = vld [vmem:[%s1504 + $0x50] sm:$0xff]
        %v1516 = vld [vmem:[%s1504 + $0x58] sm:$0xff]
        %v1517 = vld [vmem:[%s1504 + $0x60] sm:$0xff]
        %v1518 = vld [vmem:[%s1504 + $0x68] sm:$0xff]
        %v1519 = vld [vmem:[%s1504 + $0x70] sm:$0xff]
        %v1520 = vld [vmem:[%s1504 + $0x78] sm:$0xff]
        %v1521 = vld [vmem:[%s1504 + $0x80] sm:$0xff]
        %v1522 = vld [vmem:[%s1504 + $0x88] sm:$0xff]
        %v1523 = vld [vmem:[%s1504 + $0x90] sm:$0xff]
        %v1524 = vld [vmem:[%s1504 + $0x98] sm:$0xff]
        %v1525 = vld [vmem:[%s1504 + $0xa0] sm:$0xff]
        %v1526 = vld [vmem:[%s1504 + $0xa8] sm:$0xff]
        %v1527 = vld [vmem:[%s1504 + $0xb0] sm:$0xff]
        %v1528 = vld [vmem:[%s1504 + $0xb8] sm:$0xff]
        %v1529 = vld [vmem:[%s1504 + $0xc0] sm:$0xff]
        %v1530 = vld [vmem:[%s1504 + $0xc8] sm:$0xff]
        %v1531 = vld [vmem:[%s1504 + $0xd0] sm:$0xff]
        %v1532 = vld [vmem:[%s1504 + $0xd8] sm:$0xff]
        %v1533 = vld [vmem:[%s1504 + $0xe0] sm:$0xff]
        %v1534 = vld [vmem:[%s1504 + $0xe8] sm:$0xff]
        %v1535 = vld [vmem:[%s1504 + $0xf0] sm:$0xff]
        %v1536 = vld [vmem:[%s1504 + $0xf8] sm:$0xff]
        %1537 = vmatpush.msra.mxu0 %v1520
        %1538 = vmatpush.msra.mxu0 %v1519
        %1539 = vmatpush.msra.mxu0 %v1518
        %1540 = vmatpush.msra.mxu0 %v1517
        %1541 = vmatpush.msra.mxu0 %v1516
        %1542 = vmatpush.msra.mxu0 %v1515
        %1543 = vmatpush.msra.mxu0 %v1514
        %1544 = vmatpush.msra.mxu0 %v1513
        %1545 = vmatpush.msra.mxu0 %v1512
        %1546 = vmatpush.msra.mxu0 %v1511
        %1547 = vmatpush.msra.mxu0 %v1510
        %1548 = vmatpush.msra.mxu0 %v1509
        %1549 = vmatpush.msra.mxu0 %v1508
        %1550 = vmatpush.msra.mxu0 %v1507
        %1551 = vmatpush.msra.mxu0 %v1506
        %1552 = vmatpush.msra.mxu0 %v1505
        %1553 = vmatmul.f32.gmra.mxu0 %v1500
        %v1554 = vpop.f32.mrf.mxu0
        %v1555 = vadd.f32 0.0, %v1554
        %1556 = vmatmul.f32.gmra.mxu0 %v1502
        %v1557 = vpop.f32.mrf.mxu0
        %v1558 = vadd.f32 0.0, %v1557
        %1559 = vdwg.mxu0
        %1560 = vmatpush.msra.mxu0 %v1536
        %1561 = vmatpush.msra.mxu0 %v1535
        %1562 = vmatpush.msra.mxu0 %v1534
        %1563 = vmatpush.msra.mxu0 %v1533
        %1564 = vmatpush.msra.mxu0 %v1532
        %1565 = vmatpush.msra.mxu0 %v1531
        %1566 = vmatpush.msra.mxu0 %v1530
        %1567 = vmatpush.msra.mxu0 %v1529
        %1568 = vmatpush.msra.mxu0 %v1528
        %1569 = vmatpush.msra.mxu0 %v1527
        %1570 = vmatpush.msra.mxu0 %v1526
        %1571 = vmatpush.msra.mxu0 %v1525
        %1572 = vmatpush.msra.mxu0 %v1524
        %1573 = vmatpush.msra.mxu0 %v1523
        %1574 = vmatpush.msra.mxu0 %v1522
        %1575 = vmatpush.msra.mxu0 %v1521
        %1576 = vmatmul.f32.gmra.mxu0 %v1501
        %v1577 = vpop.f32.mrf.mxu0
        %v1578 = vadd.f32 %v1555, %v1577
        %1579 = vmatmul.f32.gmra.mxu0 %v1503
        %v1580 = vpop.f32.mrf.mxu0
        %v1581 = vadd.f32 %v1558, %v1580
        %1582 = vdwg.mxu0
        %1585 = vrot.lane.b32.xlu0 %v1578, 16
        %v1586 = vpop.permute.xlu0 %1585
        %1587 = vrot.lane.b32.xlu0 %v1581, 16
        %v1588 = vpop.permute.xlu0 %1587
        %s1591 = scalar_lea.vmem [#allocation2], 208
        %1592 = vst.msk [vmem:[%s1591] sm:$0xff] %vm369, %v1586
        %1593 = vst.msk [vmem:[%s1591 + $0x8] sm:$0xff] %vm369, %v1588
        %v1594 = vld [vmem:[%s1] sm:$0xff]
        %v1595 = vld [vmem:[%s1 + $0x8] sm:$0xff]
        %v1596 = vld [vmem:[%s1 + $0x10] sm:$0xff]
        %v1597 = vld [vmem:[%s1 + $0x18] sm:$0xff]
        %s1598 = scalar_lea.vmem %s222, 3584
        %v1599 = vld [vmem:[%s1598] sm:$0xff]
        %v1600 = vld [vmem:[%s1598 + $0x8] sm:$0xff]
        %v1601 = vld [vmem:[%s1598 + $0x10] sm:$0xff]
        %v1602 = vld [vmem:[%s1598 + $0x18] sm:$0xff]
        %v1603 = vld [vmem:[%s1598 + $0x20] sm:$0xff]
        %v1604 = vld [vmem:[%s1598 + $0x28] sm:$0xff]
        %v1605 = vld [vmem:[%s1598 + $0x30] sm:$0xff]
        %v1606 = vld [vmem:[%s1598 + $0x38] sm:$0xff]
        %v1607 = vld [vmem:[%s1598 + $0x40] sm:$0xff]
        %v1608 = vld [vmem:[%s1598 + $0x48] sm:$0xff]
        %v1609 = vld [vmem:[%s1598 + $0x50] sm:$0xff]
        %v1610 = vld [vmem:[%s1598 + $0x58] sm:$0xff]
        %v1611 = vld [vmem:[%s1598 + $0x60] sm:$0xff]
        %v1612 = vld [vmem:[%s1598 + $0x68] sm:$0xff]
        %v1613 = vld [vmem:[%s1598 + $0x70] sm:$0xff]
        %v1614 = vld [vmem:[%s1598 + $0x78] sm:$0xff]
        %v1615 = vld [vmem:[%s1598 + $0x80] sm:$0xff]
        %v1616 = vld [vmem:[%s1598 + $0x88] sm:$0xff]
        %v1617 = vld [vmem:[%s1598 + $0x90] sm:$0xff]
        %v1618 = vld [vmem:[%s1598 + $0x98] sm:$0xff]
        %v1619 = vld [vmem:[%s1598 + $0xa0] sm:$0xff]
        %v1620 = vld [vmem:[%s1598 + $0xa8] sm:$0xff]
        %v1621 = vld [vmem:[%s1598 + $0xb0] sm:$0xff]
        %v1622 = vld [vmem:[%s1598 + $0xb8] sm:$0xff]
        %v1623 = vld [vmem:[%s1598 + $0xc0] sm:$0xff]
        %v1624 = vld [vmem:[%s1598 + $0xc8] sm:$0xff]
        %v1625 = vld [vmem:[%s1598 + $0xd0] sm:$0xff]
        %v1626 = vld [vmem:[%s1598 + $0xd8] sm:$0xff]
        %v1627 = vld [vmem:[%s1598 + $0xe0] sm:$0xff]
        %v1628 = vld [vmem:[%s1598 + $0xe8] sm:$0xff]
        %v1629 = vld [vmem:[%s1598 + $0xf0] sm:$0xff]
        %v1630 = vld [vmem:[%s1598 + $0xf8] sm:$0xff]
        %1631 = vmatpush.msra.mxu0 %v1614
        %1632 = vmatpush.msra.mxu0 %v1613
        %1633 = vmatpush.msra.mxu0 %v1612
        %1634 = vmatpush.msra.mxu0 %v1611
        %1635 = vmatpush.msra.mxu0 %v1610
        %1636 = vmatpush.msra.mxu0 %v1609
        %1637 = vmatpush.msra.mxu0 %v1608
        %1638 = vmatpush.msra.mxu0 %v1607
        %1639 = vmatpush.msra.mxu0 %v1606
        %1640 = vmatpush.msra.mxu0 %v1605
        %1641 = vmatpush.msra.mxu0 %v1604
        %1642 = vmatpush.msra.mxu0 %v1603
        %1643 = vmatpush.msra.mxu0 %v1602
        %1644 = vmatpush.msra.mxu0 %v1601
        %1645 = vmatpush.msra.mxu0 %v1600
        %1646 = vmatpush.msra.mxu0 %v1599
        %1647 = vmatmul.f32.gmra.mxu0 %v1594
        %v1648 = vpop.f32.mrf.mxu0
        %v1649 = vadd.f32 0.0, %v1648
        %1650 = vmatmul.f32.gmra.mxu0 %v1596
        %v1651 = vpop.f32.mrf.mxu0
        %v1652 = vadd.f32 0.0, %v1651
        %1653 = vdwg.mxu0
        %1654 = vmatpush.msra.mxu0 %v1630
        %1655 = vmatpush.msra.mxu0 %v1629
        %1656 = vmatpush.msra.mxu0 %v1628
        %1657 = vmatpush.msra.mxu0 %v1627
        %1658 = vmatpush.msra.mxu0 %v1626
        %1659 = vmatpush.msra.mxu0 %v1625
        %1660 = vmatpush.msra.mxu0 %v1624
        %1661 = vmatpush.msra.mxu0 %v1623
        %1662 = vmatpush.msra.mxu0 %v1622
        %1663 = vmatpush.msra.mxu0 %v1621
        %1664 = vmatpush.msra.mxu0 %v1620
        %1665 = vmatpush.msra.mxu0 %v1619
        %1666 = vmatpush.msra.mxu0 %v1618
        %1667 = vmatpush.msra.mxu0 %v1617
        %1668 = vmatpush.msra.mxu0 %v1616
        %1669 = vmatpush.msra.mxu0 %v1615
        %1670 = vmatmul.f32.gmra.mxu0 %v1595
        %v1671 = vpop.f32.mrf.mxu0
        %v1672 = vadd.f32 %v1649, %v1671
        %1673 = vmatmul.f32.gmra.mxu0 %v1597
        %v1674 = vpop.f32.mrf.mxu0
        %v1675 = vadd.f32 %v1652, %v1674
        %1676 = vdwg.mxu0
        %1679 = vrot.lane.b32.xlu0 %v1672, 16
        %v1680 = vpop.permute.xlu0 %1679
        %1681 = vrot.lane.b32.xlu0 %v1675, 16
        %v1682 = vpop.permute.xlu0 %1681
        %s1685 = scalar_lea.vmem [#allocation2], 224
        %1686 = vst.msk [vmem:[%s1685] sm:$0xff] %vm369, %v1680
        %1687 = vst.msk [vmem:[%s1685 + $0x8] sm:$0xff] %vm369, %v1682
        %v1688 = vld [vmem:[%s1] sm:$0xff]
        %v1689 = vld [vmem:[%s1 + $0x8] sm:$0xff]
        %v1690 = vld [vmem:[%s1 + $0x10] sm:$0xff]
        %v1691 = vld [vmem:[%s1 + $0x18] sm:$0xff]
        %s1692 = scalar_lea.vmem %s222, 3840
        %v1693 = vld [vmem:[%s1692] sm:$0xff]
        %v1694 = vld [vmem:[%s1692 + $0x8] sm:$0xff]
        %v1695 = vld [vmem:[%s1692 + $0x10] sm:$0xff]
        %v1696 = vld [vmem:[%s1692 + $0x18] sm:$0xff]
        %v1697 = vld [vmem:[%s1692 + $0x20] sm:$0xff]
        %v1698 = vld [vmem:[%s1692 + $0x28] sm:$0xff]
        %v1699 = vld [vmem:[%s1692 + $0x30] sm:$0xff]
        %v1700 = vld [vmem:[%s1692 + $0x38] sm:$0xff]
        %v1701 = vld [vmem:[%s1692 + $0x40] sm:$0xff]
        %v1702 = vld [vmem:[%s1692 + $0x48] sm:$0xff]
        %v1703 = vld [vmem:[%s1692 + $0x50] sm:$0xff]
        %v1704 = vld [vmem:[%s1692 + $0x58] sm:$0xff]
        %v1705 = vld [vmem:[%s1692 + $0x60] sm:$0xff]
        %v1706 = vld [vmem:[%s1692 + $0x68] sm:$0xff]
        %v1707 = vld [vmem:[%s1692 + $0x70] sm:$0xff]
        %v1708 = vld [vmem:[%s1692 + $0x78] sm:$0xff]
        %v1709 = vld [vmem:[%s1692 + $0x80] sm:$0xff]
        %v1710 = vld [vmem:[%s1692 + $0x88] sm:$0xff]
        %v1711 = vld [vmem:[%s1692 + $0x90] sm:$0xff]
        %v1712 = vld [vmem:[%s1692 + $0x98] sm:$0xff]
        %v1713 = vld [vmem:[%s1692 + $0xa0] sm:$0xff]
        %v1714 = vld [vmem:[%s1692 + $0xa8] sm:$0xff]
        %v1715 = vld [vmem:[%s1692 + $0xb0] sm:$0xff]
        %v1716 = vld [vmem:[%s1692 + $0xb8] sm:$0xff]
        %v1717 = vld [vmem:[%s1692 + $0xc0] sm:$0xff]
        %v1718 = vld [vmem:[%s1692 + $0xc8] sm:$0xff]
        %v1719 = vld [vmem:[%s1692 + $0xd0] sm:$0xff]
        %v1720 = vld [vmem:[%s1692 + $0xd8] sm:$0xff]
        %v1721 = vld [vmem:[%s1692 + $0xe0] sm:$0xff]
        %v1722 = vld [vmem:[%s1692 + $0xe8] sm:$0xff]
        %v1723 = vld [vmem:[%s1692 + $0xf0] sm:$0xff]
        %v1724 = vld [vmem:[%s1692 + $0xf8] sm:$0xff]
        %1725 = vmatpush.msra.mxu0 %v1708
        %1726 = vmatpush.msra.mxu0 %v1707
        %1727 = vmatpush.msra.mxu0 %v1706
        %1728 = vmatpush.msra.mxu0 %v1705
        %1729 = vmatpush.msra.mxu0 %v1704
        %1730 = vmatpush.msra.mxu0 %v1703
        %1731 = vmatpush.msra.mxu0 %v1702
        %1732 = vmatpush.msra.mxu0 %v1701
        %1733 = vmatpush.msra.mxu0 %v1700
        %1734 = vmatpush.msra.mxu0 %v1699
        %1735 = vmatpush.msra.mxu0 %v1698
        %1736 = vmatpush.msra.mxu0 %v1697
        %1737 = vmatpush.msra.mxu0 %v1696
        %1738 = vmatpush.msra.mxu0 %v1695
        %1739 = vmatpush.msra.mxu0 %v1694
        %1740 = vmatpush.msra.mxu0 %v1693
        %1741 = vmatmul.f32.gmra.mxu0 %v1688
        %v1742 = vpop.f32.mrf.mxu0
        %v1743 = vadd.f32 0.0, %v1742
        %1744 = vmatmul.f32.gmra.mxu0 %v1690
        %v1745 = vpop.f32.mrf.mxu0
        %v1746 = vadd.f32 0.0, %v1745
        %1747 = vdwg.mxu0
        %1748 = vmatpush.msra.mxu0 %v1724
        %1749 = vmatpush.msra.mxu0 %v1723
        %1750 = vmatpush.msra.mxu0 %v1722
        %1751 = vmatpush.msra.mxu0 %v1721
        %1752 = vmatpush.msra.mxu0 %v1720
        %1753 = vmatpush.msra.mxu0 %v1719
        %1754 = vmatpush.msra.mxu0 %v1718
        %1755 = vmatpush.msra.mxu0 %v1717
        %1756 = vmatpush.msra.mxu0 %v1716
        %1757 = vmatpush.msra.mxu0 %v1715
        %1758 = vmatpush.msra.mxu0 %v1714
        %1759 = vmatpush.msra.mxu0 %v1713
        %1760 = vmatpush.msra.mxu0 %v1712
        %1761 = vmatpush.msra.mxu0 %v1711
        %1762 = vmatpush.msra.mxu0 %v1710
        %1763 = vmatpush.msra.mxu0 %v1709
        %1764 = vmatmul.f32.gmra.mxu0 %v1689
        %v1765 = vpop.f32.mrf.mxu0
        %v1766 = vadd.f32 %v1743, %v1765
        %1767 = vmatmul.f32.gmra.mxu0 %v1691
        %v1768 = vpop.f32.mrf.mxu0
        %v1769 = vadd.f32 %v1746, %v1768
        %1770 = vdwg.mxu0
        %1773 = vrot.lane.b32.xlu0 %v1766, 16
        %v1774 = vpop.permute.xlu0 %1773
        %1775 = vrot.lane.b32.xlu0 %v1769, 16
        %v1776 = vpop.permute.xlu0 %1775
        %s1779 = scalar_lea.vmem [#allocation2], 240
        %1780 = vst.msk [vmem:[%s1779] sm:$0xff] %vm369, %v1774
        %1781 = vst.msk [vmem:[%s1779 + $0x8] sm:$0xff] %vm369, %v1776
        %v1782 = vlaneseq
        %v1783 = vand.u32 %v1782, 127
        %vm1784 = vcmp.lt.s32.totalorder %v1783, 0
        %v1785 = vsub.s32 0, %v1783
        %v1786 = vsel %vm1784, %v1785, %v1783
        %v1787 = vshrl.u32 %v1786, 3
        %v1788 = vand.u32 %v1786, 7
        %v1789 = vsub.s32 0, %v1788
        %v1790 = vsel %vm1784, %v1789, %v1788
        %vm1791 = vcmp.ne.s32.totalorder %v1790, 0
        %vm1792 = vcmp.lt.s32.totalorder %v1790, 0
        %vm1793 = vmand %vm1792, %vm1791
        %v1794 = vadd.s32 %v1790, 8
        %v1795 = vsel %vm1793, %v1794, %v1790
        %vm1796 = vcmp.ge.s32.totalorder %v1795, 1
        %vm1797 = vcmp.le.s32.totalorder %v1795, 6
        %v1798 = vld [vmem:[#allocation2] sm:$0x1]
        %v1799 = vld [vmem:[#allocation2 + $0x10] sm:$0x1]
        %v1800 = vld [vmem:[#allocation2 + $0x20] sm:$0x1]
        %v1801 = vld [vmem:[#allocation2 + $0x30] sm:$0x1]
        %v1802 = vld [vmem:[#allocation2 + $0x40] sm:$0x1]
        %v1803 = vld [vmem:[#allocation2 + $0x50] sm:$0x1]
        %v1804 = vld [vmem:[#allocation2 + $0x60] sm:$0x1]
        %v1805 = vld [vmem:[#allocation2 + $0x70] sm:$0x1]
        %v1806 = vld [vmem:[#allocation2 + $0x80] sm:$0x1]
        %v1807 = vld [vmem:[#allocation2 + $0x90] sm:$0x1]
        %v1808 = vld [vmem:[#allocation2 + $0xa0] sm:$0x1]
        %v1809 = vld [vmem:[#allocation2 + $0xb0] sm:$0x1]
        %v1810 = vld [vmem:[#allocation2 + $0xc0] sm:$0x1]
        %v1811 = vld [vmem:[#allocation2 + $0xd0] sm:$0x1]
        %v1812 = vld [vmem:[#allocation2 + $0xe0] sm:$0x1]
        %v1813 = vld [vmem:[#allocation2 + $0xf0] sm:$0x1]
        %v1814 = vsel %vm1796, 1, 0
        %vm1815 = vcmp.eq.s32.totalorder %v1814, 1
        %1832 = vrot.lane.b32.xlu0 %v1798, 121
        %v1833 = vpop.permute.xlu0 %1832
        %1834 = vrot.lane.b32.xlu0 %v1799, 121
        %v1835 = vpop.permute.xlu0 %1834
        %1836 = vrot.lane.b32.xlu0 %v1800, 121
        %v1837 = vpop.permute.xlu0 %1836
        %1838 = vrot.lane.b32.xlu0 %v1801, 121
        %v1839 = vpop.permute.xlu0 %1838
        %1840 = vrot.lane.b32.xlu0 %v1802, 121
        %v1841 = vpop.permute.xlu0 %1840
        %1842 = vrot.lane.b32.xlu0 %v1803, 121
        %v1843 = vpop.permute.xlu0 %1842
        %1844 = vrot.lane.b32.xlu0 %v1804, 121
        %v1845 = vpop.permute.xlu0 %1844
        %1846 = vrot.lane.b32.xlu0 %v1805, 121
        %v1847 = vpop.permute.xlu0 %1846
        %1848 = vrot.lane.b32.xlu0 %v1806, 121
        %v1849 = vpop.permute.xlu0 %1848
        %1850 = vrot.lane.b32.xlu0 %v1807, 121
        %v1851 = vpop.permute.xlu0 %1850
        %1852 = vrot.lane.b32.xlu0 %v1808, 121
        %v1853 = vpop.permute.xlu0 %1852
        %1854 = vrot.lane.b32.xlu0 %v1809, 121
        %v1855 = vpop.permute.xlu0 %1854
        %1856 = vrot.lane.b32.xlu0 %v1810, 121
        %v1857 = vpop.permute.xlu0 %1856
        %1858 = vrot.lane.b32.xlu0 %v1811, 121
        %v1859 = vpop.permute.xlu0 %1858
        %1860 = vrot.lane.b32.xlu0 %v1812, 121
        %v1861 = vpop.permute.xlu0 %1860
        %1862 = vrot.lane.b32.xlu0 %v1813, 121
        %v1863 = vpop.permute.xlu0 %1862
        %v1880 = vsel %vm1815, %v1833, 0.0
        %v1881 = vsel %vm1815, %v1835, 0.0
        %v1882 = vsel %vm1815, %v1837, 0.0
        %v1883 = vsel %vm1815, %v1839, 0.0
        %v1884 = vsel %vm1815, %v1841, 0.0
        %v1885 = vsel %vm1815, %v1843, 0.0
        %v1886 = vsel %vm1815, %v1845, 0.0
        %v1887 = vsel %vm1815, %v1847, 0.0
        %v1888 = vsel %vm1815, %v1849, 0.0
        %v1889 = vsel %vm1815, %v1851, 0.0
        %v1890 = vsel %vm1815, %v1853, 0.0
        %v1891 = vsel %vm1815, %v1855, 0.0
        %v1892 = vsel %vm1815, %v1857, 0.0
        %v1893 = vsel %vm1815, %v1859, 0.0
        %v1894 = vsel %vm1815, %v1861, 0.0
        %v1895 = vsel %vm1815, %v1863, 0.0
        %v1896 = vadd.f32 %v1880, 0.0
        %v1897 = vadd.f32 %v1881, 0.0
        %v1898 = vadd.f32 %v1882, 0.0
        %v1899 = vadd.f32 %v1883, 0.0
        %v1900 = vadd.f32 %v1884, 0.0
        %v1901 = vadd.f32 %v1885, 0.0
        %v1902 = vadd.f32 %v1886, 0.0
        %v1903 = vadd.f32 %v1887, 0.0
        %v1904 = vadd.f32 %v1888, 0.0
        %v1905 = vadd.f32 %v1889, 0.0
        %v1906 = vadd.f32 %v1890, 0.0
        %v1907 = vadd.f32 %v1891, 0.0
        %v1908 = vadd.f32 %v1892, 0.0
        %v1909 = vadd.f32 %v1893, 0.0
        %v1910 = vadd.f32 %v1894, 0.0
        %v1911 = vadd.f32 %v1895, 0.0
        %v1912 = vld [vmem:[#allocation2 + $0x1] sm:$0x1]
        %v1913 = vld [vmem:[#allocation2 + $0x11] sm:$0x1]
        %v1914 = vld [vmem:[#allocation2 + $0x21] sm:$0x1]
        %v1915 = vld [vmem:[#allocation2 + $0x31] sm:$0x1]
        %v1916 = vld [vmem:[#allocation2 + $0x41] sm:$0x1]
        %v1917 = vld [vmem:[#allocation2 + $0x51] sm:$0x1]
        %v1918 = vld [vmem:[#allocation2 + $0x61] sm:$0x1]
        %v1919 = vld [vmem:[#allocation2 + $0x71] sm:$0x1]
        %v1920 = vld [vmem:[#allocation2 + $0x81] sm:$0x1]
        %v1921 = vld [vmem:[#allocation2 + $0x91] sm:$0x1]
        %v1922 = vld [vmem:[#allocation2 + $0xa1] sm:$0x1]
        %v1923 = vld [vmem:[#allocation2 + $0xb1] sm:$0x1]
        %v1924 = vld [vmem:[#allocation2 + $0xc1] sm:$0x1]
        %v1925 = vld [vmem:[#allocation2 + $0xd1] sm:$0x1]
        %v1926 = vld [vmem:[#allocation2 + $0xe1] sm:$0x1]
        %v1927 = vld [vmem:[#allocation2 + $0xf1] sm:$0x1]
        %1944 = vrot.lane.b32.xlu0 %v1912, 120
        %v1945 = vpop.permute.xlu0 %1944
        %1946 = vrot.lane.b32.xlu0 %v1913, 120
        %v1947 = vpop.permute.xlu0 %1946
        %1948 = vrot.lane.b32.xlu0 %v1914, 120
        %v1949 = vpop.permute.xlu0 %1948
        %1950 = vrot.lane.b32.xlu0 %v1915, 120
        %v1951 = vpop.permute.xlu0 %1950
        %1952 = vrot.lane.b32.xlu0 %v1916, 120
        %v1953 = vpop.permute.xlu0 %1952
        %1954 = vrot.lane.b32.xlu0 %v1917, 120
        %v1955 = vpop.permute.xlu0 %1954
        %1956 = vrot.lane.b32.xlu0 %v1918, 120
        %v1957 = vpop.permute.xlu0 %1956
        %1958 = vrot.lane.b32.xlu0 %v1919, 120
        %v1959 = vpop.permute.xlu0 %1958
        %1960 = vrot.lane.b32.xlu0 %v1920, 120
        %v1961 = vpop.permute.xlu0 %1960
        %1962 = vrot.lane.b32.xlu0 %v1921, 120
        %v1963 = vpop.permute.xlu0 %1962
        %1964 = vrot.lane.b32.xlu0 %v1922, 120
        %v1965 = vpop.permute.xlu0 %1964
        %1966 = vrot.lane.b32.xlu0 %v1923, 120
        %v1967 = vpop.permute.xlu0 %1966
        %1968 = vrot.lane.b32.xlu0 %v1924, 120
        %v1969 = vpop.permute.xlu0 %1968
        %1970 = vrot.lane.b32.xlu0 %v1925, 120
        %v1971 = vpop.permute.xlu0 %1970
        %1972 = vrot.lane.b32.xlu0 %v1926, 120
        %v1973 = vpop.permute.xlu0 %1972
        %1974 = vrot.lane.b32.xlu0 %v1927, 120
        %v1975 = vpop.permute.xlu0 %1974
        %v1992 = vadd.f32 %v1896, %v1945
        %v1993 = vadd.f32 %v1897, %v1947
        %v1994 = vadd.f32 %v1898, %v1949
        %v1995 = vadd.f32 %v1899, %v1951
        %v1996 = vadd.f32 %v1900, %v1953
        %v1997 = vadd.f32 %v1901, %v1955
        %v1998 = vadd.f32 %v1902, %v1957
        %v1999 = vadd.f32 %v1903, %v1959
        %v2000 = vadd.f32 %v1904, %v1961
        %v2001 = vadd.f32 %v1905, %v1963
        %v2002 = vadd.f32 %v1906, %v1965
        %v2003 = vadd.f32 %v1907, %v1967
        %v2004 = vadd.f32 %v1908, %v1969
        %v2005 = vadd.f32 %v1909, %v1971
        %v2006 = vadd.f32 %v1910, %v1973
        %v2007 = vadd.f32 %v1911, %v1975
        %v2008 = vld [vmem:[#allocation2 + $0x2] sm:$0x1]
        %v2009 = vld [vmem:[#allocation2 + $0x12] sm:$0x1]
        %v2010 = vld [vmem:[#allocation2 + $0x22] sm:$0x1]
        %v2011 = vld [vmem:[#allocation2 + $0x32] sm:$0x1]
        %v2012 = vld [vmem:[#allocation2 + $0x42] sm:$0x1]
        %v2013 = vld [vmem:[#allocation2 + $0x52] sm:$0x1]
        %v2014 = vld [vmem:[#allocation2 + $0x62] sm:$0x1]
        %v2015 = vld [vmem:[#allocation2 + $0x72] sm:$0x1]
        %v2016 = vld [vmem:[#allocation2 + $0x82] sm:$0x1]
        %v2017 = vld [vmem:[#allocation2 + $0x92] sm:$0x1]
        %v2018 = vld [vmem:[#allocation2 + $0xa2] sm:$0x1]
        %v2019 = vld [vmem:[#allocation2 + $0xb2] sm:$0x1]
        %v2020 = vld [vmem:[#allocation2 + $0xc2] sm:$0x1]
        %v2021 = vld [vmem:[#allocation2 + $0xd2] sm:$0x1]
        %v2022 = vld [vmem:[#allocation2 + $0xe2] sm:$0x1]
        %v2023 = vld [vmem:[#allocation2 + $0xf2] sm:$0x1]
        %v2024 = vsel %vm1797, 1, 0
        %vm2025 = vcmp.eq.s32.totalorder %v2024, 1
        %2042 = vrot.lane.b32.xlu0 %v2008, 119
        %v2043 = vpop.permute.xlu0 %2042
        %2044 = vrot.lane.b32.xlu0 %v2009, 119
        %v2045 = vpop.permute.xlu0 %2044
        %2046 = vrot.lane.b32.xlu0 %v2010, 119
        %v2047 = vpop.permute.xlu0 %2046
        %2048 = vrot.lane.b32.xlu0 %v2011, 119
        %v2049 = vpop.permute.xlu0 %2048
        %2050 = vrot.lane.b32.xlu0 %v2012, 119
        %v2051 = vpop.permute.xlu0 %2050
        %2052 = vrot.lane.b32.xlu0 %v2013, 119
        %v2053 = vpop.permute.xlu0 %2052
        %2054 = vrot.lane.b32.xlu0 %v2014, 119
        %v2055 = vpop.permute.xlu0 %2054
        %2056 = vrot.lane.b32.xlu0 %v2015, 119
        %v2057 = vpop.permute.xlu0 %2056
        %2058 = vrot.lane.b32.xlu0 %v2016, 119
        %v2059 = vpop.permute.xlu0 %2058
        %2060 = vrot.lane.b32.xlu0 %v2017, 119
        %v2061 = vpop.permute.xlu0 %2060
        %2062 = vrot.lane.b32.xlu0 %v2018, 119
        %v2063 = vpop.permute.xlu0 %2062
        %2064 = vrot.lane.b32.xlu0 %v2019, 119
        %v2065 = vpop.permute.xlu0 %2064
        %2066 = vrot.lane.b32.xlu0 %v2020, 119
        %v2067 = vpop.permute.xlu0 %2066
        %2068 = vrot.lane.b32.xlu0 %v2021, 119
        %v2069 = vpop.permute.xlu0 %2068
        %2070 = vrot.lane.b32.xlu0 %v2022, 119
        %v2071 = vpop.permute.xlu0 %2070
        %2072 = vrot.lane.b32.xlu0 %v2023, 119
        %v2073 = vpop.permute.xlu0 %2072
        %v2090 = vsel %vm2025, %v2043, 0.0
        %v2091 = vsel %vm2025, %v2045, 0.0
        %v2092 = vsel %vm2025, %v2047, 0.0
        %v2093 = vsel %vm2025, %v2049, 0.0
        %v2094 = vsel %vm2025, %v2051, 0.0
        %v2095 = vsel %vm2025, %v2053, 0.0
        %v2096 = vsel %vm2025, %v2055, 0.0
        %v2097 = vsel %vm2025, %v2057, 0.0
        %v2098 = vsel %vm2025, %v2059, 0.0
        %v2099 = vsel %vm2025, %v2061, 0.0
        %v2100 = vsel %vm2025, %v2063, 0.0
        %v2101 = vsel %vm2025, %v2065, 0.0
        %v2102 = vsel %vm2025, %v2067, 0.0
        %v2103 = vsel %vm2025, %v2069, 0.0
        %v2104 = vsel %vm2025, %v2071, 0.0
        %v2105 = vsel %vm2025, %v2073, 0.0
        %v2106 = vadd.f32 %v1992, %v2090
        %v2107 = vadd.f32 %v1993, %v2091
        %v2108 = vadd.f32 %v1994, %v2092
        %v2109 = vadd.f32 %v1995, %v2093
        %v2110 = vadd.f32 %v1996, %v2094
        %v2111 = vadd.f32 %v1997, %v2095
        %v2112 = vadd.f32 %v1998, %v2096
        %v2113 = vadd.f32 %v1999, %v2097
        %v2114 = vadd.f32 %v2000, %v2098
        %v2115 = vadd.f32 %v2001, %v2099
        %v2116 = vadd.f32 %v2002, %v2100
        %v2117 = vadd.f32 %v2003, %v2101
        %v2118 = vadd.f32 %v2004, %v2102
        %v2119 = vadd.f32 %v2005, %v2103
        %v2120 = vadd.f32 %v2006, %v2104
        %v2121 = vadd.f32 %v2007, %v2105
        %v2122 = vld [vmem:[#allocation2 + $0x3] sm:$0x1]
        %v2123 = vld [vmem:[#allocation2 + $0x13] sm:$0x1]
        %v2124 = vld [vmem:[#allocation2 + $0x23] sm:$0x1]
        %v2125 = vld [vmem:[#allocation2 + $0x33] sm:$0x1]
        %v2126 = vld [vmem:[#allocation2 + $0x43] sm:$0x1]
        %v2127 = vld [vmem:[#allocation2 + $0x53] sm:$0x1]
        %v2128 = vld [vmem:[#allocation2 + $0x63] sm:$0x1]
        %v2129 = vld [vmem:[#allocation2 + $0x73] sm:$0x1]
        %v2130 = vld [vmem:[#allocation2 + $0x83] sm:$0x1]
        %v2131 = vld [vmem:[#allocation2 + $0x93] sm:$0x1]
        %v2132 = vld [vmem:[#allocation2 + $0xa3] sm:$0x1]
        %v2133 = vld [vmem:[#allocation2 + $0xb3] sm:$0x1]
        %v2134 = vld [vmem:[#allocation2 + $0xc3] sm:$0x1]
        %v2135 = vld [vmem:[#allocation2 + $0xd3] sm:$0x1]
        %v2136 = vld [vmem:[#allocation2 + $0xe3] sm:$0x1]
        %v2137 = vld [vmem:[#allocation2 + $0xf3] sm:$0x1]
        %2154 = vrot.lane.b32.xlu0 %v2122, 113
        %v2155 = vpop.permute.xlu0 %2154
        %2156 = vrot.lane.b32.xlu0 %v2123, 113
        %v2157 = vpop.permute.xlu0 %2156
        %2158 = vrot.lane.b32.xlu0 %v2124, 113
        %v2159 = vpop.permute.xlu0 %2158
        %2160 = vrot.lane.b32.xlu0 %v2125, 113
        %v2161 = vpop.permute.xlu0 %2160
        %2162 = vrot.lane.b32.xlu0 %v2126, 113
        %v2163 = vpop.permute.xlu0 %2162
        %2164 = vrot.lane.b32.xlu0 %v2127, 113
        %v2165 = vpop.permute.xlu0 %2164
        %2166 = vrot.lane.b32.xlu0 %v2128, 113
        %v2167 = vpop.permute.xlu0 %2166
        %2168 = vrot.lane.b32.xlu0 %v2129, 113
        %v2169 = vpop.permute.xlu0 %2168
        %2170 = vrot.lane.b32.xlu0 %v2130, 113
        %v2171 = vpop.permute.xlu0 %2170
        %2172 = vrot.lane.b32.xlu0 %v2131, 113
        %v2173 = vpop.permute.xlu0 %2172
        %2174 = vrot.lane.b32.xlu0 %v2132, 113
        %v2175 = vpop.permute.xlu0 %2174
        %2176 = vrot.lane.b32.xlu0 %v2133, 113
        %v2177 = vpop.permute.xlu0 %2176
        %2178 = vrot.lane.b32.xlu0 %v2134, 113
        %v2179 = vpop.permute.xlu0 %2178
        %2180 = vrot.lane.b32.xlu0 %v2135, 113
        %v2181 = vpop.permute.xlu0 %2180
        %2182 = vrot.lane.b32.xlu0 %v2136, 113
        %v2183 = vpop.permute.xlu0 %2182
        %2184 = vrot.lane.b32.xlu0 %v2137, 113
        %v2185 = vpop.permute.xlu0 %2184
        %v2202 = vsel %vm1815, %v2155, 0.0
        %v2203 = vsel %vm1815, %v2157, 0.0
        %v2204 = vsel %vm1815, %v2159, 0.0
        %v2205 = vsel %vm1815, %v2161, 0.0
        %v2206 = vsel %vm1815, %v2163, 0.0
        %v2207 = vsel %vm1815, %v2165, 0.0
        %v2208 = vsel %vm1815, %v2167, 0.0
        %v2209 = vsel %vm1815, %v2169, 0.0
        %v2210 = vsel %vm1815, %v2171, 0.0
        %v2211 = vsel %vm1815, %v2173, 0.0
        %v2212 = vsel %vm1815, %v2175, 0.0
        %v2213 = vsel %vm1815, %v2177, 0.0
        %v2214 = vsel %vm1815, %v2179, 0.0
        %v2215 = vsel %vm1815, %v2181, 0.0
        %v2216 = vsel %vm1815, %v2183, 0.0
        %v2217 = vsel %vm1815, %v2185, 0.0
        %v2218 = vadd.f32 %v2106, %v2202
        %v2219 = vadd.f32 %v2107, %v2203
        %v2220 = vadd.f32 %v2108, %v2204
        %v2221 = vadd.f32 %v2109, %v2205
        %v2222 = vadd.f32 %v2110, %v2206
        %v2223 = vadd.f32 %v2111, %v2207
        %v2224 = vadd.f32 %v2112, %v2208
        %v2225 = vadd.f32 %v2113, %v2209
        %v2226 = vadd.f32 %v2114, %v2210
        %v2227 = vadd.f32 %v2115, %v2211
        %v2228 = vadd.f32 %v2116, %v2212
        %v2229 = vadd.f32 %v2117, %v2213
        %v2230 = vadd.f32 %v2118, %v2214
        %v2231 = vadd.f32 %v2119, %v2215
        %v2232 = vadd.f32 %v2120, %v2216
        %v2233 = vadd.f32 %v2121, %v2217
        %v2234 = vld [vmem:[#allocation2 + $0x4] sm:$0x1]
        %v2235 = vld [vmem:[#allocation2 + $0x14] sm:$0x1]
        %v2236 = vld [vmem:[#allocation2 + $0x24] sm:$0x1]
        %v2237 = vld [vmem:[#allocation2 + $0x34] sm:$0x1]
        %v2238 = vld [vmem:[#allocation2 + $0x44] sm:$0x1]
        %v2239 = vld [vmem:[#allocation2 + $0x54] sm:$0x1]
        %v2240 = vld [vmem:[#allocation2 + $0x64] sm:$0x1]
        %v2241 = vld [vmem:[#allocation2 + $0x74] sm:$0x1]
        %v2242 = vld [vmem:[#allocation2 + $0x84] sm:$0x1]
        %v2243 = vld [vmem:[#allocation2 + $0x94] sm:$0x1]
        %v2244 = vld [vmem:[#allocation2 + $0xa4] sm:$0x1]
        %v2245 = vld [vmem:[#allocation2 + $0xb4] sm:$0x1]
        %v2246 = vld [vmem:[#allocation2 + $0xc4] sm:$0x1]
        %v2247 = vld [vmem:[#allocation2 + $0xd4] sm:$0x1]
        %v2248 = vld [vmem:[#allocation2 + $0xe4] sm:$0x1]
        %v2249 = vld [vmem:[#allocation2 + $0xf4] sm:$0x1]
        %2266 = vrot.lane.b32.xlu0 %v2234, 112
        %v2267 = vpop.permute.xlu0 %2266
        %2268 = vrot.lane.b32.xlu0 %v2235, 112
        %v2269 = vpop.permute.xlu0 %2268
        %2270 = vrot.lane.b32.xlu0 %v2236, 112
        %v2271 = vpop.permute.xlu0 %2270
        %2272 = vrot.lane.b32.xlu0 %v2237, 112
        %v2273 = vpop.permute.xlu0 %2272
        %2274 = vrot.lane.b32.xlu0 %v2238, 112
        %v2275 = vpop.permute.xlu0 %2274
        %2276 = vrot.lane.b32.xlu0 %v2239, 112
        %v2277 = vpop.permute.xlu0 %2276
        %2278 = vrot.lane.b32.xlu0 %v2240, 112
        %v2279 = vpop.permute.xlu0 %2278
        %2280 = vrot.lane.b32.xlu0 %v2241, 112
        %v2281 = vpop.permute.xlu0 %2280
        %2282 = vrot.lane.b32.xlu0 %v2242, 112
        %v2283 = vpop.permute.xlu0 %2282
        %2284 = vrot.lane.b32.xlu0 %v2243, 112
        %v2285 = vpop.permute.xlu0 %2284
        %2286 = vrot.lane.b32.xlu0 %v2244, 112
        %v2287 = vpop.permute.xlu0 %2286
        %2288 = vrot.lane.b32.xlu0 %v2245, 112
        %v2289 = vpop.permute.xlu0 %2288
        %2290 = vrot.lane.b32.xlu0 %v2246, 112
        %v2291 = vpop.permute.xlu0 %2290
        %2292 = vrot.lane.b32.xlu0 %v2247, 112
        %v2293 = vpop.permute.xlu0 %2292
        %2294 = vrot.lane.b32.xlu0 %v2248, 112
        %v2295 = vpop.permute.xlu0 %2294
        %2296 = vrot.lane.b32.xlu0 %v2249, 112
        %v2297 = vpop.permute.xlu0 %2296
        %v2314 = vadd.f32 %v2218, %v2267
        %v2315 = vadd.f32 %v2219, %v2269
        %v2316 = vadd.f32 %v2220, %v2271
        %v2317 = vadd.f32 %v2221, %v2273
        %v2318 = vadd.f32 %v2222, %v2275
        %v2319 = vadd.f32 %v2223, %v2277
        %v2320 = vadd.f32 %v2224, %v2279
        %v2321 = vadd.f32 %v2225, %v2281
        %v2322 = vadd.f32 %v2226, %v2283
        %v2323 = vadd.f32 %v2227, %v2285
        %v2324 = vadd.f32 %v2228, %v2287
        %v2325 = vadd.f32 %v2229, %v2289
        %v2326 = vadd.f32 %v2230, %v2291
        %v2327 = vadd.f32 %v2231, %v2293
        %v2328 = vadd.f32 %v2232, %v2295
        %v2329 = vadd.f32 %v2233, %v2297
        %v2330 = vld [vmem:[#allocation2 + $0x5] sm:$0x1]
        %v2331 = vld [vmem:[#allocation2 + $0x15] sm:$0x1]
        %v2332 = vld [vmem:[#allocation2 + $0x25] sm:$0x1]
        %v2333 = vld [vmem:[#allocation2 + $0x35] sm:$0x1]
        %v2334 = vld [vmem:[#allocation2 + $0x45] sm:$0x1]
        %v2335 = vld [vmem:[#allocation2 + $0x55] sm:$0x1]
        %v2336 = vld [vmem:[#allocation2 + $0x65] sm:$0x1]
        %v2337 = vld [vmem:[#allocation2 + $0x75] sm:$0x1]
        %v2338 = vld [vmem:[#allocation2 + $0x85] sm:$0x1]
        %v2339 = vld [vmem:[#allocation2 + $0x95] sm:$0x1]
        %v2340 = vld [vmem:[#allocation2 + $0xa5] sm:$0x1]
        %v2341 = vld [vmem:[#allocation2 + $0xb5] sm:$0x1]
        %v2342 = vld [vmem:[#allocation2 + $0xc5] sm:$0x1]
        %v2343 = vld [vmem:[#allocation2 + $0xd5] sm:$0x1]
        %v2344 = vld [vmem:[#allocation2 + $0xe5] sm:$0x1]
        %v2345 = vld [vmem:[#allocation2 + $0xf5] sm:$0x1]
        %2362 = vrot.lane.b32.xlu0 %v2330, 111
        %v2363 = vpop.permute.xlu0 %2362
        %2364 = vrot.lane.b32.xlu0 %v2331, 111
        %v2365 = vpop.permute.xlu0 %2364
        %2366 = vrot.lane.b32.xlu0 %v2332, 111
        %v2367 = vpop.permute.xlu0 %2366
        %2368 = vrot.lane.b32.xlu0 %v2333, 111
        %v2369 = vpop.permute.xlu0 %2368
        %2370 = vrot.lane.b32.xlu0 %v2334, 111
        %v2371 = vpop.permute.xlu0 %2370
        %2372 = vrot.lane.b32.xlu0 %v2335, 111
        %v2373 = vpop.permute.xlu0 %2372
        %2374 = vrot.lane.b32.xlu0 %v2336, 111
        %v2375 = vpop.permute.xlu0 %2374
        %2376 = vrot.lane.b32.xlu0 %v2337, 111
        %v2377 = vpop.permute.xlu0 %2376
        %2378 = vrot.lane.b32.xlu0 %v2338, 111
        %v2379 = vpop.permute.xlu0 %2378
        %2380 = vrot.lane.b32.xlu0 %v2339, 111
        %v2381 = vpop.permute.xlu0 %2380
        %2382 = vrot.lane.b32.xlu0 %v2340, 111
        %v2383 = vpop.permute.xlu0 %2382
        %2384 = vrot.lane.b32.xlu0 %v2341, 111
        %v2385 = vpop.permute.xlu0 %2384
        %2386 = vrot.lane.b32.xlu0 %v2342, 111
        %v2387 = vpop.permute.xlu0 %2386
        %2388 = vrot.lane.b32.xlu0 %v2343, 111
        %v2389 = vpop.permute.xlu0 %2388
        %2390 = vrot.lane.b32.xlu0 %v2344, 111
        %v2391 = vpop.permute.xlu0 %2390
        %2392 = vrot.lane.b32.xlu0 %v2345, 111
        %v2393 = vpop.permute.xlu0 %2392
        %v2410 = vsel %vm2025, %v2363, 0.0
        %v2411 = vsel %vm2025, %v2365, 0.0
        %v2412 = vsel %vm2025, %v2367, 0.0
        %v2413 = vsel %vm2025, %v2369, 0.0
        %v2414 = vsel %vm2025, %v2371, 0.0
        %v2415 = vsel %vm2025, %v2373, 0.0
        %v2416 = vsel %vm2025, %v2375, 0.0
        %v2417 = vsel %vm2025, %v2377, 0.0
        %v2418 = vsel %vm2025, %v2379, 0.0
        %v2419 = vsel %vm2025, %v2381, 0.0
        %v2420 = vsel %vm2025, %v2383, 0.0
        %v2421 = vsel %vm2025, %v2385, 0.0
        %v2422 = vsel %vm2025, %v2387, 0.0
        %v2423 = vsel %vm2025, %v2389, 0.0
        %v2424 = vsel %vm2025, %v2391, 0.0
        %v2425 = vsel %vm2025, %v2393, 0.0
        %v2426 = vadd.f32 %v2314, %v2410
        %v2427 = vadd.f32 %v2315, %v2411
        %v2428 = vadd.f32 %v2316, %v2412
        %v2429 = vadd.f32 %v2317, %v2413
        %v2430 = vadd.f32 %v2318, %v2414
        %v2431 = vadd.f32 %v2319, %v2415
        %v2432 = vadd.f32 %v2320, %v2416
        %v2433 = vadd.f32 %v2321, %v2417
        %v2434 = vadd.f32 %v2322, %v2418
        %v2435 = vadd.f32 %v2323, %v2419
        %v2436 = vadd.f32 %v2324, %v2420
        %v2437 = vadd.f32 %v2325, %v2421
        %v2438 = vadd.f32 %v2326, %v2422
        %v2439 = vadd.f32 %v2327, %v2423
        %v2440 = vadd.f32 %v2328, %v2424
        %v2441 = vadd.f32 %v2329, %v2425
        %v2442 = vld [vmem:[#allocation2 + $0x6] sm:$0x1]
        %v2443 = vld [vmem:[#allocation2 + $0x16] sm:$0x1]
        %v2444 = vld [vmem:[#allocation2 + $0x26] sm:$0x1]
        %v2445 = vld [vmem:[#allocation2 + $0x36] sm:$0x1]
        %v2446 = vld [vmem:[#allocation2 + $0x46] sm:$0x1]
        %v2447 = vld [vmem:[#allocation2 + $0x56] sm:$0x1]
        %v2448 = vld [vmem:[#allocation2 + $0x66] sm:$0x1]
        %v2449 = vld [vmem:[#allocation2 + $0x76] sm:$0x1]
        %v2450 = vld [vmem:[#allocation2 + $0x86] sm:$0x1]
        %v2451 = vld [vmem:[#allocation2 + $0x96] sm:$0x1]
        %v2452 = vld [vmem:[#allocation2 + $0xa6] sm:$0x1]
        %v2453 = vld [vmem:[#allocation2 + $0xb6] sm:$0x1]
        %v2454 = vld [vmem:[#allocation2 + $0xc6] sm:$0x1]
        %v2455 = vld [vmem:[#allocation2 + $0xd6] sm:$0x1]
        %v2456 = vld [vmem:[#allocation2 + $0xe6] sm:$0x1]
        %v2457 = vld [vmem:[#allocation2 + $0xf6] sm:$0x1]
        %2474 = vrot.lane.b32.xlu0 %v2442, 105
        %v2475 = vpop.permute.xlu0 %2474
        %2476 = vrot.lane.b32.xlu0 %v2443, 105
        %v2477 = vpop.permute.xlu0 %2476
        %2478 = vrot.lane.b32.xlu0 %v2444, 105
        %v2479 = vpop.permute.xlu0 %2478
        %2480 = vrot.lane.b32.xlu0 %v2445, 105
        %v2481 = vpop.permute.xlu0 %2480
        %2482 = vrot.lane.b32.xlu0 %v2446, 105
        %v2483 = vpop.permute.xlu0 %2482
        %2484 = vrot.lane.b32.xlu0 %v2447, 105
        %v2485 = vpop.permute.xlu0 %2484
        %2486 = vrot.lane.b32.xlu0 %v2448, 105
        %v2487 = vpop.permute.xlu0 %2486
        %2488 = vrot.lane.b32.xlu0 %v2449, 105
        %v2489 = vpop.permute.xlu0 %2488
        %2490 = vrot.lane.b32.xlu0 %v2450, 105
        %v2491 = vpop.permute.xlu0 %2490
        %2492 = vrot.lane.b32.xlu0 %v2451, 105
        %v2493 = vpop.permute.xlu0 %2492
        %2494 = vrot.lane.b32.xlu0 %v2452, 105
        %v2495 = vpop.permute.xlu0 %2494
        %2496 = vrot.lane.b32.xlu0 %v2453, 105
        %v2497 = vpop.permute.xlu0 %2496
        %2498 = vrot.lane.b32.xlu0 %v2454, 105
        %v2499 = vpop.permute.xlu0 %2498
        %2500 = vrot.lane.b32.xlu0 %v2455, 105
        %v2501 = vpop.permute.xlu0 %2500
        %2502 = vrot.lane.b32.xlu0 %v2456, 105
        %v2503 = vpop.permute.xlu0 %2502
        %2504 = vrot.lane.b32.xlu0 %v2457, 105
        %v2505 = vpop.permute.xlu0 %2504
        %v2522 = vsel %vm1815, %v2475, 0.0
        %v2523 = vsel %vm1815, %v2477, 0.0
        %v2524 = vsel %vm1815, %v2479, 0.0
        %v2525 = vsel %vm1815, %v2481, 0.0
        %v2526 = vsel %vm1815, %v2483, 0.0
        %v2527 = vsel %vm1815, %v2485, 0.0
        %v2528 = vsel %vm1815, %v2487, 0.0
        %v2529 = vsel %vm1815, %v2489, 0.0
        %v2530 = vsel %vm1815, %v2491, 0.0
        %v2531 = vsel %vm1815, %v2493, 0.0
        %v2532 = vsel %vm1815, %v2495, 0.0
        %v2533 = vsel %vm1815, %v2497, 0.0
        %v2534 = vsel %vm1815, %v2499, 0.0
        %v2535 = vsel %vm1815, %v2501, 0.0
        %v2536 = vsel %vm1815, %v2503, 0.0
        %v2537 = vsel %vm1815, %v2505, 0.0
        %v2538 = vadd.f32 %v2426, %v2522
        %v2539 = vadd.f32 %v2427, %v2523
        %v2540 = vadd.f32 %v2428, %v2524
        %v2541 = vadd.f32 %v2429, %v2525
        %v2542 = vadd.f32 %v2430, %v2526
        %v2543 = vadd.f32 %v2431, %v2527
        %v2544 = vadd.f32 %v2432, %v2528
        %v2545 = vadd.f32 %v2433, %v2529
        %v2546 = vadd.f32 %v2434, %v2530
        %v2547 = vadd.f32 %v2435, %v2531
        %v2548 = vadd.f32 %v2436, %v2532
        %v2549 = vadd.f32 %v2437, %v2533
        %v2550 = vadd.f32 %v2438, %v2534
        %v2551 = vadd.f32 %v2439, %v2535
        %v2552 = vadd.f32 %v2440, %v2536
        %v2553 = vadd.f32 %v2441, %v2537
        %v2554 = vld [vmem:[#allocation2 + $0x7] sm:$0x1]
        %v2555 = vld [vmem:[#allocation2 + $0x17] sm:$0x1]
        %v2556 = vld [vmem:[#allocation2 + $0x27] sm:$0x1]
        %v2557 = vld [vmem:[#allocation2 + $0x37] sm:$0x1]
        %v2558 = vld [vmem:[#allocation2 + $0x47] sm:$0x1]
        %v2559 = vld [vmem:[#allocation2 + $0x57] sm:$0x1]
        %v2560 = vld [vmem:[#allocation2 + $0x67] sm:$0x1]
        %v2561 = vld [vmem:[#allocation2 + $0x77] sm:$0x1]
        %v2562 = vld [vmem:[#allocation2 + $0x87] sm:$0x1]
        %v2563 = vld [vmem:[#allocation2 + $0x97] sm:$0x1]
        %v2564 = vld [vmem:[#allocation2 + $0xa7] sm:$0x1]
        %v2565 = vld [vmem:[#allocation2 + $0xb7] sm:$0x1]
        %v2566 = vld [vmem:[#allocation2 + $0xc7] sm:$0x1]
        %v2567 = vld [vmem:[#allocation2 + $0xd7] sm:$0x1]
        %v2568 = vld [vmem:[#allocation2 + $0xe7] sm:$0x1]
        %v2569 = vld [vmem:[#allocation2 + $0xf7] sm:$0x1]
        %2586 = vrot.lane.b32.xlu0 %v2554, 104
        %v2587 = vpop.permute.xlu0 %2586
        %2588 = vrot.lane.b32.xlu0 %v2555, 104
        %v2589 = vpop.permute.xlu0 %2588
        %2590 = vrot.lane.b32.xlu0 %v2556, 104
        %v2591 = vpop.permute.xlu0 %2590
        %2592 = vrot.lane.b32.xlu0 %v2557, 104
        %v2593 = vpop.permute.xlu0 %2592
        %2594 = vrot.lane.b32.xlu0 %v2558, 104
        %v2595 = vpop.permute.xlu0 %2594
        %2596 = vrot.lane.b32.xlu0 %v2559, 104
        %v2597 = vpop.permute.xlu0 %2596
        %2598 = vrot.lane.b32.xlu0 %v2560, 104
        %v2599 = vpop.permute.xlu0 %2598
        %2600 = vrot.lane.b32.xlu0 %v2561, 104
        %v2601 = vpop.permute.xlu0 %2600
        %2602 = vrot.lane.b32.xlu0 %v2562, 104
        %v2603 = vpop.permute.xlu0 %2602
        %2604 = vrot.lane.b32.xlu0 %v2563, 104
        %v2605 = vpop.permute.xlu0 %2604
        %2606 = vrot.lane.b32.xlu0 %v2564, 104
        %v2607 = vpop.permute.xlu0 %2606
        %2608 = vrot.lane.b32.xlu0 %v2565, 104
        %v2609 = vpop.permute.xlu0 %2608
        %2610 = vrot.lane.b32.xlu0 %v2566, 104
        %v2611 = vpop.permute.xlu0 %2610
        %2612 = vrot.lane.b32.xlu0 %v2567, 104
        %v2613 = vpop.permute.xlu0 %2612
        %2614 = vrot.lane.b32.xlu0 %v2568, 104
        %v2615 = vpop.permute.xlu0 %2614
        %2616 = vrot.lane.b32.xlu0 %v2569, 104
        %v2617 = vpop.permute.xlu0 %2616
        %v2634 = vadd.f32 %v2538, %v2587
        %v2635 = vadd.f32 %v2539, %v2589
        %v2636 = vadd.f32 %v2540, %v2591
        %v2637 = vadd.f32 %v2541, %v2593
        %v2638 = vadd.f32 %v2542, %v2595
        %v2639 = vadd.f32 %v2543, %v2597
        %v2640 = vadd.f32 %v2544, %v2599
        %v2641 = vadd.f32 %v2545, %v2601
        %v2642 = vadd.f32 %v2546, %v2603
        %v2643 = vadd.f32 %v2547, %v2605
        %v2644 = vadd.f32 %v2548, %v2607
        %v2645 = vadd.f32 %v2549, %v2609
        %v2646 = vadd.f32 %v2550, %v2611
        %v2647 = vadd.f32 %v2551, %v2613
        %v2648 = vadd.f32 %v2552, %v2615
        %v2649 = vadd.f32 %v2553, %v2617
        %v2650 = vld [vmem:[#allocation2 + $0x8] sm:$0x1]
        %v2651 = vld [vmem:[#allocation2 + $0x18] sm:$0x1]
        %v2652 = vld [vmem:[#allocation2 + $0x28] sm:$0x1]
        %v2653 = vld [vmem:[#allocation2 + $0x38] sm:$0x1]
        %v2654 = vld [vmem:[#allocation2 + $0x48] sm:$0x1]
        %v2655 = vld [vmem:[#allocation2 + $0x58] sm:$0x1]
        %v2656 = vld [vmem:[#allocation2 + $0x68] sm:$0x1]
        %v2657 = vld [vmem:[#allocation2 + $0x78] sm:$0x1]
        %v2658 = vld [vmem:[#allocation2 + $0x88] sm:$0x1]
        %v2659 = vld [vmem:[#allocation2 + $0x98] sm:$0x1]
        %v2660 = vld [vmem:[#allocation2 + $0xa8] sm:$0x1]
        %v2661 = vld [vmem:[#allocation2 + $0xb8] sm:$0x1]
        %v2662 = vld [vmem:[#allocation2 + $0xc8] sm:$0x1]
        %v2663 = vld [vmem:[#allocation2 + $0xd8] sm:$0x1]
        %v2664 = vld [vmem:[#allocation2 + $0xe8] sm:$0x1]
        %v2665 = vld [vmem:[#allocation2 + $0xf8] sm:$0x1]
        %2682 = vrot.lane.b32.xlu0 %v2650, 103
        %v2683 = vpop.permute.xlu0 %2682
        %2684 = vrot.lane.b32.xlu0 %v2651, 103
        %v2685 = vpop.permute.xlu0 %2684
        %2686 = vrot.lane.b32.xlu0 %v2652, 103
        %v2687 = vpop.permute.xlu0 %2686
        %2688 = vrot.lane.b32.xlu0 %v2653, 103
        %v2689 = vpop.permute.xlu0 %2688
        %2690 = vrot.lane.b32.xlu0 %v2654, 103
        %v2691 = vpop.permute.xlu0 %2690
        %2692 = vrot.lane.b32.xlu0 %v2655, 103
        %v2693 = vpop.permute.xlu0 %2692
        %2694 = vrot.lane.b32.xlu0 %v2656, 103
        %v2695 = vpop.permute.xlu0 %2694
        %2696 = vrot.lane.b32.xlu0 %v2657, 103
        %v2697 = vpop.permute.xlu0 %2696
        %2698 = vrot.lane.b32.xlu0 %v2658, 103
        %v2699 = vpop.permute.xlu0 %2698
        %2700 = vrot.lane.b32.xlu0 %v2659, 103
        %v2701 = vpop.permute.xlu0 %2700
        %2702 = vrot.lane.b32.xlu0 %v2660, 103
        %v2703 = vpop.permute.xlu0 %2702
        %2704 = vrot.lane.b32.xlu0 %v2661, 103
        %v2705 = vpop.permute.xlu0 %2704
        %2706 = vrot.lane.b32.xlu0 %v2662, 103
        %v2707 = vpop.permute.xlu0 %2706
        %2708 = vrot.lane.b32.xlu0 %v2663, 103
        %v2709 = vpop.permute.xlu0 %2708
        %2710 = vrot.lane.b32.xlu0 %v2664, 103
        %v2711 = vpop.permute.xlu0 %2710
        %2712 = vrot.lane.b32.xlu0 %v2665, 103
        %v2713 = vpop.permute.xlu0 %2712
        %v2730 = vsel %vm2025, %v2683, 0.0
        %v2731 = vsel %vm2025, %v2685, 0.0
        %v2732 = vsel %vm2025, %v2687, 0.0
        %v2733 = vsel %vm2025, %v2689, 0.0
        %v2734 = vsel %vm2025, %v2691, 0.0
        %v2735 = vsel %vm2025, %v2693, 0.0
        %v2736 = vsel %vm2025, %v2695, 0.0
        %v2737 = vsel %vm2025, %v2697, 0.0
        %v2738 = vsel %vm2025, %v2699, 0.0
        %v2739 = vsel %vm2025, %v2701, 0.0
        %v2740 = vsel %vm2025, %v2703, 0.0
        %v2741 = vsel %vm2025, %v2705, 0.0
        %v2742 = vsel %vm2025, %v2707, 0.0
        %v2743 = vsel %vm2025, %v2709, 0.0
        %v2744 = vsel %vm2025, %v2711, 0.0
        %v2745 = vsel %vm2025, %v2713, 0.0
        %v2746 = vadd.f32 %v2634, %v2730
        %v2747 = vadd.f32 %v2635, %v2731
        %v2748 = vadd.f32 %v2636, %v2732
        %v2749 = vadd.f32 %v2637, %v2733
        %v2750 = vadd.f32 %v2638, %v2734
        %v2751 = vadd.f32 %v2639, %v2735
        %v2752 = vadd.f32 %v2640, %v2736
        %v2753 = vadd.f32 %v2641, %v2737
        %v2754 = vadd.f32 %v2642, %v2738
        %v2755 = vadd.f32 %v2643, %v2739
        %v2756 = vadd.f32 %v2644, %v2740
        %v2757 = vadd.f32 %v2645, %v2741
        %v2758 = vadd.f32 %v2646, %v2742
        %v2759 = vadd.f32 %v2647, %v2743
        %v2760 = vadd.f32 %v2648, %v2744
        %v2761 = vadd.f32 %v2649, %v2745
        %s2762 = sld [smem:[#allocation6]]
        %v2763 = vstv %s2762
        %v2764 = vadd.f32 %v2746, %v2763
        %v2765 = vadd.f32 %v2747, %v2763
        %v2766 = vadd.f32 %v2748, %v2763
        %v2767 = vadd.f32 %v2749, %v2763
        %v2768 = vadd.f32 %v2750, %v2763
        %v2769 = vadd.f32 %v2751, %v2763
        %v2770 = vadd.f32 %v2752, %v2763
        %v2771 = vadd.f32 %v2753, %v2763
        %v2772 = vadd.f32 %v2754, %v2763
        %v2773 = vadd.f32 %v2755, %v2763
        %v2774 = vadd.f32 %v2756, %v2763
        %v2775 = vadd.f32 %v2757, %v2763
        %v2776 = vadd.f32 %v2758, %v2763
        %v2777 = vadd.f32 %v2759, %v2763
        %v2778 = vadd.f32 %v2760, %v2763
        %v2779 = vadd.f32 %v2761, %v2763
        %vm2780 = vcmask 516096
        %v2781 = vsel %vm2780, %v2764, 0.0
        %2782 = vadd.xlane.f32.xlu0 %v2781
        %v2783 = vpop.xlane.xlu0 %2782
        %v2784 = vsel %vm2780, %v2765, 0.0
        %2785 = vadd.xlane.f32.xlu0 %v2784
        %v2786 = vpop.xlane.xlu0 %2785
        %v2787 = vsel %vm2780, %v2766, 0.0
        %2788 = vadd.xlane.f32.xlu0 %v2787
        %v2789 = vpop.xlane.xlu0 %2788
        %v2790 = vsel %vm2780, %v2767, 0.0
        %2791 = vadd.xlane.f32.xlu0 %v2790
        %v2792 = vpop.xlane.xlu0 %2791
        %v2793 = vsel %vm2780, %v2768, 0.0
        %2794 = vadd.xlane.f32.xlu0 %v2793
        %v2795 = vpop.xlane.xlu0 %2794
        %v2796 = vsel %vm2780, %v2769, 0.0
        %2797 = vadd.xlane.f32.xlu0 %v2796
        %v2798 = vpop.xlane.xlu0 %2797
        %v2799 = vsel %vm2780, %v2770, 0.0
        %2800 = vadd.xlane.f32.xlu0 %v2799
        %v2801 = vpop.xlane.xlu0 %2800
        %v2802 = vsel %vm2780, %v2771, 0.0
        %2803 = vadd.xlane.f32.xlu0 %v2802
        %v2804 = vpop.xlane.xlu0 %2803
        %v2805 = vsel %vm2780, %v2772, 0.0
        %2806 = vadd.xlane.f32.xlu0 %v2805
        %v2807 = vpop.xlane.xlu0 %2806
        %v2808 = vsel %vm2780, %v2773, 0.0
        %2809 = vadd.xlane.f32.xlu0 %v2808
        %v2810 = vpop.xlane.xlu0 %2809
        %v2811 = vsel %vm2780, %v2774, 0.0
        %2812 = vadd.xlane.f32.xlu0 %v2811
        %v2813 = vpop.xlane.xlu0 %2812
        %v2814 = vsel %vm2780, %v2775, 0.0
        %2815 = vadd.xlane.f32.xlu0 %v2814
        %v2816 = vpop.xlane.xlu0 %2815
        %v2817 = vsel %vm2780, %v2776, 0.0
        %2818 = vadd.xlane.f32.xlu0 %v2817
        %v2819 = vpop.xlane.xlu0 %2818
        %v2820 = vsel %vm2780, %v2777, 0.0
        %2821 = vadd.xlane.f32.xlu0 %v2820
        %v2822 = vpop.xlane.xlu0 %2821
        %v2823 = vsel %vm2780, %v2778, 0.0
        %2824 = vadd.xlane.f32.xlu0 %v2823
        %v2825 = vpop.xlane.xlu0 %2824
        %v2826 = vsel %vm2780, %v2779, 0.0
        %2827 = vadd.xlane.f32.xlu0 %v2826
        %v2828 = vpop.xlane.xlu0 %2827
        %v2829 = vrcp.pop 64.0
        %v2830 = vmul.f32 64.0, %v2829
        %v2831 = vsub.f32 1.0, %v2830
        %v2832 = vmul.f32 %v2829, %v2831
        %v2833 = vadd.f32 %v2829, %v2832
        %vm2834 = vweird.f32 %v2829
        %v2835 = vsel %vm2834, %v2829, %v2833
        %v2836 = vmul.f32 %v2783, %v2835
        %v2837 = vmul.f32 %v2786, %v2835
        %v2838 = vmul.f32 %v2789, %v2835
        %v2839 = vmul.f32 %v2792, %v2835
        %v2840 = vmul.f32 %v2795, %v2835
        %v2841 = vmul.f32 %v2798, %v2835
        %v2842 = vmul.f32 %v2801, %v2835
        %v2843 = vmul.f32 %v2804, %v2835
        %v2844 = vmul.f32 %v2807, %v2835
        %v2845 = vmul.f32 %v2810, %v2835
        %v2846 = vmul.f32 %v2813, %v2835
        %v2847 = vmul.f32 %v2816, %v2835
        %v2848 = vmul.f32 %v2819, %v2835
        %v2849 = vmul.f32 %v2822, %v2835
        %v2850 = vmul.f32 %v2825, %v2835
        %v2851 = vmul.f32 %v2828, %v2835
        %v2852 = vsub.f32 %v2764, %v2836
        %v2853 = vsub.f32 %v2765, %v2837
        %v2854 = vsub.f32 %v2766, %v2838
        %v2855 = vsub.f32 %v2767, %v2839
        %v2856 = vsub.f32 %v2768, %v2840
        %v2857 = vsub.f32 %v2769, %v2841
        %v2858 = vsub.f32 %v2770, %v2842
        %v2859 = vsub.f32 %v2771, %v2843
        %v2860 = vsub.f32 %v2772, %v2844
        %v2861 = vsub.f32 %v2773, %v2845
        %v2862 = vsub.f32 %v2774, %v2846
        %v2863 = vsub.f32 %v2775, %v2847
        %v2864 = vsub.f32 %v2776, %v2848
        %v2865 = vsub.f32 %v2777, %v2849
        %v2866 = vsub.f32 %v2778, %v2850
        %v2867 = vsub.f32 %v2779, %v2851
        %v2868 = vmul.f32 %v2852, %v2852
        %v2869 = vmul.f32 %v2853, %v2853
        %v2870 = vmul.f32 %v2854, %v2854
        %v2871 = vmul.f32 %v2855, %v2855
        %v2872 = vmul.f32 %v2856, %v2856
        %v2873 = vmul.f32 %v2857, %v2857
        %v2874 = vmul.f32 %v2858, %v2858
        %v2875 = vmul.f32 %v2859, %v2859
        %v2876 = vmul.f32 %v2860, %v2860
        %v2877 = vmul.f32 %v2861, %v2861
        %v2878 = vmul.f32 %v2862, %v2862
        %v2879 = vmul.f32 %v2863, %v2863
        %v2880 = vmul.f32 %v2864, %v2864
        %v2881 = vmul.f32 %v2865, %v2865
        %v2882 = vmul.f32 %v2866, %v2866
        %v2883 = vmul.f32 %v2867, %v2867
        %v2884 = vsel %vm2780, %v2868, 0.0
        %2885 = vadd.xlane.f32.xlu0 %v2884
        %v2886 = vpop.xlane.xlu0 %2885
        %v2887 = vsel %vm2780, %v2869, 0.0
        %2888 = vadd.xlane.f32.xlu0 %v2887
        %v2889 = vpop.xlane.xlu0 %2888
        %v2890 = vsel %vm2780, %v2870, 0.0
        %2891 = vadd.xlane.f32.xlu0 %v2890
        %v2892 = vpop.xlane.xlu0 %2891
        %v2893 = vsel %vm2780, %v2871, 0.0
        %2894 = vadd.xlane.f32.xlu0 %v2893
        %v2895 = vpop.xlane.xlu0 %2894
        %v2896 = vsel %vm2780, %v2872, 0.0
        %2897 = vadd.xlane.f32.xlu0 %v2896
        %v2898 = vpop.xlane.xlu0 %2897
        %v2899 = vsel %vm2780, %v2873, 0.0
        %2900 = vadd.xlane.f32.xlu0 %v2899
        %v2901 = vpop.xlane.xlu0 %2900
        %v2902 = vsel %vm2780, %v2874, 0.0
        %2903 = vadd.xlane.f32.xlu0 %v2902
        %v2904 = vpop.xlane.xlu0 %2903
        %v2905 = vsel %vm2780, %v2875, 0.0
        %2906 = vadd.xlane.f32.xlu0 %v2905
        %v2907 = vpop.xlane.xlu0 %2906
        %v2908 = vsel %vm2780, %v2876, 0.0
        %2909 = vadd.xlane.f32.xlu0 %v2908
        %v2910 = vpop.xlane.xlu0 %2909
        %v2911 = vsel %vm2780, %v2877, 0.0
        %2912 = vadd.xlane.f32.xlu0 %v2911
        %v2913 = vpop.xlane.xlu0 %2912
        %v2914 = vsel %vm2780, %v2878, 0.0
        %2915 = vadd.xlane.f32.xlu0 %v2914
        %v2916 = vpop.xlane.xlu0 %2915
        %v2917 = vsel %vm2780, %v2879, 0.0
        %2918 = vadd.xlane.f32.xlu0 %v2917
        %v2919 = vpop.xlane.xlu0 %2918
        %v2920 = vsel %vm2780, %v2880, 0.0
        %2921 = vadd.xlane.f32.xlu0 %v2920
        %v2922 = vpop.xlane.xlu0 %2921
        %v2923 = vsel %vm2780, %v2881, 0.0
        %2924 = vadd.xlane.f32.xlu0 %v2923
        %v2925 = vpop.xlane.xlu0 %2924
        %v2926 = vsel %vm2780, %v2882, 0.0
        %2927 = vadd.xlane.f32.xlu0 %v2926
        %v2928 = vpop.xlane.xlu0 %2927
        %v2929 = vsel %vm2780, %v2883, 0.0
        %2930 = vadd.xlane.f32.xlu0 %v2929
        %v2931 = vpop.xlane.xlu0 %2930
        %v2932 = vmul.f32 %v2886, %v2835
        %v2933 = vmul.f32 %v2889, %v2835
        %v2934 = vmul.f32 %v2892, %v2835
        %v2935 = vmul.f32 %v2895, %v2835
        %v2936 = vmul.f32 %v2898, %v2835
        %v2937 = vmul.f32 %v2901, %v2835
        %v2938 = vmul.f32 %v2904, %v2835
        %v2939 = vmul.f32 %v2907, %v2835
        %v2940 = vmul.f32 %v2910, %v2835
        %v2941 = vmul.f32 %v2913, %v2835
        %v2942 = vmul.f32 %v2916, %v2835
        %v2943 = vmul.f32 %v2919, %v2835
        %v2944 = vmul.f32 %v2922, %v2835
        %v2945 = vmul.f32 %v2925, %v2835
        %v2946 = vmul.f32 %v2928, %v2835
        %v2947 = vmul.f32 %v2931, %v2835
        %v2948 = vadd.f32 %v2932, 1e-05
        %v2949 = vadd.f32 %v2933, 1e-05
        %v2950 = vadd.f32 %v2934, 1e-05
        %v2951 = vadd.f32 %v2935, 1e-05
        %v2952 = vadd.f32 %v2936, 1e-05
        %v2953 = vadd.f32 %v2937, 1e-05
        %v2954 = vadd.f32 %v2938, 1e-05
        %v2955 = vadd.f32 %v2939, 1e-05
        %v2956 = vadd.f32 %v2940, 1e-05
        %v2957 = vadd.f32 %v2941, 1e-05
        %v2958 = vadd.f32 %v2942, 1e-05
        %v2959 = vadd.f32 %v2943, 1e-05
        %v2960 = vadd.f32 %v2944, 1e-05
        %v2961 = vadd.f32 %v2945, 1e-05
        %v2962 = vadd.f32 %v2946, 1e-05
        %v2963 = vadd.f32 %v2947, 1e-05
        %v2964 = vrsqrt.pop %v2948
        %v2965 = vmul.f32 %v2964, %v2948
        %v2966 = vmul.f32 %v2965, %v2964
        %v2967 = vmul.f32 0.5, %v2966
        %v2968 = vsub.f32 1.5, %v2967
        %v2969 = vmul.f32 %v2964, %v2968
        %vm2970 = vweird.f32 %v2948
        %vm2971 = vweird.f32 %v2964
        %vm2972 = vmor %vm2970, %vm2971
        %v2973 = vsel %vm2972, %v2964, %v2969
        %v2974 = vrsqrt.pop %v2949
        %v2975 = vmul.f32 %v2974, %v2949
        %v2976 = vmul.f32 %v2975, %v2974
        %v2977 = vmul.f32 0.5, %v2976
        %v2978 = vsub.f32 1.5, %v2977
        %v2979 = vmul.f32 %v2974, %v2978
        %vm2980 = vweird.f32 %v2949
        %vm2981 = vweird.f32 %v2974
        %vm2982 = vmor %vm2980, %vm2981
        %v2983 = vsel %vm2982, %v2974, %v2979
        %v2984 = vrsqrt.pop %v2950
        %v2985 = vmul.f32 %v2984, %v2950
        %v2986 = vmul.f32 %v2985, %v2984
        %v2987 = vmul.f32 0.5, %v2986
        %v2988 = vsub.f32 1.5, %v2987
        %v2989 = vmul.f32 %v2984, %v2988
        %vm2990 = vweird.f32 %v2950
        %vm2991 = vweird.f32 %v2984
        %vm2992 = vmor %vm2990, %vm2991
        %v2993 = vsel %vm2992, %v2984, %v2989
        %v2994 = vrsqrt.pop %v2951
        %v2995 = vmul.f32 %v2994, %v2951
        %v2996 = vmul.f32 %v2995, %v2994
        %v2997 = vmul.f32 0.5, %v2996
        %v2998 = vsub.f32 1.5, %v2997
        %v2999 = vmul.f32 %v2994, %v2998
        %vm3000 = vweird.f32 %v2951
        %vm3001 = vweird.f32 %v2994
        %vm3002 = vmor %vm3000, %vm3001
        %v3003 = vsel %vm3002, %v2994, %v2999
        %v3004 = vrsqrt.pop %v2952
        %v3005 = vmul.f32 %v3004, %v2952
        %v3006 = vmul.f32 %v3005, %v3004
        %v3007 = vmul.f32 0.5, %v3006
        %v3008 = vsub.f32 1.5, %v3007
        %v3009 = vmul.f32 %v3004, %v3008
        %vm3010 = vweird.f32 %v2952
        %vm3011 = vweird.f32 %v3004
        %vm3012 = vmor %vm3010, %vm3011
        %v3013 = vsel %vm3012, %v3004, %v3009
        %v3014 = vrsqrt.pop %v2953
        %v3015 = vmul.f32 %v3014, %v2953
        %v3016 = vmul.f32 %v3015, %v3014
        %v3017 = vmul.f32 0.5, %v3016
        %v3018 = vsub.f32 1.5, %v3017
        %v3019 = vmul.f32 %v3014, %v3018
        %vm3020 = vweird.f32 %v2953
        %vm3021 = vweird.f32 %v3014
        %vm3022 = vmor %vm3020, %vm3021
        %v3023 = vsel %vm3022, %v3014, %v3019
        %v3024 = vrsqrt.pop %v2954
        %v3025 = vmul.f32 %v3024, %v2954
        %v3026 = vmul.f32 %v3025, %v3024
        %v3027 = vmul.f32 0.5, %v3026
        %v3028 = vsub.f32 1.5, %v3027
        %v3029 = vmul.f32 %v3024, %v3028
        %vm3030 = vweird.f32 %v2954
        %vm3031 = vweird.f32 %v3024
        %vm3032 = vmor %vm3030, %vm3031
        %v3033 = vsel %vm3032, %v3024, %v3029
        %v3034 = vrsqrt.pop %v2955
        %v3035 = vmul.f32 %v3034, %v2955
        %v3036 = vmul.f32 %v3035, %v3034
        %v3037 = vmul.f32 0.5, %v3036
        %v3038 = vsub.f32 1.5, %v3037
        %v3039 = vmul.f32 %v3034, %v3038
        %vm3040 = vweird.f32 %v2955
        %vm3041 = vweird.f32 %v3034
        %vm3042 = vmor %vm3040, %vm3041
        %v3043 = vsel %vm3042, %v3034, %v3039
        %v3044 = vrsqrt.pop %v2956
        %v3045 = vmul.f32 %v3044, %v2956
        %v3046 = vmul.f32 %v3045, %v3044
        %v3047 = vmul.f32 0.5, %v3046
        %v3048 = vsub.f32 1.5, %v3047
        %v3049 = vmul.f32 %v3044, %v3048
        %vm3050 = vweird.f32 %v2956
        %vm3051 = vweird.f32 %v3044
        %vm3052 = vmor %vm3050, %vm3051
        %v3053 = vsel %vm3052, %v3044, %v3049
        %v3054 = vrsqrt.pop %v2957
        %v3055 = vmul.f32 %v3054, %v2957
        %v3056 = vmul.f32 %v3055, %v3054
        %v3057 = vmul.f32 0.5, %v3056
        %v3058 = vsub.f32 1.5, %v3057
        %v3059 = vmul.f32 %v3054, %v3058
        %vm3060 = vweird.f32 %v2957
        %vm3061 = vweird.f32 %v3054
        %vm3062 = vmor %vm3060, %vm3061
        %v3063 = vsel %vm3062, %v3054, %v3059
        %v3064 = vrsqrt.pop %v2958
        %v3065 = vmul.f32 %v3064, %v2958
        %v3066 = vmul.f32 %v3065, %v3064
        %v3067 = vmul.f32 0.5, %v3066
        %v3068 = vsub.f32 1.5, %v3067
        %v3069 = vmul.f32 %v3064, %v3068
        %vm3070 = vweird.f32 %v2958
        %vm3071 = vweird.f32 %v3064
        %vm3072 = vmor %vm3070, %vm3071
        %v3073 = vsel %vm3072, %v3064, %v3069
        %v3074 = vrsqrt.pop %v2959
        %v3075 = vmul.f32 %v3074, %v2959
        %v3076 = vmul.f32 %v3075, %v3074
        %v3077 = vmul.f32 0.5, %v3076
        %v3078 = vsub.f32 1.5, %v3077
        %v3079 = vmul.f32 %v3074, %v3078
        %vm3080 = vweird.f32 %v2959
        %vm3081 = vweird.f32 %v3074
        %vm3082 = vmor %vm3080, %vm3081
        %v3083 = vsel %vm3082, %v3074, %v3079
        %v3084 = vrsqrt.pop %v2960
        %v3085 = vmul.f32 %v3084, %v2960
        %v3086 = vmul.f32 %v3085, %v3084
        %v3087 = vmul.f32 0.5, %v3086
        %v3088 = vsub.f32 1.5, %v3087
        %v3089 = vmul.f32 %v3084, %v3088
        %vm3090 = vweird.f32 %v2960
        %vm3091 = vweird.f32 %v3084
        %vm3092 = vmor %vm3090, %vm3091
        %v3093 = vsel %vm3092, %v3084, %v3089
        %v3094 = vrsqrt.pop %v2961
        %v3095 = vmul.f32 %v3094, %v2961
        %v3096 = vmul.f32 %v3095, %v3094
        %v3097 = vmul.f32 0.5, %v3096
        %v3098 = vsub.f32 1.5, %v3097
        %v3099 = vmul.f32 %v3094, %v3098
        %vm3100 = vweird.f32 %v2961
        %vm3101 = vweird.f32 %v3094
        %vm3102 = vmor %vm3100, %vm3101
        %v3103 = vsel %vm3102, %v3094, %v3099
        %v3104 = vrsqrt.pop %v2962
        %v3105 = vmul.f32 %v3104, %v2962
        %v3106 = vmul.f32 %v3105, %v3104
        %v3107 = vmul.f32 0.5, %v3106
        %v3108 = vsub.f32 1.5, %v3107
        %v3109 = vmul.f32 %v3104, %v3108
        %vm3110 = vweird.f32 %v2962
        %vm3111 = vweird.f32 %v3104
        %vm3112 = vmor %vm3110, %vm3111
        %v3113 = vsel %vm3112, %v3104, %v3109
        %v3114 = vrsqrt.pop %v2963
        %v3115 = vmul.f32 %v3114, %v2963
        %v3116 = vmul.f32 %v3115, %v3114
        %v3117 = vmul.f32 0.5, %v3116
        %v3118 = vsub.f32 1.5, %v3117
        %v3119 = vmul.f32 %v3114, %v3118
        %vm3120 = vweird.f32 %v2963
        %vm3121 = vweird.f32 %v3114
        %vm3122 = vmor %vm3120, %vm3121
        %v3123 = vsel %vm3122, %v3114, %v3119
        %v3124 = vmul.f32 %v2852, %v2973
        %v3125 = vmul.f32 %v2853, %v2983
        %v3126 = vmul.f32 %v2854, %v2993
        %v3127 = vmul.f32 %v2855, %v3003
        %v3128 = vmul.f32 %v2856, %v3013
        %v3129 = vmul.f32 %v2857, %v3023
        %v3130 = vmul.f32 %v2858, %v3033
        %v3131 = vmul.f32 %v2859, %v3043
        %v3132 = vmul.f32 %v2860, %v3053
        %v3133 = vmul.f32 %v2861, %v3063
        %v3134 = vmul.f32 %v2862, %v3073
        %v3135 = vmul.f32 %v2863, %v3083
        %v3136 = vmul.f32 %v2864, %v3093
        %v3137 = vmul.f32 %v2865, %v3103
        %v3138 = vmul.f32 %v2866, %v3113
        %v3139 = vmul.f32 %v2867, %v3123
        %v3140 = vmax.f32 %v3124, 0.0
        %v3141 = vmax.f32 %v3125, 0.0
        %v3142 = vmax.f32 %v3126, 0.0
        %v3143 = vmax.f32 %v3127, 0.0
        %v3144 = vmax.f32 %v3128, 0.0
        %v3145 = vmax.f32 %v3129, 0.0
        %v3146 = vmax.f32 %v3130, 0.0
        %v3147 = vmax.f32 %v3131, 0.0
        %v3148 = vmax.f32 %v3132, 0.0
        %v3149 = vmax.f32 %v3133, 0.0
        %v3150 = vmax.f32 %v3134, 0.0
        %v3151 = vmax.f32 %v3135, 0.0
        %v3152 = vmax.f32 %v3136, 0.0
        %v3153 = vmax.f32 %v3137, 0.0
        %v3154 = vmax.f32 %v3138, 0.0
        %v3155 = vmax.f32 %v3139, 0.0
        %3172 = vrot.lane.b32.xlu0 %v3140, 16
        %v3173 = vpop.permute.xlu0 %3172
        %3174 = vrot.lane.b32.xlu0 %v3141, 16
        %v3175 = vpop.permute.xlu0 %3174
        %3176 = vrot.lane.b32.xlu0 %v3142, 16
        %v3177 = vpop.permute.xlu0 %3176
        %3178 = vrot.lane.b32.xlu0 %v3143, 16
        %v3179 = vpop.permute.xlu0 %3178
        %3180 = vrot.lane.b32.xlu0 %v3144, 16
        %v3181 = vpop.permute.xlu0 %3180
        %3182 = vrot.lane.b32.xlu0 %v3145, 16
        %v3183 = vpop.permute.xlu0 %3182
        %3184 = vrot.lane.b32.xlu0 %v3146, 16
        %v3185 = vpop.permute.xlu0 %3184
        %3186 = vrot.lane.b32.xlu0 %v3147, 16
        %v3187 = vpop.permute.xlu0 %3186
        %3188 = vrot.lane.b32.xlu0 %v3148, 16
        %v3189 = vpop.permute.xlu0 %3188
        %3190 = vrot.lane.b32.xlu0 %v3149, 16
        %v3191 = vpop.permute.xlu0 %3190
        %3192 = vrot.lane.b32.xlu0 %v3150, 16
        %v3193 = vpop.permute.xlu0 %3192
        %3194 = vrot.lane.b32.xlu0 %v3151, 16
        %v3195 = vpop.permute.xlu0 %3194
        %3196 = vrot.lane.b32.xlu0 %v3152, 16
        %v3197 = vpop.permute.xlu0 %3196
        %3198 = vrot.lane.b32.xlu0 %v3153, 16
        %v3199 = vpop.permute.xlu0 %3198
        %3200 = vrot.lane.b32.xlu0 %v3154, 16
        %v3201 = vpop.permute.xlu0 %3200
        %3202 = vrot.lane.b32.xlu0 %v3155, 16
        %v3203 = vpop.permute.xlu0 %3202
        %vm3220 = vcmask 647296
        %3221 = vst.msk [vmem:[#allocation3] sm:$0x1] %vm3220, %v3173
        %3222 = vst.msk [vmem:[#allocation3 + $0x1] sm:$0x1] %vm3220, %v3175
        %3223 = vst.msk [vmem:[#allocation3 + $0x2] sm:$0x1] %vm3220, %v3177
        %3224 = vst.msk [vmem:[#allocation3 + $0x3] sm:$0x1] %vm3220, %v3179
        %3225 = vst.msk [vmem:[#allocation3 + $0x4] sm:$0x1] %vm3220, %v3181
        %3226 = vst.msk [vmem:[#allocation3 + $0x5] sm:$0x1] %vm3220, %v3183
        %3227 = vst.msk [vmem:[#allocation3 + $0x6] sm:$0x1] %vm3220, %v3185
        %3228 = vst.msk [vmem:[#allocation3 + $0x7] sm:$0x1] %vm3220, %v3187
        %3229 = vst.msk [vmem:[#allocation3 + $0x8] sm:$0x1] %vm3220, %v3189
        %3230 = vst.msk [vmem:[#allocation3 + $0x9] sm:$0x1] %vm3220, %v3191
        %3231 = vst.msk [vmem:[#allocation3 + $0xa] sm:$0x1] %vm3220, %v3193
        %3232 = vst.msk [vmem:[#allocation3 + $0xb] sm:$0x1] %vm3220, %v3195
        %3233 = vst.msk [vmem:[#allocation3 + $0xc] sm:$0x1] %vm3220, %v3197
        %3234 = vst.msk [vmem:[#allocation3 + $0xd] sm:$0x1] %vm3220, %v3199
        %3235 = vst.msk [vmem:[#allocation3 + $0xe] sm:$0x1] %vm3220, %v3201
        %3236 = vst.msk [vmem:[#allocation3 + $0xf] sm:$0x1] %vm3220, %v3203
        %v3237 = vld [vmem:[#allocation3] sm:$0x1]
        %v3238 = vld [vmem:[#allocation3 + $0x1] sm:$0x1]
        %v3239 = vld [vmem:[#allocation3 + $0x2] sm:$0x1]
        %v3240 = vld [vmem:[#allocation3 + $0x3] sm:$0x1]
        %v3241 = vld [vmem:[#allocation3 + $0x4] sm:$0x1]
        %v3242 = vld [vmem:[#allocation3 + $0x5] sm:$0x1]
        %v3243 = vld [vmem:[#allocation3 + $0x6] sm:$0x1]
        %v3244 = vld [vmem:[#allocation3 + $0x7] sm:$0x1]
        %v3245 = vld [vmem:[#allocation3 + $0x8] sm:$0x1]
        %v3246 = vld [vmem:[#allocation3 + $0x9] sm:$0x1]
        %v3247 = vld [vmem:[#allocation3 + $0xa] sm:$0x1]
        %v3248 = vld [vmem:[#allocation3 + $0xb] sm:$0x1]
        %v3249 = vld [vmem:[#allocation3 + $0xc] sm:$0x1]
        %v3250 = vld [vmem:[#allocation3 + $0xd] sm:$0x1]
        %v3251 = vld [vmem:[#allocation3 + $0xe] sm:$0x1]
        %v3252 = vld [vmem:[#allocation3 + $0xf] sm:$0x1]
        %s3253 = sld [smem:[#allocation4]]
        %v3270 = vperm.slane %v3237, 0
        %v3271 = vperm.slane %v3238, 0
        %v3272 = vperm.slane %v3239, 0
        %v3273 = vperm.slane %v3240, 0
        %v3274 = vperm.slane %v3241, 0
        %v3275 = vperm.slane %v3242, 0
        %v3276 = vperm.slane %v3243, 0
        %v3277 = vperm.slane %v3244, 0
        %v3278 = vperm.slane %v3245, 0
        %v3279 = vperm.slane %v3246, 0
        %v3280 = vperm.slane %v3247, 0
        %v3281 = vperm.slane %v3248, 0
        %v3282 = vperm.slane %v3249, 0
        %v3283 = vperm.slane %v3250, 0
        %v3284 = vperm.slane %v3251, 0
        %v3285 = vperm.slane %v3252, 0
        %3286 = vrot.lane.b32.xlu0 %v3270, 121
        %v3287 = vpop.permute.xlu0 %3286
        %3288 = vrot.lane.b32.xlu0 %v3271, 121
        %v3289 = vpop.permute.xlu0 %3288
        %3290 = vrot.lane.b32.xlu0 %v3272, 121
        %v3291 = vpop.permute.xlu0 %3290
        %3292 = vrot.lane.b32.xlu0 %v3273, 121
        %v3293 = vpop.permute.xlu0 %3292
        %3294 = vrot.lane.b32.xlu0 %v3274, 121
        %v3295 = vpop.permute.xlu0 %3294
        %3296 = vrot.lane.b32.xlu0 %v3275, 121
        %v3297 = vpop.permute.xlu0 %3296
        %3298 = vrot.lane.b32.xlu0 %v3276, 121
        %v3299 = vpop.permute.xlu0 %3298
        %3300 = vrot.lane.b32.xlu0 %v3277, 121
        %v3301 = vpop.permute.xlu0 %3300
        %3302 = vrot.lane.b32.xlu0 %v3278, 121
        %v3303 = vpop.permute.xlu0 %3302
        %3304 = vrot.lane.b32.xlu0 %v3279, 121
        %v3305 = vpop.permute.xlu0 %3304
        %3306 = vrot.lane.b32.xlu0 %v3280, 121
        %v3307 = vpop.permute.xlu0 %3306
        %3308 = vrot.lane.b32.xlu0 %v3281, 121
        %v3309 = vpop.permute.xlu0 %3308
        %3310 = vrot.lane.b32.xlu0 %v3282, 121
        %v3311 = vpop.permute.xlu0 %3310
        %3312 = vrot.lane.b32.xlu0 %v3283, 121
        %v3313 = vpop.permute.xlu0 %3312
        %3314 = vrot.lane.b32.xlu0 %v3284, 121
        %v3315 = vpop.permute.xlu0 %3314
        %3316 = vrot.lane.b32.xlu0 %v3285, 121
        %v3317 = vpop.permute.xlu0 %3316
        %v3334 = vsel %vm1815, %v3287, 0.0
        %v3335 = vsel %vm1815, %v3289, 0.0
        %v3336 = vsel %vm1815, %v3291, 0.0
        %v3337 = vsel %vm1815, %v3293, 0.0
        %v3338 = vsel %vm1815, %v3295, 0.0
        %v3339 = vsel %vm1815, %v3297, 0.0
        %v3340 = vsel %vm1815, %v3299, 0.0
        %v3341 = vsel %vm1815, %v3301, 0.0
        %v3342 = vsel %vm1815, %v3303, 0.0
        %v3343 = vsel %vm1815, %v3305, 0.0
        %v3344 = vsel %vm1815, %v3307, 0.0
        %v3345 = vsel %vm1815, %v3309, 0.0
        %v3346 = vsel %vm1815, %v3311, 0.0
        %v3347 = vsel %vm1815, %v3313, 0.0
        %v3348 = vsel %vm1815, %v3315, 0.0
        %v3349 = vsel %vm1815, %v3317, 0.0
        %v3350 = vstv %s3253
        %v3351 = vmul.f32 %v3350, %v3334
        %v3352 = vmul.f32 %v3350, %v3335
        %v3353 = vmul.f32 %v3350, %v3336
        %v3354 = vmul.f32 %v3350, %v3337
        %v3355 = vmul.f32 %v3350, %v3338
        %v3356 = vmul.f32 %v3350, %v3339
        %v3357 = vmul.f32 %v3350, %v3340
        %v3358 = vmul.f32 %v3350, %v3341
        %v3359 = vmul.f32 %v3350, %v3342
        %v3360 = vmul.f32 %v3350, %v3343
        %v3361 = vmul.f32 %v3350, %v3344
        %v3362 = vmul.f32 %v3350, %v3345
        %v3363 = vmul.f32 %v3350, %v3346
        %v3364 = vmul.f32 %v3350, %v3347
        %v3365 = vmul.f32 %v3350, %v3348
        %v3366 = vmul.f32 %v3350, %v3349
        %v3367 = vadd.f32 %v3351, 0.0
        %v3368 = vadd.f32 %v3352, 0.0
        %v3369 = vadd.f32 %v3353, 0.0
        %v3370 = vadd.f32 %v3354, 0.0
        %v3371 = vadd.f32 %v3355, 0.0
        %v3372 = vadd.f32 %v3356, 0.0
        %v3373 = vadd.f32 %v3357, 0.0
        %v3374 = vadd.f32 %v3358, 0.0
        %v3375 = vadd.f32 %v3359, 0.0
        %v3376 = vadd.f32 %v3360, 0.0
        %v3377 = vadd.f32 %v3361, 0.0
        %v3378 = vadd.f32 %v3362, 0.0
        %v3379 = vadd.f32 %v3363, 0.0
        %v3380 = vadd.f32 %v3364, 0.0
        %v3381 = vadd.f32 %v3365, 0.0
        %v3382 = vadd.f32 %v3366, 0.0
        %s3383 = sld [smem:[#allocation4 + $0x1]]
        %v3384 = vstv %s3383
        %v3385 = vmul.f32 %v3384, %v3237
        %v3386 = vmul.f32 %v3384, %v3238
        %v3387 = vmul.f32 %v3384, %v3239
        %v3388 = vmul.f32 %v3384, %v3240
        %v3389 = vmul.f32 %v3384, %v3241
        %v3390 = vmul.f32 %v3384, %v3242
        %v3391 = vmul.f32 %v3384, %v3243
        %v3392 = vmul.f32 %v3384, %v3244
        %v3393 = vmul.f32 %v3384, %v3245
        %v3394 = vmul.f32 %v3384, %v3246
        %v3395 = vmul.f32 %v3384, %v3247
        %v3396 = vmul.f32 %v3384, %v3248
        %v3397 = vmul.f32 %v3384, %v3249
        %v3398 = vmul.f32 %v3384, %v3250
        %v3399 = vmul.f32 %v3384, %v3251
        %v3400 = vmul.f32 %v3384, %v3252
        %v3417 = vperm.slane %v3385, 0
        %v3418 = vperm.slane %v3386, 0
        %v3419 = vperm.slane %v3387, 0
        %v3420 = vperm.slane %v3388, 0
        %v3421 = vperm.slane %v3389, 0
        %v3422 = vperm.slane %v3390, 0
        %v3423 = vperm.slane %v3391, 0
        %v3424 = vperm.slane %v3392, 0
        %v3425 = vperm.slane %v3393, 0
        %v3426 = vperm.slane %v3394, 0
        %v3427 = vperm.slane %v3395, 0
        %v3428 = vperm.slane %v3396, 0
        %v3429 = vperm.slane %v3397, 0
        %v3430 = vperm.slane %v3398, 0
        %v3431 = vperm.slane %v3399, 0
        %v3432 = vperm.slane %v3400, 0
        %3433 = vrot.lane.b32.xlu0 %v3417, 120
        %v3434 = vpop.permute.xlu0 %3433
        %3435 = vrot.lane.b32.xlu0 %v3418, 120
        %v3436 = vpop.permute.xlu0 %3435
        %3437 = vrot.lane.b32.xlu0 %v3419, 120
        %v3438 = vpop.permute.xlu0 %3437
        %3439 = vrot.lane.b32.xlu0 %v3420, 120
        %v3440 = vpop.permute.xlu0 %3439
        %3441 = vrot.lane.b32.xlu0 %v3421, 120
        %v3442 = vpop.permute.xlu0 %3441
        %3443 = vrot.lane.b32.xlu0 %v3422, 120
        %v3444 = vpop.permute.xlu0 %3443
        %3445 = vrot.lane.b32.xlu0 %v3423, 120
        %v3446 = vpop.permute.xlu0 %3445
        %3447 = vrot.lane.b32.xlu0 %v3424, 120
        %v3448 = vpop.permute.xlu0 %3447
        %3449 = vrot.lane.b32.xlu0 %v3425, 120
        %v3450 = vpop.permute.xlu0 %3449
        %3451 = vrot.lane.b32.xlu0 %v3426, 120
        %v3452 = vpop.permute.xlu0 %3451
        %3453 = vrot.lane.b32.xlu0 %v3427, 120
        %v3454 = vpop.permute.xlu0 %3453
        %3455 = vrot.lane.b32.xlu0 %v3428, 120
        %v3456 = vpop.permute.xlu0 %3455
        %3457 = vrot.lane.b32.xlu0 %v3429, 120
        %v3458 = vpop.permute.xlu0 %3457
        %3459 = vrot.lane.b32.xlu0 %v3430, 120
        %v3460 = vpop.permute.xlu0 %3459
        %3461 = vrot.lane.b32.xlu0 %v3431, 120
        %v3462 = vpop.permute.xlu0 %3461
        %3463 = vrot.lane.b32.xlu0 %v3432, 120
        %v3464 = vpop.permute.xlu0 %3463
        %v3481 = vadd.f32 %v3367, %v3434
        %v3482 = vadd.f32 %v3368, %v3436
        %v3483 = vadd.f32 %v3369, %v3438
        %v3484 = vadd.f32 %v3370, %v3440
        %v3485 = vadd.f32 %v3371, %v3442
        %v3486 = vadd.f32 %v3372, %v3444
        %v3487 = vadd.f32 %v3373, %v3446
        %v3488 = vadd.f32 %v3374, %v3448
        %v3489 = vadd.f32 %v3375, %v3450
        %v3490 = vadd.f32 %v3376, %v3452
        %v3491 = vadd.f32 %v3377, %v3454
        %v3492 = vadd.f32 %v3378, %v3456
        %v3493 = vadd.f32 %v3379, %v3458
        %v3494 = vadd.f32 %v3380, %v3460
        %v3495 = vadd.f32 %v3381, %v3462
        %v3496 = vadd.f32 %v3382, %v3464
        %s3497 = sld [smem:[#allocation4 + $0x2]]
        %3498 = vrot.lane.b32.xlu0 %v3270, 119
        %v3499 = vpop.permute.xlu0 %3498
        %3500 = vrot.lane.b32.xlu0 %v3271, 119
        %v3501 = vpop.permute.xlu0 %3500
        %3502 = vrot.lane.b32.xlu0 %v3272, 119
        %v3503 = vpop.permute.xlu0 %3502
        %3504 = vrot.lane.b32.xlu0 %v3273, 119
        %v3505 = vpop.permute.xlu0 %3504
        %3506 = vrot.lane.b32.xlu0 %v3274, 119
        %v3507 = vpop.permute.xlu0 %3506
        %3508 = vrot.lane.b32.xlu0 %v3275, 119
        %v3509 = vpop.permute.xlu0 %3508
        %3510 = vrot.lane.b32.xlu0 %v3276, 119
        %v3511 = vpop.permute.xlu0 %3510
        %3512 = vrot.lane.b32.xlu0 %v3277, 119
        %v3513 = vpop.permute.xlu0 %3512
        %3514 = vrot.lane.b32.xlu0 %v3278, 119
        %v3515 = vpop.permute.xlu0 %3514
        %3516 = vrot.lane.b32.xlu0 %v3279, 119
        %v3517 = vpop.permute.xlu0 %3516
        %3518 = vrot.lane.b32.xlu0 %v3280, 119
        %v3519 = vpop.permute.xlu0 %3518
        %3520 = vrot.lane.b32.xlu0 %v3281, 119
        %v3521 = vpop.permute.xlu0 %3520
        %3522 = vrot.lane.b32.xlu0 %v3282, 119
        %v3523 = vpop.permute.xlu0 %3522
        %3524 = vrot.lane.b32.xlu0 %v3283, 119
        %v3525 = vpop.permute.xlu0 %3524
        %3526 = vrot.lane.b32.xlu0 %v3284, 119
        %v3527 = vpop.permute.xlu0 %3526
        %3528 = vrot.lane.b32.xlu0 %v3285, 119
        %v3529 = vpop.permute.xlu0 %3528
        %v3546 = vsel %vm2025, %v3499, 0.0
        %v3547 = vsel %vm2025, %v3501, 0.0
        %v3548 = vsel %vm2025, %v3503, 0.0
        %v3549 = vsel %vm2025, %v3505, 0.0
        %v3550 = vsel %vm2025, %v3507, 0.0
        %v3551 = vsel %vm2025, %v3509, 0.0
        %v3552 = vsel %vm2025, %v3511, 0.0
        %v3553 = vsel %vm2025, %v3513, 0.0
        %v3554 = vsel %vm2025, %v3515, 0.0
        %v3555 = vsel %vm2025, %v3517, 0.0
        %v3556 = vsel %vm2025, %v3519, 0.0
        %v3557 = vsel %vm2025, %v3521, 0.0
        %v3558 = vsel %vm2025, %v3523, 0.0
        %v3559 = vsel %vm2025, %v3525, 0.0
        %v3560 = vsel %vm2025, %v3527, 0.0
        %v3561 = vsel %vm2025, %v3529, 0.0
        %v3562 = vstv %s3497
        %v3563 = vmul.f32 %v3562, %v3546
        %v3564 = vmul.f32 %v3562, %v3547
        %v3565 = vmul.f32 %v3562, %v3548
        %v3566 = vmul.f32 %v3562, %v3549
        %v3567 = vmul.f32 %v3562, %v3550
        %v3568 = vmul.f32 %v3562, %v3551
        %v3569 = vmul.f32 %v3562, %v3552
        %v3570 = vmul.f32 %v3562, %v3553
        %v3571 = vmul.f32 %v3562, %v3554
        %v3572 = vmul.f32 %v3562, %v3555
        %v3573 = vmul.f32 %v3562, %v3556
        %v3574 = vmul.f32 %v3562, %v3557
        %v3575 = vmul.f32 %v3562, %v3558
        %v3576 = vmul.f32 %v3562, %v3559
        %v3577 = vmul.f32 %v3562, %v3560
        %v3578 = vmul.f32 %v3562, %v3561
        %v3579 = vadd.f32 %v3481, %v3563
        %v3580 = vadd.f32 %v3482, %v3564
        %v3581 = vadd.f32 %v3483, %v3565
        %v3582 = vadd.f32 %v3484, %v3566
        %v3583 = vadd.f32 %v3485, %v3567
        %v3584 = vadd.f32 %v3486, %v3568
        %v3585 = vadd.f32 %v3487, %v3569
        %v3586 = vadd.f32 %v3488, %v3570
        %v3587 = vadd.f32 %v3489, %v3571
        %v3588 = vadd.f32 %v3490, %v3572
        %v3589 = vadd.f32 %v3491, %v3573
        %v3590 = vadd.f32 %v3492, %v3574
        %v3591 = vadd.f32 %v3493, %v3575
        %v3592 = vadd.f32 %v3494, %v3576
        %v3593 = vadd.f32 %v3495, %v3577
        %v3594 = vadd.f32 %v3496, %v3578
        %s3595 = sld [smem:[#allocation4 + $0x3]]
        %3596 = vrot.lane.b32.xlu0 %v3270, 113
        %v3597 = vpop.permute.xlu0 %3596
        %3598 = vrot.lane.b32.xlu0 %v3271, 113
        %v3599 = vpop.permute.xlu0 %3598
        %3600 = vrot.lane.b32.xlu0 %v3272, 113
        %v3601 = vpop.permute.xlu0 %3600
        %3602 = vrot.lane.b32.xlu0 %v3273, 113
        %v3603 = vpop.permute.xlu0 %3602
        %3604 = vrot.lane.b32.xlu0 %v3274, 113
        %v3605 = vpop.permute.xlu0 %3604
        %3606 = vrot.lane.b32.xlu0 %v3275, 113
        %v3607 = vpop.permute.xlu0 %3606
        %3608 = vrot.lane.b32.xlu0 %v3276, 113
        %v3609 = vpop.permute.xlu0 %3608
        %3610 = vrot.lane.b32.xlu0 %v3277, 113
        %v3611 = vpop.permute.xlu0 %3610
        %3612 = vrot.lane.b32.xlu0 %v3278, 113
        %v3613 = vpop.permute.xlu0 %3612
        %3614 = vrot.lane.b32.xlu0 %v3279, 113
        %v3615 = vpop.permute.xlu0 %3614
        %3616 = vrot.lane.b32.xlu0 %v3280, 113
        %v3617 = vpop.permute.xlu0 %3616
        %3618 = vrot.lane.b32.xlu0 %v3281, 113
        %v3619 = vpop.permute.xlu0 %3618
        %3620 = vrot.lane.b32.xlu0 %v3282, 113
        %v3621 = vpop.permute.xlu0 %3620
        %3622 = vrot.lane.b32.xlu0 %v3283, 113
        %v3623 = vpop.permute.xlu0 %3622
        %3624 = vrot.lane.b32.xlu0 %v3284, 113
        %v3625 = vpop.permute.xlu0 %3624
        %3626 = vrot.lane.b32.xlu0 %v3285, 113
        %v3627 = vpop.permute.xlu0 %3626
        %v3644 = vsel %vm1815, %v3597, 0.0
        %v3645 = vsel %vm1815, %v3599, 0.0
        %v3646 = vsel %vm1815, %v3601, 0.0
        %v3647 = vsel %vm1815, %v3603, 0.0
        %v3648 = vsel %vm1815, %v3605, 0.0
        %v3649 = vsel %vm1815, %v3607, 0.0
        %v3650 = vsel %vm1815, %v3609, 0.0
        %v3651 = vsel %vm1815, %v3611, 0.0
        %v3652 = vsel %vm1815, %v3613, 0.0
        %v3653 = vsel %vm1815, %v3615, 0.0
        %v3654 = vsel %vm1815, %v3617, 0.0
        %v3655 = vsel %vm1815, %v3619, 0.0
        %v3656 = vsel %vm1815, %v3621, 0.0
        %v3657 = vsel %vm1815, %v3623, 0.0
        %v3658 = vsel %vm1815, %v3625, 0.0
        %v3659 = vsel %vm1815, %v3627, 0.0
        %v3660 = vstv %s3595
        %v3661 = vmul.f32 %v3660, %v3644
        %v3662 = vmul.f32 %v3660, %v3645
        %v3663 = vmul.f32 %v3660, %v3646
        %v3664 = vmul.f32 %v3660, %v3647
        %v3665 = vmul.f32 %v3660, %v3648
        %v3666 = vmul.f32 %v3660, %v3649
        %v3667 = vmul.f32 %v3660, %v3650
        %v3668 = vmul.f32 %v3660, %v3651
        %v3669 = vmul.f32 %v3660, %v3652
        %v3670 = vmul.f32 %v3660, %v3653
        %v3671 = vmul.f32 %v3660, %v3654
        %v3672 = vmul.f32 %v3660, %v3655
        %v3673 = vmul.f32 %v3660, %v3656
        %v3674 = vmul.f32 %v3660, %v3657
        %v3675 = vmul.f32 %v3660, %v3658
        %v3676 = vmul.f32 %v3660, %v3659
        %v3677 = vadd.f32 %v3579, %v3661
        %v3678 = vadd.f32 %v3580, %v3662
        %v3679 = vadd.f32 %v3581, %v3663
        %v3680 = vadd.f32 %v3582, %v3664
        %v3681 = vadd.f32 %v3583, %v3665
        %v3682 = vadd.f32 %v3584, %v3666
        %v3683 = vadd.f32 %v3585, %v3667
        %v3684 = vadd.f32 %v3586, %v3668
        %v3685 = vadd.f32 %v3587, %v3669
        %v3686 = vadd.f32 %v3588, %v3670
        %v3687 = vadd.f32 %v3589, %v3671
        %v3688 = vadd.f32 %v3590, %v3672
        %v3689 = vadd.f32 %v3591, %v3673
        %v3690 = vadd.f32 %v3592, %v3674
        %v3691 = vadd.f32 %v3593, %v3675
        %v3692 = vadd.f32 %v3594, %v3676
        %s3693 = sld [smem:[#allocation4 + $0x4]]
        %v3694 = vstv %s3693
        %v3695 = vmul.f32 %v3694, %v3237
        %v3696 = vmul.f32 %v3694, %v3238
        %v3697 = vmul.f32 %v3694, %v3239
        %v3698 = vmul.f32 %v3694, %v3240
        %v3699 = vmul.f32 %v3694, %v3241
        %v3700 = vmul.f32 %v3694, %v3242
        %v3701 = vmul.f32 %v3694, %v3243
        %v3702 = vmul.f32 %v3694, %v3244
        %v3703 = vmul.f32 %v3694, %v3245
        %v3704 = vmul.f32 %v3694, %v3246
        %v3705 = vmul.f32 %v3694, %v3247
        %v3706 = vmul.f32 %v3694, %v3248
        %v3707 = vmul.f32 %v3694, %v3249
        %v3708 = vmul.f32 %v3694, %v3250
        %v3709 = vmul.f32 %v3694, %v3251
        %v3710 = vmul.f32 %v3694, %v3252
        %v3727 = vperm.slane %v3695, 0
        %v3728 = vperm.slane %v3696, 0
        %v3729 = vperm.slane %v3697, 0
        %v3730 = vperm.slane %v3698, 0
        %v3731 = vperm.slane %v3699, 0
        %v3732 = vperm.slane %v3700, 0
        %v3733 = vperm.slane %v3701, 0
        %v3734 = vperm.slane %v3702, 0
        %v3735 = vperm.slane %v3703, 0
        %v3736 = vperm.slane %v3704, 0
        %v3737 = vperm.slane %v3705, 0
        %v3738 = vperm.slane %v3706, 0
        %v3739 = vperm.slane %v3707, 0
        %v3740 = vperm.slane %v3708, 0
        %v3741 = vperm.slane %v3709, 0
        %v3742 = vperm.slane %v3710, 0
        %3743 = vrot.lane.b32.xlu0 %v3727, 112
        %v3744 = vpop.permute.xlu0 %3743
        %3745 = vrot.lane.b32.xlu0 %v3728, 112
        %v3746 = vpop.permute.xlu0 %3745
        %3747 = vrot.lane.b32.xlu0 %v3729, 112
        %v3748 = vpop.permute.xlu0 %3747
        %3749 = vrot.lane.b32.xlu0 %v3730, 112
        %v3750 = vpop.permute.xlu0 %3749
        %3751 = vrot.lane.b32.xlu0 %v3731, 112
        %v3752 = vpop.permute.xlu0 %3751
        %3753 = vrot.lane.b32.xlu0 %v3732, 112
        %v3754 = vpop.permute.xlu0 %3753
        %3755 = vrot.lane.b32.xlu0 %v3733, 112
        %v3756 = vpop.permute.xlu0 %3755
        %3757 = vrot.lane.b32.xlu0 %v3734, 112
        %v3758 = vpop.permute.xlu0 %3757
        %3759 = vrot.lane.b32.xlu0 %v3735, 112
        %v3760 = vpop.permute.xlu0 %3759
        %3761 = vrot.lane.b32.xlu0 %v3736, 112
        %v3762 = vpop.permute.xlu0 %3761
        %3763 = vrot.lane.b32.xlu0 %v3737, 112
        %v3764 = vpop.permute.xlu0 %3763
        %3765 = vrot.lane.b32.xlu0 %v3738, 112
        %v3766 = vpop.permute.xlu0 %3765
        %3767 = vrot.lane.b32.xlu0 %v3739, 112
        %v3768 = vpop.permute.xlu0 %3767
        %3769 = vrot.lane.b32.xlu0 %v3740, 112
        %v3770 = vpop.permute.xlu0 %3769
        %3771 = vrot.lane.b32.xlu0 %v3741, 112
        %v3772 = vpop.permute.xlu0 %3771
        %3773 = vrot.lane.b32.xlu0 %v3742, 112
        %v3774 = vpop.permute.xlu0 %3773
        %v3791 = vadd.f32 %v3677, %v3744
        %v3792 = vadd.f32 %v3678, %v3746
        %v3793 = vadd.f32 %v3679, %v3748
        %v3794 = vadd.f32 %v3680, %v3750
        %v3795 = vadd.f32 %v3681, %v3752
        %v3796 = vadd.f32 %v3682, %v3754
        %v3797 = vadd.f32 %v3683, %v3756
        %v3798 = vadd.f32 %v3684, %v3758
        %v3799 = vadd.f32 %v3685, %v3760
        %v3800 = vadd.f32 %v3686, %v3762
        %v3801 = vadd.f32 %v3687, %v3764
        %v3802 = vadd.f32 %v3688, %v3766
        %v3803 = vadd.f32 %v3689, %v3768
        %v3804 = vadd.f32 %v3690, %v3770
        %v3805 = vadd.f32 %v3691, %v3772
        %v3806 = vadd.f32 %v3692, %v3774
        %s3807 = sld [smem:[#allocation4 + $0x5]]
        %3808 = vrot.lane.b32.xlu0 %v3270, 111
        %v3809 = vpop.permute.xlu0 %3808
        %3810 = vrot.lane.b32.xlu0 %v3271, 111
        %v3811 = vpop.permute.xlu0 %3810
        %3812 = vrot.lane.b32.xlu0 %v3272, 111
        %v3813 = vpop.permute.xlu0 %3812
        %3814 = vrot.lane.b32.xlu0 %v3273, 111
        %v3815 = vpop.permute.xlu0 %3814
        %3816 = vrot.lane.b32.xlu0 %v3274, 111
        %v3817 = vpop.permute.xlu0 %3816
        %3818 = vrot.lane.b32.xlu0 %v3275, 111
        %v3819 = vpop.permute.xlu0 %3818
        %3820 = vrot.lane.b32.xlu0 %v3276, 111
        %v3821 = vpop.permute.xlu0 %3820
        %3822 = vrot.lane.b32.xlu0 %v3277, 111
        %v3823 = vpop.permute.xlu0 %3822
        %3824 = vrot.lane.b32.xlu0 %v3278, 111
        %v3825 = vpop.permute.xlu0 %3824
        %3826 = vrot.lane.b32.xlu0 %v3279, 111
        %v3827 = vpop.permute.xlu0 %3826
        %3828 = vrot.lane.b32.xlu0 %v3280, 111
        %v3829 = vpop.permute.xlu0 %3828
        %3830 = vrot.lane.b32.xlu0 %v3281, 111
        %v3831 = vpop.permute.xlu0 %3830
        %3832 = vrot.lane.b32.xlu0 %v3282, 111
        %v3833 = vpop.permute.xlu0 %3832
        %3834 = vrot.lane.b32.xlu0 %v3283, 111
        %v3835 = vpop.permute.xlu0 %3834
        %3836 = vrot.lane.b32.xlu0 %v3284, 111
        %v3837 = vpop.permute.xlu0 %3836
        %3838 = vrot.lane.b32.xlu0 %v3285, 111
        %v3839 = vpop.permute.xlu0 %3838
        %v3856 = vsel %vm2025, %v3809, 0.0
        %v3857 = vsel %vm2025, %v3811, 0.0
        %v3858 = vsel %vm2025, %v3813, 0.0
        %v3859 = vsel %vm2025, %v3815, 0.0
        %v3860 = vsel %vm2025, %v3817, 0.0
        %v3861 = vsel %vm2025, %v3819, 0.0
        %v3862 = vsel %vm2025, %v3821, 0.0
        %v3863 = vsel %vm2025, %v3823, 0.0
        %v3864 = vsel %vm2025, %v3825, 0.0
        %v3865 = vsel %vm2025, %v3827, 0.0
        %v3866 = vsel %vm2025, %v3829, 0.0
        %v3867 = vsel %vm2025, %v3831, 0.0
        %v3868 = vsel %vm2025, %v3833, 0.0
        %v3869 = vsel %vm2025, %v3835, 0.0
        %v3870 = vsel %vm2025, %v3837, 0.0
        %v3871 = vsel %vm2025, %v3839, 0.0
        %v3872 = vstv %s3807
        %v3873 = vmul.f32 %v3872, %v3856
        %v3874 = vmul.f32 %v3872, %v3857
        %v3875 = vmul.f32 %v3872, %v3858
        %v3876 = vmul.f32 %v3872, %v3859
        %v3877 = vmul.f32 %v3872, %v3860
        %v3878 = vmul.f32 %v3872, %v3861
        %v3879 = vmul.f32 %v3872, %v3862
        %v3880 = vmul.f32 %v3872, %v3863
        %v3881 = vmul.f32 %v3872, %v3864
        %v3882 = vmul.f32 %v3872, %v3865
        %v3883 = vmul.f32 %v3872, %v3866
        %v3884 = vmul.f32 %v3872, %v3867
        %v3885 = vmul.f32 %v3872, %v3868
        %v3886 = vmul.f32 %v3872, %v3869
        %v3887 = vmul.f32 %v3872, %v3870
        %v3888 = vmul.f32 %v3872, %v3871
        %v3889 = vadd.f32 %v3791, %v3873
        %v3890 = vadd.f32 %v3792, %v3874
        %v3891 = vadd.f32 %v3793, %v3875
        %v3892 = vadd.f32 %v3794, %v3876
        %v3893 = vadd.f32 %v3795, %v3877
        %v3894 = vadd.f32 %v3796, %v3878
        %v3895 = vadd.f32 %v3797, %v3879
        %v3896 = vadd.f32 %v3798, %v3880
        %v3897 = vadd.f32 %v3799, %v3881
        %v3898 = vadd.f32 %v3800, %v3882
        %v3899 = vadd.f32 %v3801, %v3883
        %v3900 = vadd.f32 %v3802, %v3884
        %v3901 = vadd.f32 %v3803, %v3885
        %v3902 = vadd.f32 %v3804, %v3886
        %v3903 = vadd.f32 %v3805, %v3887
        %v3904 = vadd.f32 %v3806, %v3888
        %s3905 = sld [smem:[#allocation4 + $0x6]]
        %3906 = vrot.lane.b32.xlu0 %v3270, 105
        %v3907 = vpop.permute.xlu0 %3906
        %3908 = vrot.lane.b32.xlu0 %v3271, 105
        %v3909 = vpop.permute.xlu0 %3908
        %3910 = vrot.lane.b32.xlu0 %v3272, 105
        %v3911 = vpop.permute.xlu0 %3910
        %3912 = vrot.lane.b32.xlu0 %v3273, 105
        %v3913 = vpop.permute.xlu0 %3912
        %3914 = vrot.lane.b32.xlu0 %v3274, 105
        %v3915 = vpop.permute.xlu0 %3914
        %3916 = vrot.lane.b32.xlu0 %v3275, 105
        %v3917 = vpop.permute.xlu0 %3916
        %3918 = vrot.lane.b32.xlu0 %v3276, 105
        %v3919 = vpop.permute.xlu0 %3918
        %3920 = vrot.lane.b32.xlu0 %v3277, 105
        %v3921 = vpop.permute.xlu0 %3920
        %3922 = vrot.lane.b32.xlu0 %v3278, 105
        %v3923 = vpop.permute.xlu0 %3922
        %3924 = vrot.lane.b32.xlu0 %v3279, 105
        %v3925 = vpop.permute.xlu0 %3924
        %3926 = vrot.lane.b32.xlu0 %v3280, 105
        %v3927 = vpop.permute.xlu0 %3926
        %3928 = vrot.lane.b32.xlu0 %v3281, 105
        %v3929 = vpop.permute.xlu0 %3928
        %3930 = vrot.lane.b32.xlu0 %v3282, 105
        %v3931 = vpop.permute.xlu0 %3930
        %3932 = vrot.lane.b32.xlu0 %v3283, 105
        %v3933 = vpop.permute.xlu0 %3932
        %3934 = vrot.lane.b32.xlu0 %v3284, 105
        %v3935 = vpop.permute.xlu0 %3934
        %3936 = vrot.lane.b32.xlu0 %v3285, 105
        %v3937 = vpop.permute.xlu0 %3936
        %v3954 = vsel %vm1815, %v3907, 0.0
        %v3955 = vsel %vm1815, %v3909, 0.0
        %v3956 = vsel %vm1815, %v3911, 0.0
        %v3957 = vsel %vm1815, %v3913, 0.0
        %v3958 = vsel %vm1815, %v3915, 0.0
        %v3959 = vsel %vm1815, %v3917, 0.0
        %v3960 = vsel %vm1815, %v3919, 0.0
        %v3961 = vsel %vm1815, %v3921, 0.0
        %v3962 = vsel %vm1815, %v3923, 0.0
        %v3963 = vsel %vm1815, %v3925, 0.0
        %v3964 = vsel %vm1815, %v3927, 0.0
        %v3965 = vsel %vm1815, %v3929, 0.0
        %v3966 = vsel %vm1815, %v3931, 0.0
        %v3967 = vsel %vm1815, %v3933, 0.0
        %v3968 = vsel %vm1815, %v3935, 0.0
        %v3969 = vsel %vm1815, %v3937, 0.0
        %v3970 = vstv %s3905
        %v3971 = vmul.f32 %v3970, %v3954
        %v3972 = vmul.f32 %v3970, %v3955
        %v3973 = vmul.f32 %v3970, %v3956
        %v3974 = vmul.f32 %v3970, %v3957
        %v3975 = vmul.f32 %v3970, %v3958
        %v3976 = vmul.f32 %v3970, %v3959
        %v3977 = vmul.f32 %v3970, %v3960
        %v3978 = vmul.f32 %v3970, %v3961
        %v3979 = vmul.f32 %v3970, %v3962
        %v3980 = vmul.f32 %v3970, %v3963
        %v3981 = vmul.f32 %v3970, %v3964
        %v3982 = vmul.f32 %v3970, %v3965
        %v3983 = vmul.f32 %v3970, %v3966
        %v3984 = vmul.f32 %v3970, %v3967
        %v3985 = vmul.f32 %v3970, %v3968
        %v3986 = vmul.f32 %v3970, %v3969
        %v3987 = vadd.f32 %v3889, %v3971
        %v3988 = vadd.f32 %v3890, %v3972
        %v3989 = vadd.f32 %v3891, %v3973
        %v3990 = vadd.f32 %v3892, %v3974
        %v3991 = vadd.f32 %v3893, %v3975
        %v3992 = vadd.f32 %v3894, %v3976
        %v3993 = vadd.f32 %v3895, %v3977
        %v3994 = vadd.f32 %v3896, %v3978
        %v3995 = vadd.f32 %v3897, %v3979
        %v3996 = vadd.f32 %v3898, %v3980
        %v3997 = vadd.f32 %v3899, %v3981
        %v3998 = vadd.f32 %v3900, %v3982
        %v3999 = vadd.f32 %v3901, %v3983
        %v4000 = vadd.f32 %v3902, %v3984
        %v4001 = vadd.f32 %v3903, %v3985
        %v4002 = vadd.f32 %v3904, %v3986
        %s4003 = sld [smem:[#allocation4 + $0x7]]
        %v4004 = vstv %s4003
        %v4005 = vmul.f32 %v4004, %v3237
        %v4006 = vmul.f32 %v4004, %v3238
        %v4007 = vmul.f32 %v4004, %v3239
        %v4008 = vmul.f32 %v4004, %v3240
        %v4009 = vmul.f32 %v4004, %v3241
        %v4010 = vmul.f32 %v4004, %v3242
        %v4011 = vmul.f32 %v4004, %v3243
        %v4012 = vmul.f32 %v4004, %v3244
        %v4013 = vmul.f32 %v4004, %v3245
        %v4014 = vmul.f32 %v4004, %v3246
        %v4015 = vmul.f32 %v4004, %v3247
        %v4016 = vmul.f32 %v4004, %v3248
        %v4017 = vmul.f32 %v4004, %v3249
        %v4018 = vmul.f32 %v4004, %v3250
        %v4019 = vmul.f32 %v4004, %v3251
        %v4020 = vmul.f32 %v4004, %v3252
        %v4037 = vperm.slane %v4005, 0
        %v4038 = vperm.slane %v4006, 0
        %v4039 = vperm.slane %v4007, 0
        %v4040 = vperm.slane %v4008, 0
        %v4041 = vperm.slane %v4009, 0
        %v4042 = vperm.slane %v4010, 0
        %v4043 = vperm.slane %v4011, 0
        %v4044 = vperm.slane %v4012, 0
        %v4045 = vperm.slane %v4013, 0
        %v4046 = vperm.slane %v4014, 0
        %v4047 = vperm.slane %v4015, 0
        %v4048 = vperm.slane %v4016, 0
        %v4049 = vperm.slane %v4017, 0
        %v4050 = vperm.slane %v4018, 0
        %v4051 = vperm.slane %v4019, 0
        %v4052 = vperm.slane %v4020, 0
        %4053 = vrot.lane.b32.xlu0 %v4037, 104
        %v4054 = vpop.permute.xlu0 %4053
        %4055 = vrot.lane.b32.xlu0 %v4038, 104
        %v4056 = vpop.permute.xlu0 %4055
        %4057 = vrot.lane.b32.xlu0 %v4039, 104
        %v4058 = vpop.permute.xlu0 %4057
        %4059 = vrot.lane.b32.xlu0 %v4040, 104
        %v4060 = vpop.permute.xlu0 %4059
        %4061 = vrot.lane.b32.xlu0 %v4041, 104
        %v4062 = vpop.permute.xlu0 %4061
        %4063 = vrot.lane.b32.xlu0 %v4042, 104
        %v4064 = vpop.permute.xlu0 %4063
        %4065 = vrot.lane.b32.xlu0 %v4043, 104
        %v4066 = vpop.permute.xlu0 %4065
        %4067 = vrot.lane.b32.xlu0 %v4044, 104
        %v4068 = vpop.permute.xlu0 %4067
        %4069 = vrot.lane.b32.xlu0 %v4045, 104
        %v4070 = vpop.permute.xlu0 %4069
        %4071 = vrot.lane.b32.xlu0 %v4046, 104
        %v4072 = vpop.permute.xlu0 %4071
        %4073 = vrot.lane.b32.xlu0 %v4047, 104
        %v4074 = vpop.permute.xlu0 %4073
        %4075 = vrot.lane.b32.xlu0 %v4048, 104
        %v4076 = vpop.permute.xlu0 %4075
        %4077 = vrot.lane.b32.xlu0 %v4049, 104
        %v4078 = vpop.permute.xlu0 %4077
        %4079 = vrot.lane.b32.xlu0 %v4050, 104
        %v4080 = vpop.permute.xlu0 %4079
        %4081 = vrot.lane.b32.xlu0 %v4051, 104
        %v4082 = vpop.permute.xlu0 %4081
        %4083 = vrot.lane.b32.xlu0 %v4052, 104
        %v4084 = vpop.permute.xlu0 %4083
        %v4101 = vadd.f32 %v3987, %v4054
        %v4102 = vadd.f32 %v3988, %v4056
        %v4103 = vadd.f32 %v3989, %v4058
        %v4104 = vadd.f32 %v3990, %v4060
        %v4105 = vadd.f32 %v3991, %v4062
        %v4106 = vadd.f32 %v3992, %v4064
        %v4107 = vadd.f32 %v3993, %v4066
        %v4108 = vadd.f32 %v3994, %v4068
        %v4109 = vadd.f32 %v3995, %v4070
        %v4110 = vadd.f32 %v3996, %v4072
        %v4111 = vadd.f32 %v3997, %v4074
        %v4112 = vadd.f32 %v3998, %v4076
        %v4113 = vadd.f32 %v3999, %v4078
        %v4114 = vadd.f32 %v4000, %v4080
        %v4115 = vadd.f32 %v4001, %v4082
        %v4116 = vadd.f32 %v4002, %v4084
        %s4117 = sld [smem:[#allocation4 + $0x8]]
        %4118 = vrot.lane.b32.xlu0 %v3270, 103
        %v4119 = vpop.permute.xlu0 %4118
        %4120 = vrot.lane.b32.xlu0 %v3271, 103
        %v4121 = vpop.permute.xlu0 %4120
        %4122 = vrot.lane.b32.xlu0 %v3272, 103
        %v4123 = vpop.permute.xlu0 %4122
        %4124 = vrot.lane.b32.xlu0 %v3273, 103
        %v4125 = vpop.permute.xlu0 %4124
        %4126 = vrot.lane.b32.xlu0 %v3274, 103
        %v4127 = vpop.permute.xlu0 %4126
        %4128 = vrot.lane.b32.xlu0 %v3275, 103
        %v4129 = vpop.permute.xlu0 %4128
        %4130 = vrot.lane.b32.xlu0 %v3276, 103
        %v4131 = vpop.permute.xlu0 %4130
        %4132 = vrot.lane.b32.xlu0 %v3277, 103
        %v4133 = vpop.permute.xlu0 %4132
        %4134 = vrot.lane.b32.xlu0 %v3278, 103
        %v4135 = vpop.permute.xlu0 %4134
        %4136 = vrot.lane.b32.xlu0 %v3279, 103
        %v4137 = vpop.permute.xlu0 %4136
        %4138 = vrot.lane.b32.xlu0 %v3280, 103
        %v4139 = vpop.permute.xlu0 %4138
        %4140 = vrot.lane.b32.xlu0 %v3281, 103
        %v4141 = vpop.permute.xlu0 %4140
        %4142 = vrot.lane.b32.xlu0 %v3282, 103
        %v4143 = vpop.permute.xlu0 %4142
        %4144 = vrot.lane.b32.xlu0 %v3283, 103
        %v4145 = vpop.permute.xlu0 %4144
        %4146 = vrot.lane.b32.xlu0 %v3284, 103
        %v4147 = vpop.permute.xlu0 %4146
        %4148 = vrot.lane.b32.xlu0 %v3285, 103
        %v4149 = vpop.permute.xlu0 %4148
        %v4166 = vsel %vm2025, %v4119, 0.0
        %v4167 = vsel %vm2025, %v4121, 0.0
        %v4168 = vsel %vm2025, %v4123, 0.0
        %v4169 = vsel %vm2025, %v4125, 0.0
        %v4170 = vsel %vm2025, %v4127, 0.0
        %v4171 = vsel %vm2025, %v4129, 0.0
        %v4172 = vsel %vm2025, %v4131, 0.0
        %v4173 = vsel %vm2025, %v4133, 0.0
        %v4174 = vsel %vm2025, %v4135, 0.0
        %v4175 = vsel %vm2025, %v4137, 0.0
        %v4176 = vsel %vm2025, %v4139, 0.0
        %v4177 = vsel %vm2025, %v4141, 0.0
        %v4178 = vsel %vm2025, %v4143, 0.0
        %v4179 = vsel %vm2025, %v4145, 0.0
        %v4180 = vsel %vm2025, %v4147, 0.0
        %v4181 = vsel %vm2025, %v4149, 0.0
        %v4182 = vstv %s4117
        %v4183 = vmul.f32 %v4182, %v4166
        %v4184 = vmul.f32 %v4182, %v4167
        %v4185 = vmul.f32 %v4182, %v4168
        %v4186 = vmul.f32 %v4182, %v4169
        %v4187 = vmul.f32 %v4182, %v4170
        %v4188 = vmul.f32 %v4182, %v4171
        %v4189 = vmul.f32 %v4182, %v4172
        %v4190 = vmul.f32 %v4182, %v4173
        %v4191 = vmul.f32 %v4182, %v4174
        %v4192 = vmul.f32 %v4182, %v4175
        %v4193 = vmul.f32 %v4182, %v4176
        %v4194 = vmul.f32 %v4182, %v4177
        %v4195 = vmul.f32 %v4182, %v4178
        %v4196 = vmul.f32 %v4182, %v4179
        %v4197 = vmul.f32 %v4182, %v4180
        %v4198 = vmul.f32 %v4182, %v4181
        %v4199 = vadd.f32 %v4101, %v4183
        %v4200 = vadd.f32 %v4102, %v4184
        %v4201 = vadd.f32 %v4103, %v4185
        %v4202 = vadd.f32 %v4104, %v4186
        %v4203 = vadd.f32 %v4105, %v4187
        %v4204 = vadd.f32 %v4106, %v4188
        %v4205 = vadd.f32 %v4107, %v4189
        %v4206 = vadd.f32 %v4108, %v4190
        %v4207 = vadd.f32 %v4109, %v4191
        %v4208 = vadd.f32 %v4110, %v4192
        %v4209 = vadd.f32 %v4111, %v4193
        %v4210 = vadd.f32 %v4112, %v4194
        %v4211 = vadd.f32 %v4113, %v4195
        %v4212 = vadd.f32 %v4114, %v4196
        %v4213 = vadd.f32 %v4115, %v4197
        %v4214 = vadd.f32 %v4116, %v4198
        %s4215 = sld [smem:[#allocation6 + $0x1]]
        %v4216 = vstv %s4215
        %v4217 = vadd.f32 %v4199, %v4216
        %v4218 = vadd.f32 %v4200, %v4216
        %v4219 = vadd.f32 %v4201, %v4216
        %v4220 = vadd.f32 %v4202, %v4216
        %v4221 = vadd.f32 %v4203, %v4216
        %v4222 = vadd.f32 %v4204, %v4216
        %v4223 = vadd.f32 %v4205, %v4216
        %v4224 = vadd.f32 %v4206, %v4216
        %v4225 = vadd.f32 %v4207, %v4216
        %v4226 = vadd.f32 %v4208, %v4216
        %v4227 = vadd.f32 %v4209, %v4216
        %v4228 = vadd.f32 %v4210, %v4216
        %v4229 = vadd.f32 %v4211, %v4216
        %v4230 = vadd.f32 %v4212, %v4216
        %v4231 = vadd.f32 %v4213, %v4216
        %v4232 = vadd.f32 %v4214, %v4216
        %v4233 = vsel %vm2780, %v4217, 0.0
        %4234 = vadd.xlane.f32.xlu0 %v4233
        %v4235 = vpop.xlane.xlu0 %4234
        %v4236 = vsel %vm2780, %v4218, 0.0
        %4237 = vadd.xlane.f32.xlu0 %v4236
        %v4238 = vpop.xlane.xlu0 %4237
        %v4239 = vsel %vm2780, %v4219, 0.0
        %4240 = vadd.xlane.f32.xlu0 %v4239
        %v4241 = vpop.xlane.xlu0 %4240
        %v4242 = vsel %vm2780, %v4220, 0.0
        %4243 = vadd.xlane.f32.xlu0 %v4242
        %v4244 = vpop.xlane.xlu0 %4243
        %v4245 = vsel %vm2780, %v4221, 0.0
        %4246 = vadd.xlane.f32.xlu0 %v4245
        %v4247 = vpop.xlane.xlu0 %4246
        %v4248 = vsel %vm2780, %v4222, 0.0
        %4249 = vadd.xlane.f32.xlu0 %v4248
        %v4250 = vpop.xlane.xlu0 %4249
        %v4251 = vsel %vm2780, %v4223, 0.0
        %4252 = vadd.xlane.f32.xlu0 %v4251
        %v4253 = vpop.xlane.xlu0 %4252
        %v4254 = vsel %vm2780, %v4224, 0.0
        %4255 = vadd.xlane.f32.xlu0 %v4254
        %v4256 = vpop.xlane.xlu0 %4255
        %v4257 = vsel %vm2780, %v4225, 0.0
        %4258 = vadd.xlane.f32.xlu0 %v4257
        %v4259 = vpop.xlane.xlu0 %4258
        %v4260 = vsel %vm2780, %v4226, 0.0
        %4261 = vadd.xlane.f32.xlu0 %v4260
        %v4262 = vpop.xlane.xlu0 %4261
        %v4263 = vsel %vm2780, %v4227, 0.0
        %4264 = vadd.xlane.f32.xlu0 %v4263
        %v4265 = vpop.xlane.xlu0 %4264
        %v4266 = vsel %vm2780, %v4228, 0.0
        %4267 = vadd.xlane.f32.xlu0 %v4266
        %v4268 = vpop.xlane.xlu0 %4267
        %v4269 = vsel %vm2780, %v4229, 0.0
        %4270 = vadd.xlane.f32.xlu0 %v4269
        %v4271 = vpop.xlane.xlu0 %4270
        %v4272 = vsel %vm2780, %v4230, 0.0
        %4273 = vadd.xlane.f32.xlu0 %v4272
        %v4274 = vpop.xlane.xlu0 %4273
        %v4275 = vsel %vm2780, %v4231, 0.0
        %4276 = vadd.xlane.f32.xlu0 %v4275
        %v4277 = vpop.xlane.xlu0 %4276
        %v4278 = vsel %vm2780, %v4232, 0.0
        %4279 = vadd.xlane.f32.xlu0 %v4278
        %v4280 = vpop.xlane.xlu0 %4279
        %v4281 = vmul.f32 %v4235, %v2835
        %v4282 = vmul.f32 %v4238, %v2835
        %v4283 = vmul.f32 %v4241, %v2835
        %v4284 = vmul.f32 %v4244, %v2835
        %v4285 = vmul.f32 %v4247, %v2835
        %v4286 = vmul.f32 %v4250, %v2835
        %v4287 = vmul.f32 %v4253, %v2835
        %v4288 = vmul.f32 %v4256, %v2835
        %v4289 = vmul.f32 %v4259, %v2835
        %v4290 = vmul.f32 %v4262, %v2835
        %v4291 = vmul.f32 %v4265, %v2835
        %v4292 = vmul.f32 %v4268, %v2835
        %v4293 = vmul.f32 %v4271, %v2835
        %v4294 = vmul.f32 %v4274, %v2835
        %v4295 = vmul.f32 %v4277, %v2835
        %v4296 = vmul.f32 %v4280, %v2835
        %v4297 = vsub.f32 %v4217, %v4281
        %v4298 = vsub.f32 %v4218, %v4282
        %v4299 = vsub.f32 %v4219, %v4283
        %v4300 = vsub.f32 %v4220, %v4284
        %v4301 = vsub.f32 %v4221, %v4285
        %v4302 = vsub.f32 %v4222, %v4286
        %v4303 = vsub.f32 %v4223, %v4287
        %v4304 = vsub.f32 %v4224, %v4288
        %v4305 = vsub.f32 %v4225, %v4289
        %v4306 = vsub.f32 %v4226, %v4290
        %v4307 = vsub.f32 %v4227, %v4291
        %v4308 = vsub.f32 %v4228, %v4292
        %v4309 = vsub.f32 %v4229, %v4293
        %v4310 = vsub.f32 %v4230, %v4294
        %v4311 = vsub.f32 %v4231, %v4295
        %v4312 = vsub.f32 %v4232, %v4296
        %v4313 = vmul.f32 %v4297, %v4297
        %v4314 = vmul.f32 %v4298, %v4298
        %v4315 = vmul.f32 %v4299, %v4299
        %v4316 = vmul.f32 %v4300, %v4300
        %v4317 = vmul.f32 %v4301, %v4301
        %v4318 = vmul.f32 %v4302, %v4302
        %v4319 = vmul.f32 %v4303, %v4303
        %v4320 = vmul.f32 %v4304, %v4304
        %v4321 = vmul.f32 %v4305, %v4305
        %v4322 = vmul.f32 %v4306, %v4306
        %v4323 = vmul.f32 %v4307, %v4307
        %v4324 = vmul.f32 %v4308, %v4308
        %v4325 = vmul.f32 %v4309, %v4309
        %v4326 = vmul.f32 %v4310, %v4310
        %v4327 = vmul.f32 %v4311, %v4311
        %v4328 = vmul.f32 %v4312, %v4312
        %v4329 = vsel %vm2780, %v4313, 0.0
        %4330 = vadd.xlane.f32.xlu0 %v4329
        %v4331 = vpop.xlane.xlu0 %4330
        %v4332 = vsel %vm2780, %v4314, 0.0
        %4333 = vadd.xlane.f32.xlu0 %v4332
        %v4334 = vpop.xlane.xlu0 %4333
        %v4335 = vsel %vm2780, %v4315, 0.0
        %4336 = vadd.xlane.f32.xlu0 %v4335
        %v4337 = vpop.xlane.xlu0 %4336
        %v4338 = vsel %vm2780, %v4316, 0.0
        %4339 = vadd.xlane.f32.xlu0 %v4338
        %v4340 = vpop.xlane.xlu0 %4339
        %v4341 = vsel %vm2780, %v4317, 0.0
        %4342 = vadd.xlane.f32.xlu0 %v4341
        %v4343 = vpop.xlane.xlu0 %4342
        %v4344 = vsel %vm2780, %v4318, 0.0
        %4345 = vadd.xlane.f32.xlu0 %v4344
        %v4346 = vpop.xlane.xlu0 %4345
        %v4347 = vsel %vm2780, %v4319, 0.0
        %4348 = vadd.xlane.f32.xlu0 %v4347
        %v4349 = vpop.xlane.xlu0 %4348
        %v4350 = vsel %vm2780, %v4320, 0.0
        %4351 = vadd.xlane.f32.xlu0 %v4350
        %v4352 = vpop.xlane.xlu0 %4351
        %v4353 = vsel %vm2780, %v4321, 0.0
        %4354 = vadd.xlane.f32.xlu0 %v4353
        %v4355 = vpop.xlane.xlu0 %4354
        %v4356 = vsel %vm2780, %v4322, 0.0
        %4357 = vadd.xlane.f32.xlu0 %v4356
        %v4358 = vpop.xlane.xlu0 %4357
        %v4359 = vsel %vm2780, %v4323, 0.0
        %4360 = vadd.xlane.f32.xlu0 %v4359
        %v4361 = vpop.xlane.xlu0 %4360
        %v4362 = vsel %vm2780, %v4324, 0.0
        %4363 = vadd.xlane.f32.xlu0 %v4362
        %v4364 = vpop.xlane.xlu0 %4363
        %v4365 = vsel %vm2780, %v4325, 0.0
        %4366 = vadd.xlane.f32.xlu0 %v4365
        %v4367 = vpop.xlane.xlu0 %4366
        %v4368 = vsel %vm2780, %v4326, 0.0
        %4369 = vadd.xlane.f32.xlu0 %v4368
        %v4370 = vpop.xlane.xlu0 %4369
        %v4371 = vsel %vm2780, %v4327, 0.0
        %4372 = vadd.xlane.f32.xlu0 %v4371
        %v4373 = vpop.xlane.xlu0 %4372
        %v4374 = vsel %vm2780, %v4328, 0.0
        %4375 = vadd.xlane.f32.xlu0 %v4374
        %v4376 = vpop.xlane.xlu0 %4375
        %v4377 = vmul.f32 %v4331, %v2835
        %v4378 = vmul.f32 %v4334, %v2835
        %v4379 = vmul.f32 %v4337, %v2835
        %v4380 = vmul.f32 %v4340, %v2835
        %v4381 = vmul.f32 %v4343, %v2835
        %v4382 = vmul.f32 %v4346, %v2835
        %v4383 = vmul.f32 %v4349, %v2835
        %v4384 = vmul.f32 %v4352, %v2835
        %v4385 = vmul.f32 %v4355, %v2835
        %v4386 = vmul.f32 %v4358, %v2835
        %v4387 = vmul.f32 %v4361, %v2835
        %v4388 = vmul.f32 %v4364, %v2835
        %v4389 = vmul.f32 %v4367, %v2835
        %v4390 = vmul.f32 %v4370, %v2835
        %v4391 = vmul.f32 %v4373, %v2835
        %v4392 = vmul.f32 %v4376, %v2835
        %v4393 = vadd.f32 %v4377, 1e-05
        %v4394 = vadd.f32 %v4378, 1e-05
        %v4395 = vadd.f32 %v4379, 1e-05
        %v4396 = vadd.f32 %v4380, 1e-05
        %v4397 = vadd.f32 %v4381, 1e-05
        %v4398 = vadd.f32 %v4382, 1e-05
        %v4399 = vadd.f32 %v4383, 1e-05
        %v4400 = vadd.f32 %v4384, 1e-05
        %v4401 = vadd.f32 %v4385, 1e-05
        %v4402 = vadd.f32 %v4386, 1e-05
        %v4403 = vadd.f32 %v4387, 1e-05
        %v4404 = vadd.f32 %v4388, 1e-05
        %v4405 = vadd.f32 %v4389, 1e-05
        %v4406 = vadd.f32 %v4390, 1e-05
        %v4407 = vadd.f32 %v4391, 1e-05
        %v4408 = vadd.f32 %v4392, 1e-05
        %v4409 = vrsqrt.pop %v4393
        %v4410 = vmul.f32 %v4409, %v4393
        %v4411 = vmul.f32 %v4410, %v4409
        %v4412 = vmul.f32 0.5, %v4411
        %v4413 = vsub.f32 1.5, %v4412
        %v4414 = vmul.f32 %v4409, %v4413
        %vm4415 = vweird.f32 %v4393
        %vm4416 = vweird.f32 %v4409
        %vm4417 = vmor %vm4415, %vm4416
        %v4418 = vsel %vm4417, %v4409, %v4414
        %v4419 = vrsqrt.pop %v4394
        %v4420 = vmul.f32 %v4419, %v4394
        %v4421 = vmul.f32 %v4420, %v4419
        %v4422 = vmul.f32 0.5, %v4421
        %v4423 = vsub.f32 1.5, %v4422
        %v4424 = vmul.f32 %v4419, %v4423
        %vm4425 = vweird.f32 %v4394
        %vm4426 = vweird.f32 %v4419
        %vm4427 = vmor %vm4425, %vm4426
        %v4428 = vsel %vm4427, %v4419, %v4424
        %v4429 = vrsqrt.pop %v4395
        %v4430 = vmul.f32 %v4429, %v4395
        %v4431 = vmul.f32 %v4430, %v4429
        %v4432 = vmul.f32 0.5, %v4431
        %v4433 = vsub.f32 1.5, %v4432
        %v4434 = vmul.f32 %v4429, %v4433
        %vm4435 = vweird.f32 %v4395
        %vm4436 = vweird.f32 %v4429
        %vm4437 = vmor %vm4435, %vm4436
        %v4438 = vsel %vm4437, %v4429, %v4434
        %v4439 = vrsqrt.pop %v4396
        %v4440 = vmul.f32 %v4439, %v4396
        %v4441 = vmul.f32 %v4440, %v4439
        %v4442 = vmul.f32 0.5, %v4441
        %v4443 = vsub.f32 1.5, %v4442
        %v4444 = vmul.f32 %v4439, %v4443
        %vm4445 = vweird.f32 %v4396
        %vm4446 = vweird.f32 %v4439
        %vm4447 = vmor %vm4445, %vm4446
        %v4448 = vsel %vm4447, %v4439, %v4444
        %v4449 = vrsqrt.pop %v4397
        %v4450 = vmul.f32 %v4449, %v4397
        %v4451 = vmul.f32 %v4450, %v4449
        %v4452 = vmul.f32 0.5, %v4451
        %v4453 = vsub.f32 1.5, %v4452
        %v4454 = vmul.f32 %v4449, %v4453
        %vm4455 = vweird.f32 %v4397
        %vm4456 = vweird.f32 %v4449
        %vm4457 = vmor %vm4455, %vm4456
        %v4458 = vsel %vm4457, %v4449, %v4454
        %v4459 = vrsqrt.pop %v4398
        %v4460 = vmul.f32 %v4459, %v4398
        %v4461 = vmul.f32 %v4460, %v4459
        %v4462 = vmul.f32 0.5, %v4461
        %v4463 = vsub.f32 1.5, %v4462
        %v4464 = vmul.f32 %v4459, %v4463
        %vm4465 = vweird.f32 %v4398
        %vm4466 = vweird.f32 %v4459
        %vm4467 = vmor %vm4465, %vm4466
        %v4468 = vsel %vm4467, %v4459, %v4464
        %v4469 = vrsqrt.pop %v4399
        %v4470 = vmul.f32 %v4469, %v4399
        %v4471 = vmul.f32 %v4470, %v4469
        %v4472 = vmul.f32 0.5, %v4471
        %v4473 = vsub.f32 1.5, %v4472
        %v4474 = vmul.f32 %v4469, %v4473
        %vm4475 = vweird.f32 %v4399
        %vm4476 = vweird.f32 %v4469
        %vm4477 = vmor %vm4475, %vm4476
        %v4478 = vsel %vm4477, %v4469, %v4474
        %v4479 = vrsqrt.pop %v4400
        %v4480 = vmul.f32 %v4479, %v4400
        %v4481 = vmul.f32 %v4480, %v4479
        %v4482 = vmul.f32 0.5, %v4481
        %v4483 = vsub.f32 1.5, %v4482
        %v4484 = vmul.f32 %v4479, %v4483
        %vm4485 = vweird.f32 %v4400
        %vm4486 = vweird.f32 %v4479
        %vm4487 = vmor %vm4485, %vm4486
        %v4488 = vsel %vm4487, %v4479, %v4484
        %v4489 = vrsqrt.pop %v4401
        %v4490 = vmul.f32 %v4489, %v4401
        %v4491 = vmul.f32 %v4490, %v4489
        %v4492 = vmul.f32 0.5, %v4491
        %v4493 = vsub.f32 1.5, %v4492
        %v4494 = vmul.f32 %v4489, %v4493
        %vm4495 = vweird.f32 %v4401
        %vm4496 = vweird.f32 %v4489
        %vm4497 = vmor %vm4495, %vm4496
        %v4498 = vsel %vm4497, %v4489, %v4494
        %v4499 = vrsqrt.pop %v4402
        %v4500 = vmul.f32 %v4499, %v4402
        %v4501 = vmul.f32 %v4500, %v4499
        %v4502 = vmul.f32 0.5, %v4501
        %v4503 = vsub.f32 1.5, %v4502
        %v4504 = vmul.f32 %v4499, %v4503
        %vm4505 = vweird.f32 %v4402
        %vm4506 = vweird.f32 %v4499
        %vm4507 = vmor %vm4505, %vm4506
        %v4508 = vsel %vm4507, %v4499, %v4504
        %v4509 = vrsqrt.pop %v4403
        %v4510 = vmul.f32 %v4509, %v4403
        %v4511 = vmul.f32 %v4510, %v4509
        %v4512 = vmul.f32 0.5, %v4511
        %v4513 = vsub.f32 1.5, %v4512
        %v4514 = vmul.f32 %v4509, %v4513
        %vm4515 = vweird.f32 %v4403
        %vm4516 = vweird.f32 %v4509
        %vm4517 = vmor %vm4515, %vm4516
        %v4518 = vsel %vm4517, %v4509, %v4514
        %v4519 = vrsqrt.pop %v4404
        %v4520 = vmul.f32 %v4519, %v4404
        %v4521 = vmul.f32 %v4520, %v4519
        %v4522 = vmul.f32 0.5, %v4521
        %v4523 = vsub.f32 1.5, %v4522
        %v4524 = vmul.f32 %v4519, %v4523
        %vm4525 = vweird.f32 %v4404
        %vm4526 = vweird.f32 %v4519
        %vm4527 = vmor %vm4525, %vm4526
        %v4528 = vsel %vm4527, %v4519, %v4524
        %v4529 = vrsqrt.pop %v4405
        %v4530 = vmul.f32 %v4529, %v4405
        %v4531 = vmul.f32 %v4530, %v4529
        %v4532 = vmul.f32 0.5, %v4531
        %v4533 = vsub.f32 1.5, %v4532
        %v4534 = vmul.f32 %v4529, %v4533
        %vm4535 = vweird.f32 %v4405
        %vm4536 = vweird.f32 %v4529
        %vm4537 = vmor %vm4535, %vm4536
        %v4538 = vsel %vm4537, %v4529, %v4534
        %v4539 = vrsqrt.pop %v4406
        %v4540 = vmul.f32 %v4539, %v4406
        %v4541 = vmul.f32 %v4540, %v4539
        %v4542 = vmul.f32 0.5, %v4541
        %v4543 = vsub.f32 1.5, %v4542
        %v4544 = vmul.f32 %v4539, %v4543
        %vm4545 = vweird.f32 %v4406
        %vm4546 = vweird.f32 %v4539
        %vm4547 = vmor %vm4545, %vm4546
        %v4548 = vsel %vm4547, %v4539, %v4544
        %v4549 = vrsqrt.pop %v4407
        %v4550 = vmul.f32 %v4549, %v4407
        %v4551 = vmul.f32 %v4550, %v4549
        %v4552 = vmul.f32 0.5, %v4551
        %v4553 = vsub.f32 1.5, %v4552
        %v4554 = vmul.f32 %v4549, %v4553
        %vm4555 = vweird.f32 %v4407
        %vm4556 = vweird.f32 %v4549
        %vm4557 = vmor %vm4555, %vm4556
        %v4558 = vsel %vm4557, %v4549, %v4554
        %v4559 = vrsqrt.pop %v4408
        %v4560 = vmul.f32 %v4559, %v4408
        %v4561 = vmul.f32 %v4560, %v4559
        %v4562 = vmul.f32 0.5, %v4561
        %v4563 = vsub.f32 1.5, %v4562
        %v4564 = vmul.f32 %v4559, %v4563
        %vm4565 = vweird.f32 %v4408
        %vm4566 = vweird.f32 %v4559
        %vm4567 = vmor %vm4565, %vm4566
        %v4568 = vsel %vm4567, %v4559, %v4564
        %v4569 = vmul.f32 %v4297, %v4418
        %v4570 = vmul.f32 %v4298, %v4428
        %v4571 = vmul.f32 %v4299, %v4438
        %v4572 = vmul.f32 %v4300, %v4448
        %v4573 = vmul.f32 %v4301, %v4458
        %v4574 = vmul.f32 %v4302, %v4468
        %v4575 = vmul.f32 %v4303, %v4478
        %v4576 = vmul.f32 %v4304, %v4488
        %v4577 = vmul.f32 %v4305, %v4498
        %v4578 = vmul.f32 %v4306, %v4508
        %v4579 = vmul.f32 %v4307, %v4518
        %v4580 = vmul.f32 %v4308, %v4528
        %v4581 = vmul.f32 %v4309, %v4538
        %v4582 = vmul.f32 %v4310, %v4548
        %v4583 = vmul.f32 %v4311, %v4558
        %v4584 = vmul.f32 %v4312, %v4568
        %v4585 = vmax.f32 %v4569, 0.0
        %v4586 = vmax.f32 %v4570, 0.0
        %v4587 = vmax.f32 %v4571, 0.0
        %v4588 = vmax.f32 %v4572, 0.0
        %v4589 = vmax.f32 %v4573, 0.0
        %v4590 = vmax.f32 %v4574, 0.0
        %v4591 = vmax.f32 %v4575, 0.0
        %v4592 = vmax.f32 %v4576, 0.0
        %v4593 = vmax.f32 %v4577, 0.0
        %v4594 = vmax.f32 %v4578, 0.0
        %v4595 = vmax.f32 %v4579, 0.0
        %v4596 = vmax.f32 %v4580, 0.0
        %v4597 = vmax.f32 %v4581, 0.0
        %v4598 = vmax.f32 %v4582, 0.0
        %v4599 = vmax.f32 %v4583, 0.0
        %v4600 = vmax.f32 %v4584, 0.0
        %v4601 = vsel %vm2780, %v4585, 0.0
        %4602 = vadd.xlane.f32.xlu0 %v4601
        %v4603 = vpop.xlane.xlu0 %4602
        %v4604 = vsel %vm2780, %v4586, 0.0
        %4605 = vadd.xlane.f32.xlu0 %v4604
        %v4606 = vpop.xlane.xlu0 %4605
        %v4607 = vsel %vm2780, %v4587, 0.0
        %4608 = vadd.xlane.f32.xlu0 %v4607
        %v4609 = vpop.xlane.xlu0 %4608
        %v4610 = vsel %vm2780, %v4588, 0.0
        %4611 = vadd.xlane.f32.xlu0 %v4610
        %v4612 = vpop.xlane.xlu0 %4611
        %v4613 = vsel %vm2780, %v4589, 0.0
        %4614 = vadd.xlane.f32.xlu0 %v4613
        %v4615 = vpop.xlane.xlu0 %4614
        %v4616 = vsel %vm2780, %v4590, 0.0
        %4617 = vadd.xlane.f32.xlu0 %v4616
        %v4618 = vpop.xlane.xlu0 %4617
        %v4619 = vsel %vm2780, %v4591, 0.0
        %4620 = vadd.xlane.f32.xlu0 %v4619
        %v4621 = vpop.xlane.xlu0 %4620
        %v4622 = vsel %vm2780, %v4592, 0.0
        %4623 = vadd.xlane.f32.xlu0 %v4622
        %v4624 = vpop.xlane.xlu0 %4623
        %v4625 = vsel %vm2780, %v4593, 0.0
        %4626 = vadd.xlane.f32.xlu0 %v4625
        %v4627 = vpop.xlane.xlu0 %4626
        %v4628 = vsel %vm2780, %v4594, 0.0
        %4629 = vadd.xlane.f32.xlu0 %v4628
        %v4630 = vpop.xlane.xlu0 %4629
        %v4631 = vsel %vm2780, %v4595, 0.0
        %4632 = vadd.xlane.f32.xlu0 %v4631
        %v4633 = vpop.xlane.xlu0 %4632
        %v4634 = vsel %vm2780, %v4596, 0.0
        %4635 = vadd.xlane.f32.xlu0 %v4634
        %v4636 = vpop.xlane.xlu0 %4635
        %v4637 = vsel %vm2780, %v4597, 0.0
        %4638 = vadd.xlane.f32.xlu0 %v4637
        %v4639 = vpop.xlane.xlu0 %4638
        %v4640 = vsel %vm2780, %v4598, 0.0
        %4641 = vadd.xlane.f32.xlu0 %v4640
        %v4642 = vpop.xlane.xlu0 %4641
        %v4643 = vsel %vm2780, %v4599, 0.0
        %4644 = vadd.xlane.f32.xlu0 %v4643
        %v4645 = vpop.xlane.xlu0 %4644
        %v4646 = vsel %vm2780, %v4600, 0.0
        %4647 = vadd.xlane.f32.xlu0 %v4646
        %v4648 = vpop.xlane.xlu0 %4647
        %v4649 = vmul.f32 %v4603, %v2835
        %v4650 = vmul.f32 %v4606, %v2835
        %v4651 = vmul.f32 %v4609, %v2835
        %v4652 = vmul.f32 %v4612, %v2835
        %v4653 = vmul.f32 %v4615, %v2835
        %v4654 = vmul.f32 %v4618, %v2835
        %v4655 = vmul.f32 %v4621, %v2835
        %v4656 = vmul.f32 %v4624, %v2835
        %v4657 = vmul.f32 %v4627, %v2835
        %v4658 = vmul.f32 %v4630, %v2835
        %v4659 = vmul.f32 %v4633, %v2835
        %v4660 = vmul.f32 %v4636, %v2835
        %v4661 = vmul.f32 %v4639, %v2835
        %v4662 = vmul.f32 %v4642, %v2835
        %v4663 = vmul.f32 %v4645, %v2835
        %v4664 = vmul.f32 %v4648, %v2835
        %vm4665 = vcmask 0
        %4666 = vst.msk [vmem:[%s227] sm:$0x1] %vm4665, %v4649
        %4667 = vst.msk [vmem:[%s227 + $0x1] sm:$0x1] %vm4665, %v4650
        %4668 = vst.msk [vmem:[%s227 + $0x2] sm:$0x1] %vm4665, %v4651
        %4669 = vst.msk [vmem:[%s227 + $0x3] sm:$0x1] %vm4665, %v4652
        %4670 = vst.msk [vmem:[%s227 + $0x4] sm:$0x1] %vm4665, %v4653
        %4671 = vst.msk [vmem:[%s227 + $0x5] sm:$0x1] %vm4665, %v4654
        %4672 = vst.msk [vmem:[%s227 + $0x6] sm:$0x1] %vm4665, %v4655
        %4673 = vst.msk [vmem:[%s227 + $0x7] sm:$0x1] %vm4665, %v4656
        %4674 = vst.msk [vmem:[%s227 + $0x8] sm:$0x1] %vm4665, %v4657
        %4675 = vst.msk [vmem:[%s227 + $0x9] sm:$0x1] %vm4665, %v4658
        %4676 = vst.msk [vmem:[%s227 + $0xa] sm:$0x1] %vm4665, %v4659
        %4677 = vst.msk [vmem:[%s227 + $0xb] sm:$0x1] %vm4665, %v4660
        %4678 = vst.msk [vmem:[%s227 + $0xc] sm:$0x1] %vm4665, %v4661
        %4679 = vst.msk [vmem:[%s227 + $0xd] sm:$0x1] %vm4665, %v4662
        %4680 = vst.msk [vmem:[%s227 + $0xe] sm:$0x1] %vm4665, %v4663
        %4681 = vst.msk [vmem:[%s227 + $0xf] sm:$0x1] %vm4665, %v4664
        %s4682 = smul.u32 16, %s17
        %p4683 = scmp.lt.s32.totalorder %s4682, 31
        %s4684 = scalar_select %p4683, %s4682, 31
        %s4685 = scalar_lea.vmem %s4, %s4684
        // Predicated region
        $region45: #{tpu_custom_call.1} parent=35 // pred_check
          %p4686 = pneg %p124
        $region46: #{tpu_custom_call.1} parent=35 // pred_check_branch
          %4688 = sbr.rel (%p4686) target = $region48
        $region47: #{tpu_custom_call.1} parent=35 // pred_region
          %s4689 = smul.u32 16, %s17
        $region48: #{tpu_custom_call.1} parent=35 // pred_fallthru
          _
      $region36: #{tpu_custom_call.1} parent=5 // pred_fallthru
        _
      %p4690 = scmp.le.s32.totalorder 2, %s12
      // Predicated region
      $region49: #{tpu_custom_call.1} parent=5 // pred_check
        %p4691 = pneg %p4690
      $region50: #{tpu_custom_call.1} parent=5 // pred_check_branch
        %4693 = sbr.rel (%p4691) target = $region52
      $region51: #{tpu_custom_call.1} parent=5 // pred_region
        %s4694 = ssub.s32 %s12, 2
        // Predicated region
        $region53: #{tpu_custom_call.1} parent=51 // pred_check
          %p4695 = pneg %p130
        $region54: #{tpu_custom_call.1} parent=51 // pred_check_branch
          %4697 = sbr.rel (%p4695) target = $region56
        $region55: #{tpu_custom_call.1} parent=51 // pred_region
          %s4698 = smul.u32 16, %s18
          %p4699 = scmp.lt.s32.totalorder %s4698, 31
          %s4700 = scalar_select %p4699, %s4698, 31
          %s4701 = scalar_lea.vmem %s4, %s4700
        $region56: #{tpu_custom_call.1} parent=51 // pred_fallthru
          _
      $region52: #{tpu_custom_call.1} parent=5 // pred_fallthru
        _
    $region6: #{tpu_custom_call.1} parent=1 // loop_footer
      %s16 = sadd.s32 1, %s12
    $region7: #{tpu_custom_call.1} parent=1 // loop_footer_branch
      %11 = sbr.rel target = $region3
    $region8: #{tpu_custom_call.1} parent=1 // loop_exit
      _
    %4702 = vsyncpa [#allocation5], 1
    %s4703 = scalar_lea.sflag [#allocation5], 1
    %4704 = vsyncpa %s4703, 1
    %4705 = vsyncpa [#allocation7], 1

</llo_original>
